<compile_context>
chip_gen: v7x
topology: tpu7x:2x2x1
jax: 0.10.0
libtpu: 0.0.40
codegen_flags: <defaults>
</compile_context>

<pallas_src>
import functools

import numpy as np
import jax
import jax.numpy as jnp
from jax.experimental import pallas as pl
from jax.experimental.pallas import tpu as pltpu

EPS = 1e-5


# ----------------------------------------------------------------------------- kernel
def _excavate_kernel(x_ref, m_ref, v_ref, scl_ref, b2d_ref, p_ref, e_ref, o_ref,
                     *, C, H, W, Bblk):
    f32, bf16 = jnp.float32, jnp.bfloat16
    HW = H * W

    def mm(a, b):
        # single-pass bf16 MXU matmul, f32 accumulation
        return jnp.dot(a.astype(bf16), b.astype(bf16), preferred_element_type=f32)

    # ---- operands shared by every image in this grid step (loaded once) ----
    W2f = m_ref[0]            # bn1-folded conv2 weight (s1 * conv2_w)
    W2 = m_ref[1]             # plain conv2 weight (second attention conv)
    W3 = m_ref[2]             # block-diagonal conv3 (channel + spatial gates)
    W1a = m_ref[3]            # conv1[0] with channel shuffle folded in
    W1b = m_ref[4]            # conv1[4]

    b2p = v_ref[:, 0:1]       # s1*conv2_b + t1  (bn1 fold)
    b3 = v_ref[:, 1:2]        # conv3 bias, both halves
    gnw_m = v_ref[:, 2:3]     # GroupNorm weight, zero on x0 rows
    gnb_m = v_ref[:, 3:4]     # GroupNorm bias, zero on x0 rows
    mask0 = v_ref[:, 4:5]     # 1.0 on x0 rows
    sa = v_ref[:, 5:6]        # bn_a folded scale
    ta = v_ref[:, 6:7]        # bn_a folded shift
    sb = v_ref[:, 7:8]        # bn_b folded scale
    tb = v_ref[:, 8:9]        # bn_b folded shift

    scl = scl_ref[...]        # (C, H+W) per-(channel,position) scale
    b2d = b2d_ref[...]        # (C, H+W) = conv2_w @ shift + conv2_b (precomputed)
    P = p_ref[...]            # (HW, H+W) bf16 pooling operator
    E2 = e_ref[...]           # (H+W, 2*HW) bf16 fused broadcast-back operator

    ones_col = jnp.ones((HW, 1), bf16)
    inv_hw = 1.0 / HW

    def row_mean(t):
        # spatial mean on the MXU (frees the XLU cross-lane reduce slot)
        return jnp.dot(t.astype(bf16), ones_col, preferred_element_type=f32) * inv_hw

    # ---- Bblk independent per-image chains, unrolled for scheduler ILP -----
    for b in range(Bblk):
        x = x_ref[b]                                     # (C, HW) f32, HW on lanes

        # coordinate-attention branch
        pooled = mm(x, P)                                # (C, H+W) = [x_h | x_w]
        y1 = jnp.maximum(mm(W2f, pooled) + b2p, 0.0)     # conv2 + bn1(eval, folded) + relu
        att = jax.nn.sigmoid(mm(W2, y1 * scl) + b2d)     # per-pos affine + fused conv2
        res = mm(att, E2)                                # (C, 2*HW): [h-bcast | w-bcast]
        out1 = x * res[:, :HW] * res[:, HW:]

        # grouped channel + spatial gates (one block-diagonal conv3)
        mu = row_mean(out1)
        d = out1 - mu
        var = row_mean(d * d)                            # two-pass variance
        a = jax.lax.rsqrt(var + EPS) * gnw_m             # 0 on x0 rows
        bsh = gnb_m + mu * (mask0 - a)                   # mu on x0 rows, gnb - mu*a on x1
        zg = out1 * a + bsh                              # pooled / GroupNorm'd gate input
        merged = out1 * jax.nn.sigmoid(mm(W3, zg) + b3)

        # conv1 block (channel shuffle folded into W1a; conv biases cancel in IN)
        t = mm(W1a, merged)
        mu = row_mean(t)
        d = t - mu
        t = d * jax.lax.rsqrt(row_mean(d * d) + EPS)     # InstanceNorm2d (no affine)
        t = jnp.maximum(t * sa + ta, 0.0)                # BatchNorm (eval) + ReLU
        t = mm(W1b, t)
        mu = row_mean(t)
        d = t - mu
        t = d * jax.lax.rsqrt(row_mean(d * d) + EPS)     # InstanceNorm2d
        t = t * sb + tb                                  # BatchNorm (eval)

        o_ref[b] = jnp.maximum(t + x, 0.0)               # residual + relu (lane-dense store)


# ----------------------------------------------------------------------------- params
def init_params(key, C, G):
    cg = C // (2 * G)
    ks = iter(jax.random.split(key, 32))

    def rnd(shape, scale=0.2, shift=0.0):
        return scale * jax.random.normal(next(ks), shape, jnp.float32) + shift

    return {
        "conv2_w": rnd((C, C)), "conv2_b": rnd((C,)),
        "bn1_w": rnd((C,), 0.1, 1.0), "bn1_b": rnd((C,), 0.1),
        "bn1_mean": rnd((C,), 0.1), "bn1_var": jnp.abs(rnd((C,), 0.1)) + 1.0,
        "cweight1": rnd((C,)), "cbias1": rnd((C,), 0.1, 1.0),
        "sweight2": rnd((C,)), "sbias2": rnd((C,), 0.1, 1.0),
        "conv3_w": rnd((cg, cg)), "conv3_b": rnd((cg,)),
        "gn_w": rnd((cg,), 0.1, 1.0), "gn_b": rnd((cg,), 0.1),
        "conv1a_w": rnd((C, C)), "conv1a_b": rnd((C,)),
        "bn_a_w": rnd((C,), 0.1, 1.0), "bn_a_b": rnd((C,), 0.1),
        "bn_a_mean": rnd((C,), 0.1), "bn_a_var": jnp.abs(rnd((C,), 0.1)) + 1.0,
        "conv1b_w": rnd((C, C)), "conv1b_b": rnd((C,)),
        "bn_b_w": rnd((C,), 0.1, 1.0), "bn_b_b": rnd((C,), 0.1),
        "bn_b_mean": rnd((C,), 0.1), "bn_b_var": jnp.abs(rnd((C,), 0.1)) + 1.0,
    }


# ----------------------------------------------------------------------------- glue
def _build_operands(p, C, G, H, W):
    cg = C // (2 * G)
    HW = H * W

    def fold_bn(w, b, mean, var):
        s = w / jnp.sqrt(var + EPS)
        return s, b - mean * s

    s1, t1 = fold_bn(p["bn1_w"], p["bn1_b"], p["bn1_mean"], p["bn1_var"])
    sa, ta = fold_bn(p["bn_a_w"], p["bn_a_b"], p["bn_a_mean"], p["bn_a_var"])
    sb, tb = fold_bn(p["bn_b_w"], p["bn_b_b"], p["bn_b_mean"], p["bn_b_var"])

    # bn1 folded into the first conv2 (perf #4)
    W2f = s1[:, None] * p["conv2_w"]
    b2p = s1 * p["conv2_b"] + t1

    # one block-diagonal conv3 covering BOTH halves of every group (the channel
    # gate and the spatial gate act on disjoint channel blocks -> one matmul)
    W3 = jnp.zeros((C, C), jnp.float32)
    b3 = jnp.zeros((C,), jnp.float32)
    gnw_m = jnp.zeros((C,), jnp.float32)
    gnb_m = jnp.zeros((C,), jnp.float32)
    mask0 = np.zeros((C,), np.float32)
    for g in range(G):
        a0, a1, a2 = g * 2 * cg, g * 2 * cg + cg, g * 2 * cg + 2 * cg
        W3 = W3.at[a0:a1, a0:a1].set(p["conv3_w"])
        W3 = W3.at[a1:a2, a1:a2].set(p["conv3_w"])
        b3 = b3.at[a0:a1].set(p["conv3_b"])
        b3 = b3.at[a1:a2].set(p["conv3_b"])
        gnw_m = gnw_m.at[a1:a2].set(p["gn_w"])
        gnb_m = gnb_m.at[a1:a2].set(p["gn_b"])
        mask0[a0:a1] = 1.0
    mask0 = jnp.asarray(mask0)

    # channel shuffle c_s(out, 2) folded into conv1[0]'s input channels
    perm = np.array([(n % 2) * (C // 2) + n // 2 for n in range(C)])
    inv_perm = np.argsort(perm)
    W1a = p["conv1a_w"][:, inv_perm]

    # weights stacked (5, C, C), shipped as bf16 for the MXU (aligned blocks)
    mats = jnp.stack([W2f, p["conv2_w"], W3, W1a, p["conv1b_w"]]).astype(jnp.bfloat16)

    # remaining per-channel vectors: (C, 9) f32 (conv1 biases cancel inside the
    # InstanceNorms -> dropped; bn1 / cweight / sweight affines folded away)
    vecs = jnp.stack([b2p, b3, gnw_m, gnb_m, mask0, sa, ta, sb, tb], axis=1)

    # per-(channel, h-or-w-position) affine of the attention branch (perf #4):
    # scale shipped as scl, shift pre-multiplied through conv2 into b2d.
    scl = jnp.concatenate([jnp.broadcast_to(p["cweight1"][:, None], (C, H)),
                           jnp.broadcast_to(p["sweight2"][:, None], (C, W))], axis=1)
    sht = jnp.concatenate([jnp.broadcast_to(p["cbias1"][:, None], (C, H)),
                           jnp.broadcast_to(p["sbias2"][:, None], (C, W))], axis=1)
    b2d = p["conv2_w"] @ sht + p["conv2_b"][:, None]

    # channel-major pooling operator P (x @ P -> [x_h | x_w]) and the FUSED
    # broadcast-back operator E2 (att @ E2 -> [h-bcast | w-bcast]) (perf #5)
    pool = np.zeros((HW, H + W), np.float32)
    expd = np.zeros((H + W, 2 * HW), np.float32)
    for h in range(H):
        for w in range(W):
            q = h * W + w
            pool[q, h] = 1.0 / W            # x_h: mean over width
            pool[q, H + w] = 1.0 / H        # x_w: mean over height
            expd[h, q] = 1.0                # broadcast att_h over width
            expd[H + w, HW + q] = 1.0       # broadcast att_w over height
    return (mats, vecs, scl, b2d,
            jnp.asarray(pool, jnp.bfloat16), jnp.asarray(expd, jnp.bfloat16))


def excavate_feature_pallas(x_nchw, params, G, block_b=None):
    B, C, H, W = x_nchw.shape
    HW = H * W
    if block_b is None:
        block_b = 2 if B % 2 == 0 else 1
    assert B % block_b == 0, "batch must be divisible by block_b"

    mats, vecs, scl, b2d, pmat, emat = _build_operands(params, C, G, H, W)
    x_cm = x_nchw.reshape(B, C, HW)          # channel-major view: reshape only, no transpose

    kernel = functools.partial(_excavate_kernel, C=C, H=H, W=W, Bblk=block_b)
    out_cm = pl.pallas_call(
        kernel,
        out_shape=jax.ShapeDtypeStruct((B, C, HW), jnp.float32),
        grid=(B // block_b,),
        in_specs=[
            pl.BlockSpec((block_b, C, HW), lambda b: (b, 0, 0)),
            pl.BlockSpec(mats.shape, lambda b: (0, 0, 0)),
            pl.BlockSpec(vecs.shape, lambda b: (0, 0)),
            pl.BlockSpec(scl.shape, lambda b: (0, 0)),
            pl.BlockSpec(b2d.shape, lambda b: (0, 0)),
            pl.BlockSpec(pmat.shape, lambda b: (0, 0)),
            pl.BlockSpec(emat.shape, lambda b: (0, 0)),
        ],
        out_specs=pl.BlockSpec((block_b, C, HW), lambda b: (b, 0, 0)),
        compiler_params=pltpu.CompilerParams(dimension_semantics=("parallel",)),
    )(x_cm, mats, vecs, scl, b2d, pmat, emat)

    return out_cm.reshape(B, C, H, W)


# ----------------------------------------------------------------------------- pure-JAX reference (mirrors the PyTorch forward, NCHW, f32 HIGHEST)
def excavate_feature_ref(x, p, G):
    b, C, H, W = x.shape
    cg = C // (2 * G)
    hi = jax.lax.Precision.HIGHEST

    def conv1x1(t, w, bias):
        return jnp.einsum("oc,bchw->bohw", w, t, precision=hi) + bias[None, :, None, None]

    def bn_eval(t, w, bias, mean, var):
        s = w / jnp.sqrt(var + EPS)
        return (t - mean[None, :, None, None]) * s[None, :, None, None] + bias[None, :, None, None]

    def inorm(t):
        mu = t.mean(axis=(2, 3), keepdims=True)
        va = ((t - mu) ** 2).mean(axis=(2, 3), keepdims=True)
        return (t - mu) / jnp.sqrt(va + EPS)

    x_h = x.mean(axis=3, keepdims=True)
    x_w = jnp.transpose(x.mean(axis=2, keepdims=True), (0, 1, 3, 2))
    y1 = jnp.concatenate([x_h, x_w], axis=2)
    y1 = jnp.maximum(bn_eval(conv1x1(y1, p["conv2_w"], p["conv2_b"]),
                             p["bn1_w"], p["bn1_b"], p["bn1_mean"], p["bn1_var"]), 0.0)
    xh, xw = y1[:, :, :H], jnp.transpose(y1[:, :, H:], (0, 1, 3, 2))
    xh = p["cweight1"][None, :, None, None] * xh + p["cbias1"][None, :, None, None]
    xw = p["sweight2"][None, :, None, None] * xw + p["sbias2"][None, :, None, None]
    ah = jax.nn.sigmoid(conv1x1(xh, p["conv2_w"], p["conv2_b"]))
    aw = jax.nn.sigmoid(conv1x1(xw, p["conv2_w"], p["conv2_b"]))
    out1 = x * ah * aw

    x2 = out1.reshape(b * G, C // G, H, W)
    x0, x1 = x2[:, :cg], x2[:, cg:]
    xc = conv1x1(x0.mean(axis=(2, 3), keepdims=True), p["conv3_w"], p["conv3_b"])
    x_channel = x0 * jax.nn.sigmoid(xc)
    xs = inorm(x1) * p["gn_w"][None, :, None, None] + p["gn_b"][None, :, None, None]
    xs = conv1x1(xs, p["conv3_w"], p["conv3_b"])
    x_spatial = x1 * jax.nn.sigmoid(xs)
    out = jnp.concatenate([x_channel, x_spatial], axis=1).reshape(b, C, H, W)

    out2 = jnp.transpose(out.reshape(b, 2, C // 2, H, W), (0, 2, 1, 3, 4)).reshape(b, C, H, W)
    t = conv1x1(out2, p["conv1a_w"], p["conv1a_b"])
    t = jnp.maximum(bn_eval(inorm(t), p["bn_a_w"], p["bn_a_b"], p["bn_a_mean"], p["bn_a_var"]), 0.0)
    t = conv1x1(t, p["conv1b_w"], p["conv1b_b"])
    t = bn_eval(inorm(t), p["bn_b_w"], p["bn_b_b"], p["bn_b_mean"], p["bn_b_var"])
    return jnp.maximum(t + x, 0.0)


# ----------------------------------------------------------------------------- main
if __name__ == "__main__":
    # excavate_feature(channel=32, G=4); B=8 so the grid has >=2 steps per
    # TensorCore on v7x while still running 2 images per grid step.
    B, C, H, W, G = 8, 32, 16, 16, 4
    key = jax.random.PRNGKey(0)
    kx, kp = jax.random.split(key)
    x = jax.random.normal(kx, (B, C, H, W), jnp.float32)
    params = init_params(kp, C, G)

    out = jax.block_until_ready(excavate_feature_pallas(x, params, G, block_b=2))
    ref = jax.block_until_ready(excavate_feature_ref(x, params, G))

    assert out.shape == (B, C, H, W) and out.dtype == jnp.float32
    max_err = float(jnp.max(jnp.abs(out - ref)))
    # kernel uses single-pass bf16 MXU matmuls (per perf review) vs an f32
    # HIGHEST reference; two-pass variance keeps the norms well-conditioned.
    assert max_err < 5e-2, f"mismatch vs reference: {max_err}"
    print("KERNEL_OK")
</pallas_src>

<mosaic_0001>
module attributes {stable_mosaic.version = 11 : i64} {
  func.func @_excavate_kernel(%arg0: i32, %arg1: memref<2x32x256xf32, #tpu.memory_space<vmem>>, %arg2: memref<5x32x32xbf16, #tpu.memory_space<vmem>>, %arg3: memref<32x9xf32, #tpu.memory_space<vmem>>, %arg4: memref<32x32xf32, #tpu.memory_space<vmem>>, %arg5: memref<32x32xf32, #tpu.memory_space<vmem>>, %arg6: memref<256x32xbf16, #tpu.memory_space<vmem>>, %arg7: memref<32x512xbf16, #tpu.memory_space<vmem>>, %arg8: memref<2x32x256xf32, #tpu.memory_space<vmem>>) attributes {dimension_semantics = [#tpu.dimension_semantics<parallel>], iteration_bounds = array<i64: 4>, scalar_prefetch = 0 : i64, scratch_operands = 0 : i64, tpu.core_type = #tpu.core_type<tc>, window_params = [{transform_indices = @transform_0, window_bounds = array<i64: 2, 32, 256>}, {pipeline_mode = #tpu.pipeline_mode<synchronous>, transform_indices = @transform_1, window_bounds = array<i64: 5, 32, 32>}, {pipeline_mode = #tpu.pipeline_mode<synchronous>, transform_indices = @transform_2, window_bounds = array<i64: 32, 9>}, {pipeline_mode = #tpu.pipeline_mode<synchronous>, transform_indices = @transform_3, window_bounds = array<i64: 32, 32>}, {pipeline_mode = #tpu.pipeline_mode<synchronous>, transform_indices = @transform_4, window_bounds = array<i64: 32, 32>}, {pipeline_mode = #tpu.pipeline_mode<synchronous>, transform_indices = @transform_5, window_bounds = array<i64: 256, 32>}, {pipeline_mode = #tpu.pipeline_mode<synchronous>, transform_indices = @transform_6, window_bounds = array<i64: 32, 512>}, {transform_indices = @transform_7, window_bounds = array<i64: 2, 32, 256>}]} {
    %c0 = arith.constant 0 : index
    %c0_0 = arith.constant 0 : index
    %c0_1 = arith.constant 0 : index
    %0 = vector.load %arg2[%c0, %c0_0, %c0_1] : memref<5x32x32xbf16, #tpu.memory_space<vmem>>, vector<1x32x32xbf16>
    %1 = vector.shape_cast %0 : vector<1x32x32xbf16> to vector<32x32xbf16>
    %c1 = arith.constant 1 : index
    %c0_2 = arith.constant 0 : index
    %c0_3 = arith.constant 0 : index
    %2 = vector.load %arg2[%c1, %c0_2, %c0_3] : memref<5x32x32xbf16, #tpu.memory_space<vmem>>, vector<1x32x32xbf16>
    %3 = vector.shape_cast %2 : vector<1x32x32xbf16> to vector<32x32xbf16>
    %c2 = arith.constant 2 : index
    %c0_4 = arith.constant 0 : index
    %c0_5 = arith.constant 0 : index
    %4 = vector.load %arg2[%c2, %c0_4, %c0_5] : memref<5x32x32xbf16, #tpu.memory_space<vmem>>, vector<1x32x32xbf16>
    %5 = vector.shape_cast %4 : vector<1x32x32xbf16> to vector<32x32xbf16>
    %c3 = arith.constant 3 : index
    %c0_6 = arith.constant 0 : index
    %c0_7 = arith.constant 0 : index
    %6 = vector.load %arg2[%c3, %c0_6, %c0_7] : memref<5x32x32xbf16, #tpu.memory_space<vmem>>, vector<1x32x32xbf16>
    %7 = vector.shape_cast %6 : vector<1x32x32xbf16> to vector<32x32xbf16>
    %c4 = arith.constant 4 : index
    %c0_8 = arith.constant 0 : index
    %c0_9 = arith.constant 0 : index
    %8 = vector.load %arg2[%c4, %c0_8, %c0_9] : memref<5x32x32xbf16, #tpu.memory_space<vmem>>, vector<1x32x32xbf16>
    %9 = vector.shape_cast %8 : vector<1x32x32xbf16> to vector<32x32xbf16>
    %c0_10 = arith.constant 0 : index
    %c0_11 = arith.constant 0 : index
    %10 = vector.load %arg3[%c0_10, %c0_11] : memref<32x9xf32, #tpu.memory_space<vmem>>, vector<32x1xf32>
    %c0_12 = arith.constant 0 : index
    %c1_13 = arith.constant 1 : index
    %11 = vector.load %arg3[%c0_12, %c1_13] : memref<32x9xf32, #tpu.memory_space<vmem>>, vector<32x1xf32>
    %c0_14 = arith.constant 0 : index
    %c2_15 = arith.constant 2 : index
    %12 = vector.load %arg3[%c0_14, %c2_15] : memref<32x9xf32, #tpu.memory_space<vmem>>, vector<32x1xf32>
    %c0_16 = arith.constant 0 : index
    %c3_17 = arith.constant 3 : index
    %13 = vector.load %arg3[%c0_16, %c3_17] : memref<32x9xf32, #tpu.memory_space<vmem>>, vector<32x1xf32>
    %c0_18 = arith.constant 0 : index
    %c4_19 = arith.constant 4 : index
    %14 = vector.load %arg3[%c0_18, %c4_19] : memref<32x9xf32, #tpu.memory_space<vmem>>, vector<32x1xf32>
    %c0_20 = arith.constant 0 : index
    %c5 = arith.constant 5 : index
    %15 = vector.load %arg3[%c0_20, %c5] : memref<32x9xf32, #tpu.memory_space<vmem>>, vector<32x1xf32>
    %c0_21 = arith.constant 0 : index
    %c6 = arith.constant 6 : index
    %16 = vector.load %arg3[%c0_21, %c6] : memref<32x9xf32, #tpu.memory_space<vmem>>, vector<32x1xf32>
    %c0_22 = arith.constant 0 : index
    %c7 = arith.constant 7 : index
    %17 = vector.load %arg3[%c0_22, %c7] : memref<32x9xf32, #tpu.memory_space<vmem>>, vector<32x1xf32>
    %c0_23 = arith.constant 0 : index
    %c8 = arith.constant 8 : index
    %18 = vector.load %arg3[%c0_23, %c8] : memref<32x9xf32, #tpu.memory_space<vmem>>, vector<32x1xf32>
    %c0_24 = arith.constant 0 : index
    %c0_25 = arith.constant 0 : index
    %19 = vector.load %arg4[%c0_24, %c0_25] : memref<32x32xf32, #tpu.memory_space<vmem>>, vector<32x32xf32>
    %c0_26 = arith.constant 0 : index
    %c0_27 = arith.constant 0 : index
    %20 = vector.load %arg5[%c0_26, %c0_27] : memref<32x32xf32, #tpu.memory_space<vmem>>, vector<32x32xf32>
    %c0_28 = arith.constant 0 : index
    %c0_29 = arith.constant 0 : index
    %21 = vector.load %arg6[%c0_28, %c0_29] : memref<256x32xbf16, #tpu.memory_space<vmem>>, vector<256x32xbf16>
    %c0_30 = arith.constant 0 : index
    %c0_31 = arith.constant 0 : index
    %22 = vector.load %arg7[%c0_30, %c0_31] : memref<32x512xbf16, #tpu.memory_space<vmem>>, vector<32x512xbf16>
    %cst = arith.constant 1.000000e+00 : bf16
    %23 = vector.broadcast %cst : bf16 to vector<256x1xbf16>
    %c0_32 = arith.constant 0 : index
    %c0_33 = arith.constant 0 : index
    %c0_34 = arith.constant 0 : index
    %24 = vector.load %arg1[%c0_32, %c0_33, %c0_34] : memref<2x32x256xf32, #tpu.memory_space<vmem>>, vector<1x32x256xf32>
    %25 = vector.shape_cast %24 : vector<1x32x256xf32> to vector<32x256xf32>
    %26 = arith.truncf %25 : vector<32x256xf32> to vector<32x256xbf16>
    %cst_35 = arith.constant dense<0.000000e+00> : vector<32x32xf32>
    %27 = tpu.matmul %26, %21, %cst_35 {dimension_numbers = #tpu.dot_dimension_numbers<[1], [0], [0], [1], [0, 0, 1, 1], [], []>} : vector<32x256xbf16>, vector<256x32xbf16>, vector<32x32xf32> -> vector<32x32xf32>
    %28 = arith.truncf %27 : vector<32x32xf32> to vector<32x32xbf16>
    %cst_36 = arith.constant dense<0.000000e+00> : vector<32x32xf32>
    %29 = tpu.matmul %1, %28, %cst_36 {dimension_numbers = #tpu.dot_dimension_numbers<[1], [0], [0], [1], [0, 0, 1, 1], [], []>} : vector<32x32xbf16>, vector<32x32xbf16>, vector<32x32xf32> -> vector<32x32xf32>
    %30 = vector.broadcast %10 : vector<32x1xf32> to vector<32x32xf32>
    %31 = arith.addf %29, %30 : vector<32x32xf32>
    %cst_37 = arith.constant 0.000000e+00 : f32
    %32 = vector.broadcast %cst_37 : f32 to vector<32x32xf32>
    %33 = arith.maximumf %31, %32 : vector<32x32xf32>
    %34 = arith.mulf %33, %19 : vector<32x32xf32>
    %35 = arith.truncf %34 : vector<32x32xf32> to vector<32x32xbf16>
    %cst_38 = arith.constant dense<0.000000e+00> : vector<32x32xf32>
    %36 = tpu.matmul %3, %35, %cst_38 {dimension_numbers = #tpu.dot_dimension_numbers<[1], [0], [0], [1], [0, 0, 1, 1], [], []>} : vector<32x32xbf16>, vector<32x32xbf16>, vector<32x32xf32> -> vector<32x32xf32>
    %37 = arith.addf %36, %20 : vector<32x32xf32>
    %38 = arith.negf %37 : vector<32x32xf32>
    %39 = math.exp %38 : vector<32x32xf32>
    %cst_39 = arith.constant 1.000000e+00 : f32
    %40 = vector.broadcast %cst_39 : f32 to vector<32x32xf32>
    %41 = arith.addf %40, %39 : vector<32x32xf32>
    %42 = arith.divf %40, %41 : vector<32x32xf32>
    %43 = arith.truncf %42 : vector<32x32xf32> to vector<32x32xbf16>
    %cst_40 = arith.constant dense<0.000000e+00> : vector<32x512xf32>
    %44 = tpu.matmul %43, %22, %cst_40 {dimension_numbers = #tpu.dot_dimension_numbers<[1], [0], [0], [1], [0, 0, 1, 1], [], []>} : vector<32x32xbf16>, vector<32x512xbf16>, vector<32x512xf32> -> vector<32x512xf32>
    %45 = vector.extract_strided_slice %44 {offsets = [0, 0], sizes = [32, 256], strides = [1, 1]} : vector<32x512xf32> to vector<32x256xf32>
    %46 = arith.mulf %25, %45 : vector<32x256xf32>
    %47 = vector.extract_strided_slice %44 {offsets = [0, 256], sizes = [32, 256], strides = [1, 1]} : vector<32x512xf32> to vector<32x256xf32>
    %48 = arith.mulf %46, %47 : vector<32x256xf32>
    %49 = arith.truncf %48 : vector<32x256xf32> to vector<32x256xbf16>
    %cst_41 = arith.constant dense<0.000000e+00> : vector<32x1xf32>
    %50 = tpu.matmul %49, %23, %cst_41 {dimension_numbers = #tpu.dot_dimension_numbers<[1], [0], [0], [1], [0, 0, 1, 1], [], []>} : vector<32x256xbf16>, vector<256x1xbf16>, vector<32x1xf32> -> vector<32x1xf32>
    %cst_42 = arith.constant 3.906250e-03 : f32
    %51 = vector.broadcast %cst_42 : f32 to vector<32x1xf32>
    %52 = arith.mulf %50, %51 : vector<32x1xf32>
    %53 = vector.broadcast %52 : vector<32x1xf32> to vector<32x256xf32>
    %54 = arith.subf %48, %53 : vector<32x256xf32>
    %55 = arith.mulf %54, %54 : vector<32x256xf32>
    %56 = arith.truncf %55 : vector<32x256xf32> to vector<32x256xbf16>
    %cst_43 = arith.constant dense<0.000000e+00> : vector<32x1xf32>
    %57 = tpu.matmul %56, %23, %cst_43 {dimension_numbers = #tpu.dot_dimension_numbers<[1], [0], [0], [1], [0, 0, 1, 1], [], []>} : vector<32x256xbf16>, vector<256x1xbf16>, vector<32x1xf32> -> vector<32x1xf32>
    %cst_44 = arith.constant 3.906250e-03 : f32
    %58 = vector.broadcast %cst_44 : f32 to vector<32x1xf32>
    %59 = arith.mulf %57, %58 : vector<32x1xf32>
    %cst_45 = arith.constant 9.99999974E-6 : f32
    %60 = vector.broadcast %cst_45 : f32 to vector<32x1xf32>
    %61 = arith.addf %59, %60 : vector<32x1xf32>
    %62 = math.rsqrt %61 : vector<32x1xf32>
    %63 = arith.mulf %62, %12 : vector<32x1xf32>
    %64 = arith.subf %14, %63 : vector<32x1xf32>
    %65 = arith.mulf %52, %64 : vector<32x1xf32>
    %66 = arith.addf %13, %65 : vector<32x1xf32>
    %67 = vector.broadcast %63 : vector<32x1xf32> to vector<32x256xf32>
    %68 = arith.mulf %48, %67 : vector<32x256xf32>
    %69 = vector.broadcast %66 : vector<32x1xf32> to vector<32x256xf32>
    %70 = arith.addf %68, %69 : vector<32x256xf32>
    %71 = arith.truncf %70 : vector<32x256xf32> to vector<32x256xbf16>
    %cst_46 = arith.constant dense<0.000000e+00> : vector<32x256xf32>
    %72 = tpu.matmul %5, %71, %cst_46 {dimension_numbers = #tpu.dot_dimension_numbers<[1], [0], [0], [1], [0, 0, 1, 1], [], []>} : vector<32x32xbf16>, vector<32x256xbf16>, vector<32x256xf32> -> vector<32x256xf32>
    %73 = vector.broadcast %11 : vector<32x1xf32> to vector<32x256xf32>
    %74 = arith.addf %72, %73 : vector<32x256xf32>
    %75 = arith.negf %74 : vector<32x256xf32>
    %76 = math.exp %75 : vector<32x256xf32>
    %cst_47 = arith.constant 1.000000e+00 : f32
    %77 = vector.broadcast %cst_47 : f32 to vector<32x256xf32>
    %78 = arith.addf %77, %76 : vector<32x256xf32>
    %79 = arith.divf %77, %78 : vector<32x256xf32>
    %80 = arith.mulf %48, %79 : vector<32x256xf32>
    %81 = arith.truncf %80 : vector<32x256xf32> to vector<32x256xbf16>
    %cst_48 = arith.constant dense<0.000000e+00> : vector<32x256xf32>
    %82 = tpu.matmul %7, %81, %cst_48 {dimension_numbers = #tpu.dot_dimension_numbers<[1], [0], [0], [1], [0, 0, 1, 1], [], []>} : vector<32x32xbf16>, vector<32x256xbf16>, vector<32x256xf32> -> vector<32x256xf32>
    %83 = arith.truncf %82 : vector<32x256xf32> to vector<32x256xbf16>
    %cst_49 = arith.constant dense<0.000000e+00> : vector<32x1xf32>
    %84 = tpu.matmul %83, %23, %cst_49 {dimension_numbers = #tpu.dot_dimension_numbers<[1], [0], [0], [1], [0, 0, 1, 1], [], []>} : vector<32x256xbf16>, vector<256x1xbf16>, vector<32x1xf32> -> vector<32x1xf32>
    %cst_50 = arith.constant 3.906250e-03 : f32
    %85 = vector.broadcast %cst_50 : f32 to vector<32x1xf32>
    %86 = arith.mulf %84, %85 : vector<32x1xf32>
    %87 = vector.broadcast %86 : vector<32x1xf32> to vector<32x256xf32>
    %88 = arith.subf %82, %87 : vector<32x256xf32>
    %89 = arith.mulf %88, %88 : vector<32x256xf32>
    %90 = arith.truncf %89 : vector<32x256xf32> to vector<32x256xbf16>
    %cst_51 = arith.constant dense<0.000000e+00> : vector<32x1xf32>
    %91 = tpu.matmul %90, %23, %cst_51 {dimension_numbers = #tpu.dot_dimension_numbers<[1], [0], [0], [1], [0, 0, 1, 1], [], []>} : vector<32x256xbf16>, vector<256x1xbf16>, vector<32x1xf32> -> vector<32x1xf32>
    %cst_52 = arith.constant 3.906250e-03 : f32
    %92 = vector.broadcast %cst_52 : f32 to vector<32x1xf32>
    %93 = arith.mulf %91, %92 : vector<32x1xf32>
    %cst_53 = arith.constant 9.99999974E-6 : f32
    %94 = vector.broadcast %cst_53 : f32 to vector<32x1xf32>
    %95 = arith.addf %93, %94 : vector<32x1xf32>
    %96 = math.rsqrt %95 : vector<32x1xf32>
    %97 = vector.broadcast %96 : vector<32x1xf32> to vector<32x256xf32>
    %98 = arith.mulf %88, %97 : vector<32x256xf32>
    %99 = vector.broadcast %15 : vector<32x1xf32> to vector<32x256xf32>
    %100 = arith.mulf %98, %99 : vector<32x256xf32>
    %101 = vector.broadcast %16 : vector<32x1xf32> to vector<32x256xf32>
    %102 = arith.addf %100, %101 : vector<32x256xf32>
    %cst_54 = arith.constant 0.000000e+00 : f32
    %103 = vector.broadcast %cst_54 : f32 to vector<32x256xf32>
    %104 = arith.maximumf %102, %103 : vector<32x256xf32>
    %105 = arith.truncf %104 : vector<32x256xf32> to vector<32x256xbf16>
    %cst_55 = arith.constant dense<0.000000e+00> : vector<32x256xf32>
    %106 = tpu.matmul %9, %105, %cst_55 {dimension_numbers = #tpu.dot_dimension_numbers<[1], [0], [0], [1], [0, 0, 1, 1], [], []>} : vector<32x32xbf16>, vector<32x256xbf16>, vector<32x256xf32> -> vector<32x256xf32>
    %107 = arith.truncf %106 : vector<32x256xf32> to vector<32x256xbf16>
    %cst_56 = arith.constant dense<0.000000e+00> : vector<32x1xf32>
    %108 = tpu.matmul %107, %23, %cst_56 {dimension_numbers = #tpu.dot_dimension_numbers<[1], [0], [0], [1], [0, 0, 1, 1], [], []>} : vector<32x256xbf16>, vector<256x1xbf16>, vector<32x1xf32> -> vector<32x1xf32>
    %cst_57 = arith.constant 3.906250e-03 : f32
    %109 = vector.broadcast %cst_57 : f32 to vector<32x1xf32>
    %110 = arith.mulf %108, %109 : vector<32x1xf32>
    %111 = vector.broadcast %110 : vector<32x1xf32> to vector<32x256xf32>
    %112 = arith.subf %106, %111 : vector<32x256xf32>
    %113 = arith.mulf %112, %112 : vector<32x256xf32>
    %114 = arith.truncf %113 : vector<32x256xf32> to vector<32x256xbf16>
    %cst_58 = arith.constant dense<0.000000e+00> : vector<32x1xf32>
    %115 = tpu.matmul %114, %23, %cst_58 {dimension_numbers = #tpu.dot_dimension_numbers<[1], [0], [0], [1], [0, 0, 1, 1], [], []>} : vector<32x256xbf16>, vector<256x1xbf16>, vector<32x1xf32> -> vector<32x1xf32>
    %cst_59 = arith.constant 3.906250e-03 : f32
    %116 = vector.broadcast %cst_59 : f32 to vector<32x1xf32>
    %117 = arith.mulf %115, %116 : vector<32x1xf32>
    %cst_60 = arith.constant 9.99999974E-6 : f32
    %118 = vector.broadcast %cst_60 : f32 to vector<32x1xf32>
    %119 = arith.addf %117, %118 : vector<32x1xf32>
    %120 = math.rsqrt %119 : vector<32x1xf32>
    %121 = vector.broadcast %120 : vector<32x1xf32> to vector<32x256xf32>
    %122 = arith.mulf %112, %121 : vector<32x256xf32>
    %123 = vector.broadcast %17 : vector<32x1xf32> to vector<32x256xf32>
    %124 = arith.mulf %122, %123 : vector<32x256xf32>
    %125 = vector.broadcast %18 : vector<32x1xf32> to vector<32x256xf32>
    %126 = arith.addf %124, %125 : vector<32x256xf32>
    %127 = arith.addf %126, %25 : vector<32x256xf32>
    %cst_61 = arith.constant 0.000000e+00 : f32
    %128 = vector.broadcast %cst_61 : f32 to vector<32x256xf32>
    %129 = arith.maximumf %127, %128 : vector<32x256xf32>
    %c0_62 = arith.constant 0 : index
    %c0_63 = arith.constant 0 : index
    %c0_64 = arith.constant 0 : index
    %130 = vector.load %arg8[%c0_62, %c0_63, %c0_64] : memref<2x32x256xf32, #tpu.memory_space<vmem>>, vector<1x32x256xf32>
    %131 = vector.shape_cast %130 : vector<1x32x256xf32> to vector<32x256xf32>
    %132 = vector.shape_cast %129 : vector<32x256xf32> to vector<1x32x256xf32>
    tpu.vector_store %arg8[%c0_62, %c0_63, %c0_64], %132 {strides = array<i32>} : memref<2x32x256xf32, #tpu.memory_space<vmem>>, vector<1x32x256xf32>,
    %c1_65 = arith.constant 1 : index
    %c0_66 = arith.constant 0 : index
    %c0_67 = arith.constant 0 : index
    %133 = vector.load %arg1[%c1_65, %c0_66, %c0_67] : memref<2x32x256xf32, #tpu.memory_space<vmem>>, vector<1x32x256xf32>
    %134 = vector.shape_cast %133 : vector<1x32x256xf32> to vector<32x256xf32>
    %135 = arith.truncf %134 : vector<32x256xf32> to vector<32x256xbf16>
    %cst_68 = arith.constant dense<0.000000e+00> : vector<32x32xf32>
    %136 = tpu.matmul %135, %21, %cst_68 {dimension_numbers = #tpu.dot_dimension_numbers<[1], [0], [0], [1], [0, 0, 1, 1], [], []>} : vector<32x256xbf16>, vector<256x32xbf16>, vector<32x32xf32> -> vector<32x32xf32>
    %137 = arith.truncf %136 : vector<32x32xf32> to vector<32x32xbf16>
    %cst_69 = arith.constant dense<0.000000e+00> : vector<32x32xf32>
    %138 = tpu.matmul %1, %137, %cst_69 {dimension_numbers = #tpu.dot_dimension_numbers<[1], [0], [0], [1], [0, 0, 1, 1], [], []>} : vector<32x32xbf16>, vector<32x32xbf16>, vector<32x32xf32> -> vector<32x32xf32>
    %139 = vector.broadcast %10 : vector<32x1xf32> to vector<32x32xf32>
    %140 = arith.addf %138, %139 : vector<32x32xf32>
    %cst_70 = arith.constant 0.000000e+00 : f32
    %141 = vector.broadcast %cst_70 : f32 to vector<32x32xf32>
    %142 = arith.maximumf %140, %141 : vector<32x32xf32>
    %143 = arith.mulf %142, %19 : vector<32x32xf32>
    %144 = arith.truncf %143 : vector<32x32xf32> to vector<32x32xbf16>
    %cst_71 = arith.constant dense<0.000000e+00> : vector<32x32xf32>
    %145 = tpu.matmul %3, %144, %cst_71 {dimension_numbers = #tpu.dot_dimension_numbers<[1], [0], [0], [1], [0, 0, 1, 1], [], []>} : vector<32x32xbf16>, vector<32x32xbf16>, vector<32x32xf32> -> vector<32x32xf32>
    %146 = arith.addf %145, %20 : vector<32x32xf32>
    %147 = arith.negf %146 : vector<32x32xf32>
    %148 = math.exp %147 : vector<32x32xf32>
    %cst_72 = arith.constant 1.000000e+00 : f32
    %149 = vector.broadcast %cst_72 : f32 to vector<32x32xf32>
    %150 = arith.addf %149, %148 : vector<32x32xf32>
    %151 = arith.divf %149, %150 : vector<32x32xf32>
    %152 = arith.truncf %151 : vector<32x32xf32> to vector<32x32xbf16>
    %cst_73 = arith.constant dense<0.000000e+00> : vector<32x512xf32>
    %153 = tpu.matmul %152, %22, %cst_73 {dimension_numbers = #tpu.dot_dimension_numbers<[1], [0], [0], [1], [0, 0, 1, 1], [], []>} : vector<32x32xbf16>, vector<32x512xbf16>, vector<32x512xf32> -> vector<32x512xf32>
    %154 = vector.extract_strided_slice %153 {offsets = [0, 0], sizes = [32, 256], strides = [1, 1]} : vector<32x512xf32> to vector<32x256xf32>
    %155 = arith.mulf %134, %154 : vector<32x256xf32>
    %156 = vector.extract_strided_slice %153 {offsets = [0, 256], sizes = [32, 256], strides = [1, 1]} : vector<32x512xf32> to vector<32x256xf32>
    %157 = arith.mulf %155, %156 : vector<32x256xf32>
    %158 = arith.truncf %157 : vector<32x256xf32> to vector<32x256xbf16>
    %cst_74 = arith.constant dense<0.000000e+00> : vector<32x1xf32>
    %159 = tpu.matmul %158, %23, %cst_74 {dimension_numbers = #tpu.dot_dimension_numbers<[1], [0], [0], [1], [0, 0, 1, 1], [], []>} : vector<32x256xbf16>, vector<256x1xbf16>, vector<32x1xf32> -> vector<32x1xf32>
    %cst_75 = arith.constant 3.906250e-03 : f32
    %160 = vector.broadcast %cst_75 : f32 to vector<32x1xf32>
    %161 = arith.mulf %159, %160 : vector<32x1xf32>
    %162 = vector.broadcast %161 : vector<32x1xf32> to vector<32x256xf32>
    %163 = arith.subf %157, %162 : vector<32x256xf32>
    %164 = arith.mulf %163, %163 : vector<32x256xf32>
    %165 = arith.truncf %164 : vector<32x256xf32> to vector<32x256xbf16>
    %cst_76 = arith.constant dense<0.000000e+00> : vector<32x1xf32>
    %166 = tpu.matmul %165, %23, %cst_76 {dimension_numbers = #tpu.dot_dimension_numbers<[1], [0], [0], [1], [0, 0, 1, 1], [], []>} : vector<32x256xbf16>, vector<256x1xbf16>, vector<32x1xf32> -> vector<32x1xf32>
    %cst_77 = arith.constant 3.906250e-03 : f32
    %167 = vector.broadcast %cst_77 : f32 to vector<32x1xf32>
    %168 = arith.mulf %166, %167 : vector<32x1xf32>
    %cst_78 = arith.constant 9.99999974E-6 : f32
    %169 = vector.broadcast %cst_78 : f32 to vector<32x1xf32>
    %170 = arith.addf %168, %169 : vector<32x1xf32>
    %171 = math.rsqrt %170 : vector<32x1xf32>
    %172 = arith.mulf %171, %12 : vector<32x1xf32>
    %173 = arith.subf %14, %172 : vector<32x1xf32>
    %174 = arith.mulf %161, %173 : vector<32x1xf32>
    %175 = arith.addf %13, %174 : vector<32x1xf32>
    %176 = vector.broadcast %172 : vector<32x1xf32> to vector<32x256xf32>
    %177 = arith.mulf %157, %176 : vector<32x256xf32>
    %178 = vector.broadcast %175 : vector<32x1xf32> to vector<32x256xf32>
    %179 = arith.addf %177, %178 : vector<32x256xf32>
    %180 = arith.truncf %179 : vector<32x256xf32> to vector<32x256xbf16>
    %cst_79 = arith.constant dense<0.000000e+00> : vector<32x256xf32>
    %181 = tpu.matmul %5, %180, %cst_79 {dimension_numbers = #tpu.dot_dimension_numbers<[1], [0], [0], [1], [0, 0, 1, 1], [], []>} : vector<32x32xbf16>, vector<32x256xbf16>, vector<32x256xf32> -> vector<32x256xf32>
    %182 = vector.broadcast %11 : vector<32x1xf32> to vector<32x256xf32>
    %183 = arith.addf %181, %182 : vector<32x256xf32>
    %184 = arith.negf %183 : vector<32x256xf32>
    %185 = math.exp %184 : vector<32x256xf32>
    %cst_80 = arith.constant 1.000000e+00 : f32
    %186 = vector.broadcast %cst_80 : f32 to vector<32x256xf32>
    %187 = arith.addf %186, %185 : vector<32x256xf32>
    %188 = arith.divf %186, %187 : vector<32x256xf32>
    %189 = arith.mulf %157, %188 : vector<32x256xf32>
    %190 = arith.truncf %189 : vector<32x256xf32> to vector<32x256xbf16>
    %cst_81 = arith.constant dense<0.000000e+00> : vector<32x256xf32>
    %191 = tpu.matmul %7, %190, %cst_81 {dimension_numbers = #tpu.dot_dimension_numbers<[1], [0], [0], [1], [0, 0, 1, 1], [], []>} : vector<32x32xbf16>, vector<32x256xbf16>, vector<32x256xf32> -> vector<32x256xf32>
    %192 = arith.truncf %191 : vector<32x256xf32> to vector<32x256xbf16>
    %cst_82 = arith.constant dense<0.000000e+00> : vector<32x1xf32>
    %193 = tpu.matmul %192, %23, %cst_82 {dimension_numbers = #tpu.dot_dimension_numbers<[1], [0], [0], [1], [0, 0, 1, 1], [], []>} : vector<32x256xbf16>, vector<256x1xbf16>, vector<32x1xf32> -> vector<32x1xf32>
    %cst_83 = arith.constant 3.906250e-03 : f32
    %194 = vector.broadcast %cst_83 : f32 to vector<32x1xf32>
    %195 = arith.mulf %193, %194 : vector<32x1xf32>
    %196 = vector.broadcast %195 : vector<32x1xf32> to vector<32x256xf32>
    %197 = arith.subf %191, %196 : vector<32x256xf32>
    %198 = arith.mulf %197, %197 : vector<32x256xf32>
    %199 = arith.truncf %198 : vector<32x256xf32> to vector<32x256xbf16>
    %cst_84 = arith.constant dense<0.000000e+00> : vector<32x1xf32>
    %200 = tpu.matmul %199, %23, %cst_84 {dimension_numbers = #tpu.dot_dimension_numbers<[1], [0], [0], [1], [0, 0, 1, 1], [], []>} : vector<32x256xbf16>, vector<256x1xbf16>, vector<32x1xf32> -> vector<32x1xf32>
    %cst_85 = arith.constant 3.906250e-03 : f32
    %201 = vector.broadcast %cst_85 : f32 to vector<32x1xf32>
    %202 = arith.mulf %200, %201 : vector<32x1xf32>
    %cst_86 = arith.constant 9.99999974E-6 : f32
    %203 = vector.broadcast %cst_86 : f32 to vector<32x1xf32>
    %204 = arith.addf %202, %203 : vector<32x1xf32>
    %205 = math.rsqrt %204 : vector<32x1xf32>
    %206 = vector.broadcast %205 : vector<32x1xf32> to vector<32x256xf32>
    %207 = arith.mulf %197, %206 : vector<32x256xf32>
    %208 = vector.broadcast %15 : vector<32x1xf32> to vector<32x256xf32>
    %209 = arith.mulf %207, %208 : vector<32x256xf32>
    %210 = vector.broadcast %16 : vector<32x1xf32> to vector<32x256xf32>
    %211 = arith.addf %209, %210 : vector<32x256xf32>
    %cst_87 = arith.constant 0.000000e+00 : f32
    %212 = vector.broadcast %cst_87 : f32 to vector<32x256xf32>
    %213 = arith.maximumf %211, %212 : vector<32x256xf32>
    %214 = arith.truncf %213 : vector<32x256xf32> to vector<32x256xbf16>
    %cst_88 = arith.constant dense<0.000000e+00> : vector<32x256xf32>
    %215 = tpu.matmul %9, %214, %cst_88 {dimension_numbers = #tpu.dot_dimension_numbers<[1], [0], [0], [1], [0, 0, 1, 1], [], []>} : vector<32x32xbf16>, vector<32x256xbf16>, vector<32x256xf32> -> vector<32x256xf32>
    %216 = arith.truncf %215 : vector<32x256xf32> to vector<32x256xbf16>
    %cst_89 = arith.constant dense<0.000000e+00> : vector<32x1xf32>
    %217 = tpu.matmul %216, %23, %cst_89 {dimension_numbers = #tpu.dot_dimension_numbers<[1], [0], [0], [1], [0, 0, 1, 1], [], []>} : vector<32x256xbf16>, vector<256x1xbf16>, vector<32x1xf32> -> vector<32x1xf32>
    %cst_90 = arith.constant 3.906250e-03 : f32
    %218 = vector.broadcast %cst_90 : f32 to vector<32x1xf32>
    %219 = arith.mulf %217, %218 : vector<32x1xf32>
    %220 = vector.broadcast %219 : vector<32x1xf32> to vector<32x256xf32>
    %221 = arith.subf %215, %220 : vector<32x256xf32>
    %222 = arith.mulf %221, %221 : vector<32x256xf32>
    %223 = arith.truncf %222 : vector<32x256xf32> to vector<32x256xbf16>
    %cst_91 = arith.constant dense<0.000000e+00> : vector<32x1xf32>
    %224 = tpu.matmul %223, %23, %cst_91 {dimension_numbers = #tpu.dot_dimension_numbers<[1], [0], [0], [1], [0, 0, 1, 1], [], []>} : vector<32x256xbf16>, vector<256x1xbf16>, vector<32x1xf32> -> vector<32x1xf32>
    %cst_92 = arith.constant 3.906250e-03 : f32
    %225 = vector.broadcast %cst_92 : f32 to vector<32x1xf32>
    %226 = arith.mulf %224, %225 : vector<32x1xf32>
    %cst_93 = arith.constant 9.99999974E-6 : f32
    %227 = vector.broadcast %cst_93 : f32 to vector<32x1xf32>
    %228 = arith.addf %226, %227 : vector<32x1xf32>
    %229 = math.rsqrt %228 : vector<32x1xf32>
    %230 = vector.broadcast %229 : vector<32x1xf32> to vector<32x256xf32>
    %231 = arith.mulf %221, %230 : vector<32x256xf32>
    %232 = vector.broadcast %17 : vector<32x1xf32> to vector<32x256xf32>
    %233 = arith.mulf %231, %232 : vector<32x256xf32>
    %234 = vector.broadcast %18 : vector<32x1xf32> to vector<32x256xf32>
    %235 = arith.addf %233, %234 : vector<32x256xf32>
    %236 = arith.addf %235, %134 : vector<32x256xf32>
    %cst_94 = arith.constant 0.000000e+00 : f32
    %237 = vector.broadcast %cst_94 : f32 to vector<32x256xf32>
    %238 = arith.maximumf %236, %237 : vector<32x256xf32>
    %c1_95 = arith.constant 1 : index
    %c0_96 = arith.constant 0 : index
    %c0_97 = arith.constant 0 : index
    %239 = vector.load %arg8[%c1_95, %c0_96, %c0_97] : memref<2x32x256xf32, #tpu.memory_space<vmem>>, vector<1x32x256xf32>
    %240 = vector.shape_cast %239 : vector<1x32x256xf32> to vector<32x256xf32>
    %241 = vector.shape_cast %238 : vector<32x256xf32> to vector<1x32x256xf32>
    tpu.vector_store %arg8[%c1_95, %c0_96, %c0_97], %241 {strides = array<i32>} : memref<2x32x256xf32, #tpu.memory_space<vmem>>, vector<1x32x256xf32>,
    return
  }
  func.func @transform_0(%arg0: i32) -> (i32, i32, i32) {
    %c0_i32 = arith.constant 0 : i32
    %c0_i32_0 = arith.constant 0 : i32
    %c0_i32_1 = arith.constant 0 : i32
    return %arg0, %c0_i32, %c0_i32_0 : i32, i32, i32
  }
  func.func @transform_1(%arg0: i32) -> (i32, i32, i32) {
    %c0_i32 = arith.constant 0 : i32
    %c0_i32_0 = arith.constant 0 : i32
    %c0_i32_1 = arith.constant 0 : i32
    %c0_i32_2 = arith.constant 0 : i32
    return %c0_i32, %c0_i32_0, %c0_i32_1 : i32, i32, i32
  }
  func.func @transform_2(%arg0: i32) -> (i32, i32) {
    %c0_i32 = arith.constant 0 : i32
    %c0_i32_0 = arith.constant 0 : i32
    %c0_i32_1 = arith.constant 0 : i32
    return %c0_i32, %c0_i32_0 : i32, i32
  }
  func.func @transform_3(%arg0: i32) -> (i32, i32) {
    %c0_i32 = arith.constant 0 : i32
    %c0_i32_0 = arith.constant 0 : i32
    %c0_i32_1 = arith.constant 0 : i32
    return %c0_i32, %c0_i32_0 : i32, i32
  }
  func.func @transform_4(%arg0: i32) -> (i32, i32) {
    %c0_i32 = arith.constant 0 : i32
    %c0_i32_0 = arith.constant 0 : i32
    %c0_i32_1 = arith.constant 0 : i32
    return %c0_i32, %c0_i32_0 : i32, i32
  }
  func.func @transform_5(%arg0: i32) -> (i32, i32) {
    %c0_i32 = arith.constant 0 : i32
    %c0_i32_0 = arith.constant 0 : i32
    %c0_i32_1 = arith.constant 0 : i32
    return %c0_i32, %c0_i32_0 : i32, i32
  }
  func.func @transform_6(%arg0: i32) -> (i32, i32) {
    %c0_i32 = arith.constant 0 : i32
    %c0_i32_0 = arith.constant 0 : i32
    %c0_i32_1 = arith.constant 0 : i32
    return %c0_i32, %c0_i32_0 : i32, i32
  }
  func.func @transform_7(%arg0: i32) -> (i32, i32, i32) {
    %c0_i32 = arith.constant 0 : i32
    %c0_i32_0 = arith.constant 0 : i32
    %c0_i32_1 = arith.constant 0 : i32
    return %arg0, %c0_i32, %c0_i32_0 : i32, i32, i32
  }
}

</mosaic_0001>

<llo_original>
// kernel: tpu_custom_call.1
$region0: #{tpu_custom_call.1}
  #allocation0 [shape = 'u32[]', space=smem, size = 0x4, offset = 0x4, fixed_abs, tag = 'smem constant byte address 0x4 - core index']
  #allocation1 [shape = 'u32[144,128]{1,0:T(1,128)}', space=vmem, size = 0x12000, scoped, tag = 'internal scratch']
  %s0 = inlined_call_operand.hbm [shape: f32[8,32,256], index: 0, kind: input, shape index: {}]
  %s1 = inlined_call_operand.vmem [shape: bf16[5,32,32], index: 1, kind: input, shape index: {}]
  %s2 = inlined_call_operand.vmem [shape: f32[32,9], index: 2, kind: input, shape index: {}]
  %s3 = inlined_call_operand.vmem [shape: f32[32,32], index: 3, kind: input, shape index: {}]
  %s4 = inlined_call_operand.hbm [shape: f32[32,32], index: 4, kind: input, shape index: {}]
  %s5 = inlined_call_operand.vmem [shape: bf16[256,32], index: 5, kind: input, shape index: {}]
  %s6 = inlined_call_operand.vmem [shape: bf16[32,512], index: 6, kind: input, shape index: {}]
  %s7 = inlined_call_operand.hbm [shape: f32[8,32,256], index: 7, kind: output, shape index: {}]
  %s8 = sld [smem:[#allocation0]]
  $region69: #{tpu_custom_call.1} parent=0
    _
  %s10 = ssub.s32 1, %s8
  %s11 = scalar_select 0, %s10, %s8
  $region1: #{tpu_custom_call.1} parent=0
    #allocation2 [shape = 'u8[131072]{0}', space=vmem, size = 0x20000, scoped, tag = 'input window, operand 0']
    #allocation3 [shape = 's32[2]{0}', space=sflag, size = 0x8, scoped, tag = 'scoped memory for tpu_custom_call.1']
    #allocation4 [shape = 's32[2]{0}', space=sflag, size = 0x8, scoped, tag = 'scoped memory for tpu_custom_call.1']
    #allocation5 [shape = 'u8[16384]{0}', space=vmem, size = 0x4000, scoped, tag = 'input window, operand 4, single buffered']
    #allocation6 [shape = 's32[1]{0}', space=sflag, size = 0x4, scoped, tag = 'scoped memory for tpu_custom_call.1']
    #allocation7 [shape = 'u8[131072]{0}', space=vmem, size = 0x20000, scoped, tag = 'output window, operand 0']
    %12 = vsyncpa [#allocation3], 0
    %s13 = scalar_lea.sflag [#allocation3], 1
    %14 = vsyncpa %s13, 0
    %15 = vsyncpa [#allocation6], 0
    %16 = vsyncpa [#allocation4], 0
    %s17 = scalar_lea.sflag [#allocation4], 1
    %18 = vsyncpa %s17, 0
    loop: start=0, step=1, limit=6
    $region2: #{tpu_custom_call.1} parent=1 // loop_pre_header
      _
    $region3: #{tpu_custom_call.1} parent=1 // loop_header
      %s20 = sphi 0, %s24
      %p21 = scmp.ge.s32.totalorder %s20, 6
      %s30 = sphi 0, %s32
      %s33 = sphi 0, %s30
      %s34 = sphi 0, %s33
      %s50 = sphi 0, %s34
      %s54 = sphi 0, %s54
      %s56 = sphi 0, %s54
      %s57 = sphi 0, %s56
      %s71 = sphi 0, %s57
      %s75 = sphi 0, %s75
      %s77 = sphi 0, %s75
      %s78 = sphi 0, %s77
      %s92 = sphi 0, %s78
      %s96 = sphi 0, %s96
      %s98 = sphi 0, %s96
      %s99 = sphi 0, %s98
      %s113 = sphi 0, %s99
      %s117 = sphi 0, %s117
      %s119 = sphi 0, %s117
      %s120 = sphi 0, %s119
      %s134 = sphi 0, %s120
      %s138 = sphi 0, %s138
      %s140 = sphi 0, %s138
      %s141 = sphi 0, %s140
      %s155 = sphi 0, %s141
      %s159 = sphi 0, %s159
      %s161 = sphi 0, %s159
      %s162 = sphi 0, %s161
      %s176 = sphi 0, %s162
      %s182 = sphi 0, %s184
      %s185 = sphi 0, %s182
      %s186 = sphi 0, %s185
      %s202 = sphi 0, %s186
    $region4: #{tpu_custom_call.1} parent=1 // loop_header_branch
      %23 = sbr.rel (%p21) target = $region8
    $region5: #{tpu_custom_call.1} parent=1 // loop_body
      %s25 = ssub.s32 %s20, 1
      %s26 = ssub.s32 %s20, 2
      %s27 = sadd.s32 %s20, 1
      %s28 = ssub.s32 %s20, %s27
      %p29 = scmp.eq.s32.totalorder %s28, 0
      %s31 = sadd.s32 %s30, 1
      %s32 = scalar_select %p29, %s30, %s31
      %p35 = pneg %p29
      %p36 = scmp.eq.s32.totalorder %s20, 3
      %p37 = por %p35, %p36
      %p38 = scmp.ne.s32.totalorder %s30, %s33
      %p39 = scmp.eq.s32.totalorder %s20, 0
      %p40 = por %p38, %p39
      %p41 = scmp.ne.s32.totalorder %s30, %s33
      %p42 = scmp.eq.s32.totalorder %s25, 3
      %p43 = por %p41, %p42
      %p44 = scmp.ne.s32.totalorder %s33, %s34
      %p45 = scmp.eq.s32.totalorder %s25, 0
      %p46 = por %p44, %p45
      %p47 = scmp.ne.s32.totalorder %s33, %s34
      %p48 = scmp.eq.s32.totalorder %s26, 3
      %p49 = por %p47, %p48
      %p51 = scmp.ne.s32.totalorder %s34, %s50
      %p52 = scmp.eq.s32.totalorder %s26, 0
      %p53 = por %p51, %p52
      %s55 = sadd.s32 %s54, 1
      %p58 = scmp.eq.s32.totalorder %s20, 3
      %p59 = scmp.ne.s32.totalorder %s54, %s56
      %p60 = scmp.eq.s32.totalorder %s20, 0
      %p61 = por %p59, %p60
      %p62 = scmp.ne.s32.totalorder %s54, %s56
      %p63 = scmp.eq.s32.totalorder %s25, 3
      %p64 = por %p62, %p63
      %p65 = scmp.ne.s32.totalorder %s56, %s57
      %p66 = scmp.eq.s32.totalorder %s25, 0
      %p67 = por %p65, %p66
      %p68 = scmp.ne.s32.totalorder %s56, %s57
      %p69 = scmp.eq.s32.totalorder %s26, 3
      %p70 = por %p68, %p69
      %p72 = scmp.ne.s32.totalorder %s57, %s71
      %p73 = scmp.eq.s32.totalorder %s26, 0
      %p74 = por %p72, %p73
      %s76 = sadd.s32 %s75, 1
      %p79 = scmp.eq.s32.totalorder %s20, 3
      %p80 = scmp.ne.s32.totalorder %s75, %s77
      %p81 = scmp.eq.s32.totalorder %s20, 0
      %p82 = por %p80, %p81
      %p83 = scmp.ne.s32.totalorder %s75, %s77
      %p84 = scmp.eq.s32.totalorder %s25, 3
      %p85 = por %p83, %p84
      %p86 = scmp.ne.s32.totalorder %s77, %s78
      %p87 = scmp.eq.s32.totalorder %s25, 0
      %p88 = por %p86, %p87
      %p89 = scmp.ne.s32.totalorder %s77, %s78
      %p90 = scmp.eq.s32.totalorder %s26, 3
      %p91 = por %p89, %p90
      %p93 = scmp.ne.s32.totalorder %s78, %s92
      %p94 = scmp.eq.s32.totalorder %s26, 0
      %p95 = por %p93, %p94
      %s97 = sadd.s32 %s96, 1
      %p100 = scmp.eq.s32.totalorder %s20, 3
      %p101 = scmp.ne.s32.totalorder %s96, %s98
      %p102 = scmp.eq.s32.totalorder %s20, 0
      %p103 = por %p101, %p102
      %p104 = scmp.ne.s32.totalorder %s96, %s98
      %p105 = scmp.eq.s32.totalorder %s25, 3
      %p106 = por %p104, %p105
      %p107 = scmp.ne.s32.totalorder %s98, %s99
      %p108 = scmp.eq.s32.totalorder %s25, 0
      %p109 = por %p107, %p108
      %p110 = scmp.ne.s32.totalorder %s98, %s99
      %p111 = scmp.eq.s32.totalorder %s26, 3
      %p112 = por %p110, %p111
      %p114 = scmp.ne.s32.totalorder %s99, %s113
      %p115 = scmp.eq.s32.totalorder %s26, 0
      %p116 = por %p114, %p115
      %s118 = sadd.s32 %s117, 1
      %p121 = scmp.eq.s32.totalorder %s20, 3
      %p122 = scmp.ne.s32.totalorder %s117, %s119
      %p123 = scmp.eq.s32.totalorder %s20, 0
      %p124 = por %p122, %p123
      %p125 = scmp.ne.s32.totalorder %s117, %s119
      %p126 = scmp.eq.s32.totalorder %s25, 3
      %p127 = por %p125, %p126
      %p128 = scmp.ne.s32.totalorder %s119, %s120
      %p129 = scmp.eq.s32.totalorder %s25, 0
      %p130 = por %p128, %p129
      %p131 = scmp.ne.s32.totalorder %s119, %s120
      %p132 = scmp.eq.s32.totalorder %s26, 3
      %p133 = por %p131, %p132
      %p135 = scmp.ne.s32.totalorder %s120, %s134
      %p136 = scmp.eq.s32.totalorder %s26, 0
      %p137 = por %p135, %p136
      %s139 = sadd.s32 %s138, 1
      %p142 = scmp.eq.s32.totalorder %s20, 3
      %p143 = scmp.ne.s32.totalorder %s138, %s140
      %p144 = scmp.eq.s32.totalorder %s20, 0
      %p145 = por %p143, %p144
      %p146 = scmp.ne.s32.totalorder %s138, %s140
      %p147 = scmp.eq.s32.totalorder %s25, 3
      %p148 = por %p146, %p147
      %p149 = scmp.ne.s32.totalorder %s140, %s141
      %p150 = scmp.eq.s32.totalorder %s25, 0
      %p151 = por %p149, %p150
      %p152 = scmp.ne.s32.totalorder %s140, %s141
      %p153 = scmp.eq.s32.totalorder %s26, 3
      %p154 = por %p152, %p153
      %p156 = scmp.ne.s32.totalorder %s141, %s155
      %p157 = scmp.eq.s32.totalorder %s26, 0
      %p158 = por %p156, %p157
      %s160 = sadd.s32 %s159, 1
      %p163 = scmp.eq.s32.totalorder %s20, 3
      %p164 = scmp.ne.s32.totalorder %s159, %s161
      %p165 = scmp.eq.s32.totalorder %s20, 0
      %p166 = por %p164, %p165
      %p167 = scmp.ne.s32.totalorder %s159, %s161
      %p168 = scmp.eq.s32.totalorder %s25, 3
      %p169 = por %p167, %p168
      %p170 = scmp.ne.s32.totalorder %s161, %s162
      %p171 = scmp.eq.s32.totalorder %s25, 0
      %p172 = por %p170, %p171
      %p173 = scmp.ne.s32.totalorder %s161, %s162
      %p174 = scmp.eq.s32.totalorder %s26, 3
      %p175 = por %p173, %p174
      %p177 = scmp.ne.s32.totalorder %s162, %s176
      %p178 = scmp.eq.s32.totalorder %s26, 0
      %p179 = por %p177, %p178
      %s180 = ssub.s32 %s20, %s27
      %p181 = scmp.eq.s32.totalorder %s180, 0
      %s183 = sadd.s32 %s182, 1
      %s184 = scalar_select %p181, %s182, %s183
      %p187 = pneg %p181
      %p188 = scmp.eq.s32.totalorder %s20, 3
      %p189 = por %p187, %p188
      %p190 = scmp.ne.s32.totalorder %s182, %s185
      %p191 = scmp.eq.s32.totalorder %s20, 0
      %p192 = por %p190, %p191
      %p193 = scmp.ne.s32.totalorder %s182, %s185
      %p194 = scmp.eq.s32.totalorder %s25, 3
      %p195 = por %p193, %p194
      %p196 = scmp.ne.s32.totalorder %s185, %s186
      %p197 = scmp.eq.s32.totalorder %s25, 0
      %p198 = por %p196, %p197
      %p199 = scmp.ne.s32.totalorder %s185, %s186
      %p200 = scmp.eq.s32.totalorder %s26, 3
      %p201 = por %p199, %p200
      %p203 = scmp.ne.s32.totalorder %s186, %s202
      %p204 = scmp.eq.s32.totalorder %s26, 0
      %p205 = por %p203, %p204
      %p206 = scmp.le.s32.totalorder 1, %s20
      %p207 = scmp.lt.s32.totalorder %s20, 5
      %p208 = pnand %p206, %p207
      %p209 = pneg %p208
      // Predicated region
      $region9: #{tpu_custom_call.1} parent=5 // pred_check
        _
      $region10: #{tpu_custom_call.1} parent=5 // pred_check_branch
        %211 = sbr.rel (%p208) target = $region12
      $region11: #{tpu_custom_call.1} parent=5 // pred_region
        %s212 = ssub.s32 %s20, 1
        // Predicated region
        $region13: #{tpu_custom_call.1} parent=11 // pred_check
          %p213 = pneg %p67
        $region14: #{tpu_custom_call.1} parent=11 // pred_check_branch
          %215 = sbr.rel (%p213) target = $region16
        $region15: #{tpu_custom_call.1} parent=11 // pred_region
          _
        $region16: #{tpu_custom_call.1} parent=11 // pred_fallthru
          _
        // Predicated region
        $region17: #{tpu_custom_call.1} parent=11 // pred_check
          %p216 = pneg %p88
        $region18: #{tpu_custom_call.1} parent=11 // pred_check_branch
          %218 = sbr.rel (%p216) target = $region20
        $region19: #{tpu_custom_call.1} parent=11 // pred_region
          _
        $region20: #{tpu_custom_call.1} parent=11 // pred_fallthru
          _
        // Predicated region
        $region21: #{tpu_custom_call.1} parent=11 // pred_check
          %p219 = pneg %p109
        $region22: #{tpu_custom_call.1} parent=11 // pred_check_branch
          %221 = sbr.rel (%p219) target = $region24
        $region23: #{tpu_custom_call.1} parent=11 // pred_region
          _
        $region24: #{tpu_custom_call.1} parent=11 // pred_fallthru
          _
        // Predicated region
        $region25: #{tpu_custom_call.1} parent=11 // pred_check
          %p222 = pneg %p130
        $region26: #{tpu_custom_call.1} parent=11 // pred_check_branch
          %224 = sbr.rel (%p222) target = $region28
        $region27: #{tpu_custom_call.1} parent=11 // pred_region
          %s226 = ssub.s32 512, 512
          %227 = vsyncadd [#allocation6], %s226
          %s228 = sshll.u32 [#allocation5], 4
          %s229 = int_to_ptr.vmem [resolvable:$true] %s228
          %234 = dma.hbm_to_vmem [thread:$0]  %s4, 512, %s229, [#allocation6], 128, 128, 8
        $region28: #{tpu_custom_call.1} parent=11 // pred_fallthru
          _
        // Predicated region
        $region29: #{tpu_custom_call.1} parent=11 // pred_check
          %p235 = pneg %p151
        $region30: #{tpu_custom_call.1} parent=11 // pred_check_branch
          %237 = sbr.rel (%p235) target = $region32
        $region31: #{tpu_custom_call.1} parent=11 // pred_region
          _
        $region32: #{tpu_custom_call.1} parent=11 // pred_fallthru
          _
        // Predicated region
        $region33: #{tpu_custom_call.1} parent=11 // pred_check
          %p238 = pneg %p172
        $region34: #{tpu_custom_call.1} parent=11 // pred_check_branch
          %240 = sbr.rel (%p238) target = $region36
        $region35: #{tpu_custom_call.1} parent=11 // pred_region
          _
        $region36: #{tpu_custom_call.1} parent=11 // pred_fallthru
          _
      $region12: #{tpu_custom_call.1} parent=5 // pred_fallthru
        _
      %p241 = scmp.lt.s32.totalorder %s20, 4
      // Predicated region
      $region37: #{tpu_custom_call.1} parent=5 // pred_check
        %p242 = pneg %p241
      $region38: #{tpu_custom_call.1} parent=5 // pred_check_branch
        %244 = sbr.rel (%p242) target = $region40
      $region39: #{tpu_custom_call.1} parent=5 // pred_region
        // Predicated region
        $region41: #{tpu_custom_call.1} parent=39 // pred_check
          %p245 = pneg %p40
        $region42: #{tpu_custom_call.1} parent=39 // pred_check_branch
          %247 = sbr.rel (%p245) target = $region44
        $region43: #{tpu_custom_call.1} parent=39 // pred_region
          %s248 = sand.u32 %s30, 1
          %s249 = scalar_lea.sflag [#allocation3], %s248
          %s250 = sand.u32 %s30, 1
          %s251 = smul.addr %s250, 128
          %s252 = scalar_lea.vmem [#allocation2], %s251
          %s253 = smul.u32 2, %s20
          %s255 = ssub.s32 2048, 2048
          %256 = vsyncadd %s249, %s255
          %s257 = smul.addr %s253, 8
          %s258 = smul.addr %s257, 128
          %s259 = scalar_lea.hbm %s0, %s258
          %s260 = sshll.u32 %s252, 4
          %s261 = int_to_ptr.vmem [resolvable:$true] %s260
          %266 = dma.hbm_to_vmem [thread:$0]  %s259, 2048, %s261, %s249, 256, 256, 16
        $region44: #{tpu_custom_call.1} parent=39 // pred_fallthru
          _
      $region40: #{tpu_custom_call.1} parent=5 // pred_fallthru
        _
      %p267 = scmp.le.s32.totalorder 1, %s20
      %p268 = scmp.lt.s32.totalorder %s20, 5
      %p269 = pnand %p267, %p268
      %p270 = pneg %p269
      // Predicated region
      $region45: #{tpu_custom_call.1} parent=5 // pred_check
        _
      $region46: #{tpu_custom_call.1} parent=5 // pred_check_branch
        %272 = sbr.rel (%p269) target = $region48
      $region47: #{tpu_custom_call.1} parent=5 // pred_region
        %s273 = ssub.s32 %s20, 1
        %s274 = sand.u32 %s33, 1
        %s275 = scalar_lea.sflag [#allocation3], %s274
        %s276 = sand.u32 %s33, 1
        %s277 = smul.addr %s276, 128
        %s278 = scalar_lea.vmem [#allocation2], %s277
        // Predicated region
        $region49: #{tpu_custom_call.1} parent=47 // pred_check
          %p279 = pneg %p46
        $region50: #{tpu_custom_call.1} parent=47 // pred_check_branch
          %281 = sbr.rel (%p279) target = $region52
        $region51: #{tpu_custom_call.1} parent=47 // pred_region
          %282 = dma.done %s275, 2048
        $region52: #{tpu_custom_call.1} parent=47 // pred_fallthru
          _
        // Predicated region
        $region53: #{tpu_custom_call.1} parent=47 // pred_check
          %p283 = pneg %p130
        $region54: #{tpu_custom_call.1} parent=47 // pred_check_branch
          %285 = sbr.rel (%p283) target = $region56
        $region55: #{tpu_custom_call.1} parent=47 // pred_region
          %286 = dma.done [#allocation6], 512
        $region56: #{tpu_custom_call.1} parent=47 // pred_fallthru
          _
        %s287 = sand.u32 %s33, 1
        %s288 = scalar_lea.sflag [#allocation3], %s287
        %s289 = sand.u32 %s33, 1
        %s290 = smul.addr %s289, 128
        %s291 = scalar_lea.vmem [#allocation2], %s290
        %p292 = pneg %p46
        %p293 = pneg %p43
        %p294 = pneg %p67
        %p295 = pneg %p64
        %p296 = pneg %p88
        %p297 = pneg %p85
        %p298 = pneg %p109
        %p299 = pneg %p106
        %p300 = pneg %p130
        %p301 = pneg %p127
        %p302 = pneg %p151
        %p303 = pneg %p148
        %p304 = pneg %p172
        %p305 = pneg %p169
        %p306 = pneg %p198
        %p307 = pneg %p195
        %s308 = sand.u32 %s185, 1
        %s309 = scalar_lea.sflag [#allocation4], %s308
        %s310 = sand.u32 %s185, 1
        %s311 = smul.addr %s310, 128
        %s312 = scalar_lea.vmem [#allocation7], %s311
        %s313 = smul.u32 2, %s25
        %s314 = smul.u32 2, %s25
        %v317 = vld [vmem:[%s1] sm:$0xf]
        %v318 = vld [vmem:[%s1 + $0x4] sm:$0xf]
        %v319 = vld [vmem:[%s1 + $0x8] sm:$0xf]
        %v320 = vld [vmem:[%s1 + $0xc] sm:$0xf]
        %s321 = scalar_lea.vmem %s1, 16
        %v322 = vld [vmem:[%s321] sm:$0xf]
        %v323 = vld [vmem:[%s321 + $0x4] sm:$0xf]
        %v324 = vld [vmem:[%s321 + $0x8] sm:$0xf]
        %v325 = vld [vmem:[%s321 + $0xc] sm:$0xf]
        %s326 = scalar_lea.vmem %s1, 32
        %v327 = vld [vmem:[%s326] sm:$0xf]
        %v328 = vld [vmem:[%s326 + $0x4] sm:$0xf]
        %v329 = vld [vmem:[%s326 + $0x8] sm:$0xf]
        %v330 = vld [vmem:[%s326 + $0xc] sm:$0xf]
        %s331 = scalar_lea.vmem %s1, 48
        %v332 = vld [vmem:[%s331] sm:$0xf]
        %v333 = vld [vmem:[%s331 + $0x4] sm:$0xf]
        %v334 = vld [vmem:[%s331 + $0x8] sm:$0xf]
        %v335 = vld [vmem:[%s331 + $0xc] sm:$0xf]
        %s336 = scalar_lea.vmem %s1, 64
        %v337 = vld [vmem:[%s336] sm:$0xf]
        %v338 = vld [vmem:[%s336 + $0x4] sm:$0xf]
        %v339 = vld [vmem:[%s336 + $0x8] sm:$0xf]
        %v340 = vld [vmem:[%s336 + $0xc] sm:$0xf]
        %v341 = vld [vmem:[%s2] sm:$0xff]
        %v342 = vld [vmem:[%s2 + $0x8] sm:$0xff]
        %v343 = vld [vmem:[%s2 + $0x10] sm:$0xff]
        %v344 = vld [vmem:[%s2 + $0x18] sm:$0xff]
        %v345 = vld [vmem:[%s3] sm:$0xff]
        %v346 = vld [vmem:[%s3 + $0x8] sm:$0xff]
        %v347 = vld [vmem:[%s3 + $0x10] sm:$0xff]
        %v348 = vld [vmem:[%s3 + $0x18] sm:$0xff]
        %v349 = vld [vmem:[#allocation5] sm:$0xff]
        %v350 = vld [vmem:[#allocation5 + $0x8] sm:$0xff]
        %v351 = vld [vmem:[#allocation5 + $0x10] sm:$0xff]
        %v352 = vld [vmem:[#allocation5 + $0x18] sm:$0xff]
        %v353 = vld [vmem:[%s5] sm:$0xf]
        %v354 = vld [vmem:[%s5 + $0x4] sm:$0xf]
        %v355 = vld [vmem:[%s5 + $0x8] sm:$0xf]
        %v356 = vld [vmem:[%s5 + $0xc] sm:$0xf]
        %v357 = vld [vmem:[%s5 + $0x10] sm:$0xf]
        %v358 = vld [vmem:[%s5 + $0x14] sm:$0xf]
        %v359 = vld [vmem:[%s5 + $0x18] sm:$0xf]
        %v360 = vld [vmem:[%s5 + $0x1c] sm:$0xf]
        %v361 = vld [vmem:[%s5 + $0x20] sm:$0xf]
        %v362 = vld [vmem:[%s5 + $0x24] sm:$0xf]
        %v363 = vld [vmem:[%s5 + $0x28] sm:$0xf]
        %v364 = vld [vmem:[%s5 + $0x2c] sm:$0xf]
        %v365 = vld [vmem:[%s5 + $0x30] sm:$0xf]
        %v366 = vld [vmem:[%s5 + $0x34] sm:$0xf]
        %v367 = vld [vmem:[%s5 + $0x38] sm:$0xf]
        %v368 = vld [vmem:[%s5 + $0x3c] sm:$0xf]
        %v369 = vld [vmem:[%s5 + $0x40] sm:$0xf]
        %v370 = vld [vmem:[%s5 + $0x44] sm:$0xf]
        %v371 = vld [vmem:[%s5 + $0x48] sm:$0xf]
        %v372 = vld [vmem:[%s5 + $0x4c] sm:$0xf]
        %v373 = vld [vmem:[%s5 + $0x50] sm:$0xf]
        %v374 = vld [vmem:[%s5 + $0x54] sm:$0xf]
        %v375 = vld [vmem:[%s5 + $0x58] sm:$0xf]
        %v376 = vld [vmem:[%s5 + $0x5c] sm:$0xf]
        %v377 = vld [vmem:[%s5 + $0x60] sm:$0xf]
        %v378 = vld [vmem:[%s5 + $0x64] sm:$0xf]
        %v379 = vld [vmem:[%s5 + $0x68] sm:$0xf]
        %v380 = vld [vmem:[%s5 + $0x6c] sm:$0xf]
        %v381 = vld [vmem:[%s5 + $0x70] sm:$0xf]
        %v382 = vld [vmem:[%s5 + $0x74] sm:$0xf]
        %v383 = vld [vmem:[%s5 + $0x78] sm:$0xf]
        %v384 = vld [vmem:[%s5 + $0x7c] sm:$0xf]
        %v385 = vld [vmem:[%s6] sm:$0xff]
        %v386 = vld [vmem:[%s6 + $0x8] sm:$0xff]
        %v387 = vld [vmem:[%s6 + $0x10] sm:$0xff]
        %v388 = vld [vmem:[%s6 + $0x18] sm:$0xff]
        %v389 = vld [vmem:[%s6 + $0x20] sm:$0xff]
        %v390 = vld [vmem:[%s6 + $0x28] sm:$0xff]
        %v391 = vld [vmem:[%s6 + $0x30] sm:$0xff]
        %v392 = vld [vmem:[%s6 + $0x38] sm:$0xff]
        %v393 = vld [vmem:[%s278] sm:$0xff]
        %v394 = vld [vmem:[%s278 + $0x8] sm:$0xff]
        %v395 = vld [vmem:[%s278 + $0x10] sm:$0xff]
        %v396 = vld [vmem:[%s278 + $0x18] sm:$0xff]
        %v397 = vld [vmem:[%s278 + $0x20] sm:$0xff]
        %v398 = vld [vmem:[%s278 + $0x28] sm:$0xff]
        %v399 = vld [vmem:[%s278 + $0x30] sm:$0xff]
        %v400 = vld [vmem:[%s278 + $0x38] sm:$0xff]
        %v401 = vpack.c.bf16 %v395, %v393
        %v402 = vpack.c.bf16 %v396, %v394
        %v403 = vpack.c.bf16 %v399, %v397
        %v404 = vpack.c.bf16 %v400, %v398
        %v437 = vunpack.c.l.b16 %v353
        %v438 = vunpack.c.l.b16 %v354
        %v439 = vunpack.c.l.b16 %v355
        %v440 = vunpack.c.l.b16 %v356
        %v441 = vunpack.c.l.b16 %v357
        %v442 = vunpack.c.l.b16 %v358
        %v443 = vunpack.c.l.b16 %v359
        %v444 = vunpack.c.l.b16 %v360
        %v445 = vunpack.c.l.b16 %v361
        %v446 = vunpack.c.l.b16 %v362
        %v447 = vunpack.c.l.b16 %v363
        %v448 = vunpack.c.l.b16 %v364
        %v449 = vunpack.c.l.b16 %v365
        %v450 = vunpack.c.l.b16 %v366
        %v451 = vunpack.c.l.b16 %v367
        %v452 = vunpack.c.l.b16 %v368
        %v453 = vunpack.c.l.b16 %v369
        %v454 = vunpack.c.l.b16 %v370
        %v455 = vunpack.c.l.b16 %v371
        %v456 = vunpack.c.l.b16 %v372
        %v457 = vunpack.c.l.b16 %v373
        %v458 = vunpack.c.l.b16 %v374
        %v459 = vunpack.c.l.b16 %v375
        %v460 = vunpack.c.l.b16 %v376
        %v461 = vunpack.c.l.b16 %v377
        %v462 = vunpack.c.l.b16 %v378
        %v463 = vunpack.c.l.b16 %v379
        %v464 = vunpack.c.l.b16 %v380
        %v465 = vunpack.c.l.b16 %v381
        %v466 = vunpack.c.l.b16 %v382
        %v467 = vunpack.c.l.b16 %v383
        %v468 = vunpack.c.l.b16 %v384
        %v469 = vpack.c.b16 %v438, %v437
        %v470 = vpack.c.b16 %v440, %v439
        %v471 = vpack.c.b16 %v442, %v441
        %v472 = vpack.c.b16 %v444, %v443
        %v473 = vpack.c.b16 %v446, %v445
        %v474 = vpack.c.b16 %v448, %v447
        %v475 = vpack.c.b16 %v450, %v449
        %v476 = vpack.c.b16 %v452, %v451
        %v477 = vpack.c.b16 %v454, %v453
        %v478 = vpack.c.b16 %v456, %v455
        %v479 = vpack.c.b16 %v458, %v457
        %v480 = vpack.c.b16 %v460, %v459
        %v481 = vpack.c.b16 %v462, %v461
        %v482 = vpack.c.b16 %v464, %v463
        %v483 = vpack.c.b16 %v466, %v465
        %v484 = vpack.c.b16 %v468, %v467
        %501 = vmatprep.subr.bf16.mxu0 0
        %502 = vmatpush1.bf16.msra.mxu0 %v469
        %503 = vmatprep.subr.bf16.mxu0 0
        %504 = vmatpush1.bf16.msra.mxu0 %v470
        %505 = vmatprep.subr.bf16.mxu0 0
        %506 = vmatpush1.bf16.msra.mxu0 %v471
        %507 = vmatprep.subr.bf16.mxu0 0
        %508 = vmatpush1.bf16.msra.mxu0 %v472
        %509 = vmatprep.subr.bf16.mxu0 0
        %510 = vmatpush1.bf16.msra.mxu0 %v473
        %511 = vmatprep.subr.bf16.mxu0 0
        %512 = vmatpush1.bf16.msra.mxu0 %v474
        %513 = vmatprep.subr.bf16.mxu0 0
        %514 = vmatpush1.bf16.msra.mxu0 %v475
        %515 = vmatprep.subr.bf16.mxu0 0
        %516 = vmatpush1.bf16.msra.mxu0 %v476
        %517 = vmatprep.subr.bf16.mxu0 0
        %518 = vmatpush1.bf16.msra.mxu0 %v477
        %519 = vmatprep.subr.bf16.mxu0 0
        %520 = vmatpush1.bf16.msra.mxu0 %v478
        %521 = vmatprep.subr.bf16.mxu0 0
        %522 = vmatpush1.bf16.msra.mxu0 %v479
        %523 = vmatprep.subr.bf16.mxu0 0
        %524 = vmatpush1.bf16.msra.mxu0 %v480
        %525 = vmatprep.subr.bf16.mxu0 0
        %526 = vmatpush1.bf16.msra.mxu0 %v481
        %527 = vmatprep.subr.bf16.mxu0 0
        %528 = vmatpush1.bf16.msra.mxu0 %v482
        %529 = vmatprep.subr.bf16.mxu0 0
        %530 = vmatpush1.bf16.msra.mxu0 %v483
        %531 = vmatprep.subr.bf16.mxu0 0
        %532 = vmatpush1.bf16.msra.mxu0 %v484
        %533 = vmatprep.mubr.bf16.mxu0 %v402
        %534 = vmatmul.mubr.bf16.gmra.mrb[0].mxu0 %v401
        %v535 = vpop.f32.mrb[0].mxu0
        %v536 = vadd.f32 0.0, %v535
        %v537 = vpop.f32.mrb[0].mxu0
        %v538 = vpop.f32.mrb[0].mxu0
        %v539 = vadd.f32 0.0, %v538
        %v540 = vpop.f32.mrb[0].mxu0
        %541 = vmatprep.mubr.bf16.mxu0 %v404
        %542 = vmatmul.mubr.bf16.gmra.mrb[0].mxu0 %v403
        %v543 = vpop.f32.mrb[0].mxu0
        %v544 = vadd.f32 0.0, %v543
        %v545 = vpop.f32.mrb[0].mxu0
        %v546 = vpop.f32.mrb[0].mxu0
        %v547 = vadd.f32 0.0, %v546
        %v548 = vpop.f32.mrb[0].mxu0
        %549 = vdwg.mxu0
        %v550 = vpack.c.bf16 %v539, %v536
        %v551 = vpack.c.bf16 %v547, %v544
        %553 = vset.pattern.permute.xlu0 0
        %554 = vperm.xlu0 %553, %v341
        %v555 = vpop.permute.xlu0 %554
        %558 = vset.pattern.permute.xlu0 0
        %559 = vperm.xlu0 %558, %v342
        %v560 = vpop.permute.xlu0 %559
        %563 = vset.pattern.permute.xlu0 0
        %564 = vperm.xlu0 %563, %v343
        %v565 = vpop.permute.xlu0 %564
        %568 = vset.pattern.permute.xlu0 0
        %569 = vperm.xlu0 %568, %v344
        %v570 = vpop.permute.xlu0 %569
        %v576 = vunpack.c.l.b16 %v317
        %v577 = vunpack.c.l.b16 %v318
        %v578 = vunpack.c.l.b16 %v319
        %v579 = vunpack.c.l.b16 %v320
        %v580 = vpack.c.b16 %v577, %v576
        %v581 = vpack.c.b16 %v579, %v578
        %vm582 = vcmask 261120
        %v584 = vsel %vm582, %v580, 0
        %v587 = vsel %vm582, %v581, 0
        %589 = vmatprep.subr.bf16.mxu0 0
        %590 = vmatpush1.bf16.msra.mxu0 %v550
        %591 = vmatprep.subr.bf16.mxu0 0
        %592 = vmatpush1.bf16.msra.mxu0 %v551
        %593 = vmatprep.subr.bf16.mxu0 0
        %594 = vmatpush1.bf16.msra.mxu0 0
        %595 = vmatprep.subr.bf16.mxu0 0
        %596 = vmatpush1.bf16.msra.mxu0 0
        %597 = vmatprep.subr.bf16.mxu0 0
        %598 = vmatpush1.bf16.msra.mxu0 0
        %599 = vmatprep.subr.bf16.mxu0 0
        %600 = vmatpush1.bf16.msra.mxu0 0
        %601 = vmatprep.subr.bf16.mxu0 0
        %602 = vmatpush1.bf16.msra.mxu0 0
        %603 = vmatprep.subr.bf16.mxu0 0
        %604 = vmatpush1.bf16.msra.mxu0 0
        %605 = vmatprep.subr.bf16.mxu0 0
        %606 = vmatpush1.bf16.msra.mxu0 0
        %607 = vmatprep.subr.bf16.mxu0 0
        %608 = vmatpush1.bf16.msra.mxu0 0
        %609 = vmatprep.subr.bf16.mxu0 0
        %610 = vmatpush1.bf16.msra.mxu0 0
        %611 = vmatprep.subr.bf16.mxu0 0
        %612 = vmatpush1.bf16.msra.mxu0 0
        %613 = vmatprep.subr.bf16.mxu0 0
        %614 = vmatpush1.bf16.msra.mxu0 0
        %615 = vmatprep.subr.bf16.mxu0 0
        %616 = vmatpush1.bf16.msra.mxu0 0
        %617 = vmatprep.subr.bf16.mxu0 0
        %618 = vmatpush1.bf16.msra.mxu0 0
        %619 = vmatprep.subr.bf16.mxu0 0
        %620 = vmatpush1.bf16.msra.mxu0 0
        %621 = vmatprep.mubr.bf16.mxu0 0
        %622 = vmatmul.mubr.bf16.gmra.mrb[0].mxu0 %v584
        %v623 = vpop.f32.mrb[0].mxu0
        %v624 = vadd.f32 %v555, %v623
        %v625 = vpop.f32.mrb[0].mxu0
        %v626 = vpop.f32.mrb[0].mxu0
        %v627 = vadd.f32 %v560, %v626
        %v628 = vpop.f32.mrb[0].mxu0
        %629 = vmatprep.mubr.bf16.mxu0 0
        %630 = vmatmul.mubr.bf16.gmra.mrb[0].mxu0 %v587
        %v631 = vpop.f32.mrb[0].mxu0
        %v632 = vadd.f32 %v565, %v631
        %v633 = vpop.f32.mrb[0].mxu0
        %v634 = vpop.f32.mrb[0].mxu0
        %v635 = vadd.f32 %v570, %v634
        %v636 = vpop.f32.mrb[0].mxu0
        %637 = vdwg.mxu0
        %v638 = vmax.f32 %v624, 0.0
        %v639 = vmax.f32 %v627, 0.0
        %v640 = vmax.f32 %v632, 0.0
        %v641 = vmax.f32 %v635, 0.0
        %v642 = vmul.f32 %v638, %v345
        %v643 = vmul.f32 %v639, %v346
        %v644 = vmul.f32 %v640, %v347
        %v645 = vmul.f32 %v641, %v348
        %v646 = vpack.c.bf16 %v643, %v642
        %v647 = vpack.c.bf16 %v645, %v644
        %v652 = vunpack.c.l.b16 %v322
        %v653 = vunpack.c.l.b16 %v323
        %v654 = vunpack.c.l.b16 %v324
        %v655 = vunpack.c.l.b16 %v325
        %v656 = vpack.c.b16 %v653, %v652
        %v657 = vpack.c.b16 %v655, %v654
        %v659 = vsel %vm582, %v656, 0
        %v662 = vsel %vm582, %v657, 0
        %664 = vmatprep.subr.bf16.mxu0 0
        %665 = vmatpush1.bf16.msra.mxu0 %v646
        %666 = vmatprep.subr.bf16.mxu0 0
        %667 = vmatpush1.bf16.msra.mxu0 %v647
        %668 = vmatprep.subr.bf16.mxu0 0
        %669 = vmatpush1.bf16.msra.mxu0 0
        %670 = vmatprep.subr.bf16.mxu0 0
        %671 = vmatpush1.bf16.msra.mxu0 0
        %672 = vmatprep.subr.bf16.mxu0 0
        %673 = vmatpush1.bf16.msra.mxu0 0
        %674 = vmatprep.subr.bf16.mxu0 0
        %675 = vmatpush1.bf16.msra.mxu0 0
        %676 = vmatprep.subr.bf16.mxu0 0
        %677 = vmatpush1.bf16.msra.mxu0 0
        %678 = vmatprep.subr.bf16.mxu0 0
        %679 = vmatpush1.bf16.msra.mxu0 0
        %680 = vmatprep.subr.bf16.mxu0 0
        %681 = vmatpush1.bf16.msra.mxu0 0
        %682 = vmatprep.subr.bf16.mxu0 0
        %683 = vmatpush1.bf16.msra.mxu0 0
        %684 = vmatprep.subr.bf16.mxu0 0
        %685 = vmatpush1.bf16.msra.mxu0 0
        %686 = vmatprep.subr.bf16.mxu0 0
        %687 = vmatpush1.bf16.msra.mxu0 0
        %688 = vmatprep.subr.bf16.mxu0 0
        %689 = vmatpush1.bf16.msra.mxu0 0
        %690 = vmatprep.subr.bf16.mxu0 0
        %691 = vmatpush1.bf16.msra.mxu0 0
        %692 = vmatprep.subr.bf16.mxu0 0
        %693 = vmatpush1.bf16.msra.mxu0 0
        %694 = vmatprep.subr.bf16.mxu0 0
        %695 = vmatpush1.bf16.msra.mxu0 0
        %696 = vmatprep.mubr.bf16.mxu0 0
        %697 = vmatmul.mubr.bf16.gmra.mrb[0].mxu0 %v659
        %v698 = vpop.f32.mrb[0].mxu0
        %v699 = vadd.f32 %v349, %v698
        %v700 = vpop.f32.mrb[0].mxu0
        %v701 = vpop.f32.mrb[0].mxu0
        %v702 = vadd.f32 %v350, %v701
        %v703 = vpop.f32.mrb[0].mxu0
        %704 = vmatprep.mubr.bf16.mxu0 0
        %705 = vmatmul.mubr.bf16.gmra.mrb[0].mxu0 %v662
        %v706 = vpop.f32.mrb[0].mxu0
        %v707 = vadd.f32 %v351, %v706
        %v708 = vpop.f32.mrb[0].mxu0
        %v709 = vpop.f32.mrb[0].mxu0
        %v710 = vadd.f32 %v352, %v709
        %v711 = vpop.f32.mrb[0].mxu0
        %712 = vdwg.mxu0
        %v713 = vxor.u32 %v699, 2147483648
        %v714 = vxor.u32 %v702, 2147483648
        %v715 = vxor.u32 %v707, 2147483648
        %v716 = vxor.u32 %v710, 2147483648
        %v717 = vmul.f32 %v713, 1.442695
        %v718 = vpow.pop %v717
        %v719 = vmul.f32 %v714, 1.442695
        %v720 = vpow.pop %v719
        %v721 = vmul.f32 %v715, 1.442695
        %v722 = vpow.pop %v721
        %v723 = vmul.f32 %v716, 1.442695
        %v724 = vpow.pop %v723
        %v725 = vadd.f32 %v718, 1.0
        %v726 = vadd.f32 %v720, 1.0
        %v727 = vadd.f32 %v722, 1.0
        %v728 = vadd.f32 %v724, 1.0
        %v729 = vrcp.pop %v725
        %v730 = vmul.f32 1.0, %v729
        %v731 = vrcp.pop %v726
        %v732 = vmul.f32 1.0, %v731
        %v733 = vrcp.pop %v727
        %v734 = vmul.f32 1.0, %v733
        %v735 = vrcp.pop %v728
        %v736 = vmul.f32 1.0, %v735
        %v737 = vpack.c.bf16 %v732, %v730
        %v738 = vpack.c.bf16 %v736, %v734
        %v747 = vunpack.c.l.b16 %v385
        %v748 = vunpack.c.h.b16 %v385
        %v749 = vunpack.c.l.b16 %v386
        %v750 = vunpack.c.h.b16 %v386
        %v751 = vunpack.c.l.b16 %v387
        %v752 = vunpack.c.h.b16 %v387
        %v753 = vunpack.c.l.b16 %v388
        %v754 = vunpack.c.h.b16 %v388
        %v755 = vunpack.c.l.b16 %v389
        %v756 = vunpack.c.h.b16 %v389
        %v757 = vunpack.c.l.b16 %v390
        %v758 = vunpack.c.h.b16 %v390
        %v759 = vunpack.c.l.b16 %v391
        %v760 = vunpack.c.h.b16 %v391
        %v761 = vunpack.c.l.b16 %v392
        %v762 = vunpack.c.h.b16 %v392
        %v763 = vpack.c.b16 %v751, %v747
        %v764 = vpack.c.b16 %v752, %v748
        %v765 = vpack.c.b16 %v753, %v749
        %v766 = vpack.c.b16 %v754, %v750
        %v767 = vpack.c.b16 %v759, %v755
        %v768 = vpack.c.b16 %v760, %v756
        %v769 = vpack.c.b16 %v761, %v757
        %v770 = vpack.c.b16 %v762, %v758
        %v780 = vsel %vm582, %v737, 0
        %v783 = vsel %vm582, %v738, 0
        %785 = vmatprep.subr.bf16.mxu0 %v764
        %786 = vmatpush1.bf16.msra.mxu0 %v763
        %787 = vmatprep.subr.bf16.mxu0 %v768
        %788 = vmatpush1.bf16.msra.mxu0 %v767
        %789 = vmatprep.subr.bf16.mxu0 0
        %790 = vmatpush1.bf16.msra.mxu0 0
        %791 = vmatprep.subr.bf16.mxu0 0
        %792 = vmatpush1.bf16.msra.mxu0 0
        %793 = vmatprep.subr.bf16.mxu0 0
        %794 = vmatpush1.bf16.msra.mxu0 0
        %795 = vmatprep.subr.bf16.mxu0 0
        %796 = vmatpush1.bf16.msra.mxu0 0
        %797 = vmatprep.subr.bf16.mxu0 0
        %798 = vmatpush1.bf16.msra.mxu0 0
        %799 = vmatprep.subr.bf16.mxu0 0
        %800 = vmatpush1.bf16.msra.mxu0 0
        %801 = vmatprep.subr.bf16.mxu0 0
        %802 = vmatpush1.bf16.msra.mxu0 0
        %803 = vmatprep.subr.bf16.mxu0 0
        %804 = vmatpush1.bf16.msra.mxu0 0
        %805 = vmatprep.subr.bf16.mxu0 0
        %806 = vmatpush1.bf16.msra.mxu0 0
        %807 = vmatprep.subr.bf16.mxu0 0
        %808 = vmatpush1.bf16.msra.mxu0 0
        %809 = vmatprep.subr.bf16.mxu0 0
        %810 = vmatpush1.bf16.msra.mxu0 0
        %811 = vmatprep.subr.bf16.mxu0 0
        %812 = vmatpush1.bf16.msra.mxu0 0
        %813 = vmatprep.subr.bf16.mxu0 0
        %814 = vmatpush1.bf16.msra.mxu0 0
        %815 = vmatprep.subr.bf16.mxu0 0
        %816 = vmatpush1.bf16.msra.mxu0 0
        %817 = vmatprep.mubr.bf16.mxu0 0
        %818 = vmatmul.mubr.bf16.gmra.mrb[0].mxu0 %v780
        %v819 = vpop.f32.mrb[0].mxu0
        %v820 = vadd.f32 0.0, %v819
        %v821 = vpop.f32.mrb[0].mxu0
        %v822 = vadd.f32 0.0, %v821
        %v823 = vpop.f32.mrb[0].mxu0
        %v824 = vadd.f32 0.0, %v823
        %v825 = vpop.f32.mrb[0].mxu0
        %v826 = vadd.f32 0.0, %v825
        %827 = vmatprep.mubr.bf16.mxu0 0
        %828 = vmatmul.mubr.bf16.gmra.mrb[0].mxu0 %v783
        %v829 = vpop.f32.mrb[0].mxu0
        %v830 = vadd.f32 0.0, %v829
        %v831 = vpop.f32.mrb[0].mxu0
        %v832 = vadd.f32 0.0, %v831
        %v833 = vpop.f32.mrb[0].mxu0
        %v834 = vadd.f32 0.0, %v833
        %v835 = vpop.f32.mrb[0].mxu0
        %v836 = vadd.f32 0.0, %v835
        %837 = vdwg.mxu0
        %838 = vmatprep.subr.bf16.mxu0 %v766
        %839 = vmatpush1.bf16.msra.mxu0 %v765
        %840 = vmatprep.subr.bf16.mxu0 %v770
        %841 = vmatpush1.bf16.msra.mxu0 %v769
        %842 = vmatprep.subr.bf16.mxu0 0
        %843 = vmatpush1.bf16.msra.mxu0 0
        %844 = vmatprep.subr.bf16.mxu0 0
        %845 = vmatpush1.bf16.msra.mxu0 0
        %846 = vmatprep.subr.bf16.mxu0 0
        %847 = vmatpush1.bf16.msra.mxu0 0
        %848 = vmatprep.subr.bf16.mxu0 0
        %849 = vmatpush1.bf16.msra.mxu0 0
        %850 = vmatprep.subr.bf16.mxu0 0
        %851 = vmatpush1.bf16.msra.mxu0 0
        %852 = vmatprep.subr.bf16.mxu0 0
        %853 = vmatpush1.bf16.msra.mxu0 0
        %854 = vmatprep.subr.bf16.mxu0 0
        %855 = vmatpush1.bf16.msra.mxu0 0
        %856 = vmatprep.subr.bf16.mxu0 0
        %857 = vmatpush1.bf16.msra.mxu0 0
        %858 = vmatprep.subr.bf16.mxu0 0
        %859 = vmatpush1.bf16.msra.mxu0 0
        %860 = vmatprep.subr.bf16.mxu0 0
        %861 = vmatpush1.bf16.msra.mxu0 0
        %862 = vmatprep.subr.bf16.mxu0 0
        %863 = vmatpush1.bf16.msra.mxu0 0
        %864 = vmatprep.subr.bf16.mxu0 0
        %865 = vmatpush1.bf16.msra.mxu0 0
        %866 = vmatprep.subr.bf16.mxu0 0
        %867 = vmatpush1.bf16.msra.mxu0 0
        %868 = vmatprep.subr.bf16.mxu0 0
        %869 = vmatpush1.bf16.msra.mxu0 0
        %870 = vmatprep.mubr.bf16.mxu0 0
        %871 = vmatmul.mubr.bf16.gmra.mrb[0].mxu0 %v780
        %v872 = vpop.f32.mrb[0].mxu0
        %v873 = vadd.f32 0.0, %v872
        %v874 = vpop.f32.mrb[0].mxu0
        %v875 = vadd.f32 0.0, %v874
        %v876 = vpop.f32.mrb[0].mxu0
        %v877 = vadd.f32 0.0, %v876
        %v878 = vpop.f32.mrb[0].mxu0
        %v879 = vadd.f32 0.0, %v878
        %880 = vmatprep.mubr.bf16.mxu0 0
        %881 = vmatmul.mubr.bf16.gmra.mrb[0].mxu0 %v783
        %v882 = vpop.f32.mrb[0].mxu0
        %v883 = vadd.f32 0.0, %v882
        %v884 = vpop.f32.mrb[0].mxu0
        %v885 = vadd.f32 0.0, %v884
        %v886 = vpop.f32.mrb[0].mxu0
        %v887 = vadd.f32 0.0, %v886
        %v888 = vpop.f32.mrb[0].mxu0
        %v889 = vadd.f32 0.0, %v888
        %890 = vdwg.mxu0
        %v891 = vmul.f32 %v393, %v820
        %v892 = vmul.f32 %v394, %v822
        %v893 = vmul.f32 %v395, %v824
        %v894 = vmul.f32 %v396, %v826
        %v895 = vmul.f32 %v397, %v830
        %v896 = vmul.f32 %v398, %v832
        %v897 = vmul.f32 %v399, %v834
        %v898 = vmul.f32 %v400, %v836
        %v899 = vmul.f32 %v891, %v873
        %v900 = vmul.f32 %v892, %v875
        %v901 = vmul.f32 %v893, %v877
        %v902 = vmul.f32 %v894, %v879
        %v903 = vmul.f32 %v895, %v883
        %v904 = vmul.f32 %v896, %v885
        %v905 = vmul.f32 %v897, %v887
        %v906 = vmul.f32 %v898, %v889
        %v907 = vpack.c.bf16 %v901, %v899
        %v908 = vpack.c.bf16 %v902, %v900
        %v909 = vpack.c.bf16 %v905, %v903
        %v910 = vpack.c.bf16 %v906, %v904
        %911 = vmatprep.subr.bf16.mxu0 0
        %912 = vmatpush1.bf16.msra.mxu0 1065369472
        %913 = vmatprep.subr.bf16.mxu0 0
        %914 = vmatpush1.bf16.msra.mxu0 1065369472
        %915 = vmatprep.subr.bf16.mxu0 0
        %916 = vmatpush1.bf16.msra.mxu0 1065369472
        %917 = vmatprep.subr.bf16.mxu0 0
        %918 = vmatpush1.bf16.msra.mxu0 1065369472
        %919 = vmatprep.subr.bf16.mxu0 0
        %920 = vmatpush1.bf16.msra.mxu0 1065369472
        %921 = vmatprep.subr.bf16.mxu0 0
        %922 = vmatpush1.bf16.msra.mxu0 1065369472
        %923 = vmatprep.subr.bf16.mxu0 0
        %924 = vmatpush1.bf16.msra.mxu0 1065369472
        %925 = vmatprep.subr.bf16.mxu0 0
        %926 = vmatpush1.bf16.msra.mxu0 1065369472
        %927 = vmatprep.subr.bf16.mxu0 0
        %928 = vmatpush1.bf16.msra.mxu0 1065369472
        %929 = vmatprep.subr.bf16.mxu0 0
        %930 = vmatpush1.bf16.msra.mxu0 1065369472
        %931 = vmatprep.subr.bf16.mxu0 0
        %932 = vmatpush1.bf16.msra.mxu0 1065369472
        %933 = vmatprep.subr.bf16.mxu0 0
        %934 = vmatpush1.bf16.msra.mxu0 1065369472
        %935 = vmatprep.subr.bf16.mxu0 0
        %936 = vmatpush1.bf16.msra.mxu0 1065369472
        %937 = vmatprep.subr.bf16.mxu0 0
        %938 = vmatpush1.bf16.msra.mxu0 1065369472
        %939 = vmatprep.subr.bf16.mxu0 0
        %940 = vmatpush1.bf16.msra.mxu0 1065369472
        %941 = vmatprep.subr.bf16.mxu0 0
        %942 = vmatpush1.bf16.msra.mxu0 1065369472
        %943 = vmatprep.mubr.bf16.mxu0 %v908
        %944 = vmatmul.mubr.bf16.gmra.mrb[0].mxu0 %v907
        %v945 = vpop.f32.mrb[0].mxu0
        %v946 = vadd.f32 0.0, %v945
        %v947 = vpop.f32.mrb[0].mxu0
        %v948 = vpop.f32.mrb[0].mxu0
        %v949 = vadd.f32 0.0, %v948
        %v950 = vpop.f32.mrb[0].mxu0
        %951 = vmatprep.mubr.bf16.mxu0 %v910
        %952 = vmatmul.mubr.bf16.gmra.mrb[0].mxu0 %v909
        %v953 = vpop.f32.mrb[0].mxu0
        %v954 = vadd.f32 0.0, %v953
        %v955 = vpop.f32.mrb[0].mxu0
        %v956 = vpop.f32.mrb[0].mxu0
        %v957 = vadd.f32 0.0, %v956
        %v958 = vpop.f32.mrb[0].mxu0
        %959 = vdwg.mxu0
        %v960 = vmul.f32 %v946, 0.00390625
        %v961 = vmul.f32 %v949, 0.00390625
        %v962 = vmul.f32 %v954, 0.00390625
        %v963 = vmul.f32 %v957, 0.00390625
        %965 = vset.pattern.permute.xlu0 0
        %966 = vperm.xlu0 %965, %v960
        %v967 = vpop.permute.xlu0 %966
        %970 = vset.pattern.permute.xlu0 0
        %971 = vperm.xlu0 %970, %v961
        %v972 = vpop.permute.xlu0 %971
        %975 = vset.pattern.permute.xlu0 0
        %976 = vperm.xlu0 %975, %v962
        %v977 = vpop.permute.xlu0 %976
        %980 = vset.pattern.permute.xlu0 0
        %981 = vperm.xlu0 %980, %v963
        %v982 = vpop.permute.xlu0 %981
        %v984 = vsub.f32 %v899, %v967
        %v985 = vsub.f32 %v900, %v967
        %v986 = vsub.f32 %v901, %v972
        %v987 = vsub.f32 %v902, %v972
        %v988 = vsub.f32 %v903, %v977
        %v989 = vsub.f32 %v904, %v977
        %v990 = vsub.f32 %v905, %v982
        %v991 = vsub.f32 %v906, %v982
        %v992 = vmul.f32 %v984, %v984
        %v993 = vmul.f32 %v985, %v985
        %v994 = vmul.f32 %v986, %v986
        %v995 = vmul.f32 %v987, %v987
        %v996 = vmul.f32 %v988, %v988
        %v997 = vmul.f32 %v989, %v989
        %v998 = vmul.f32 %v990, %v990
        %v999 = vmul.f32 %v991, %v991
        %v1000 = vpack.c.bf16 %v994, %v992
        %v1001 = vpack.c.bf16 %v995, %v993
        %v1002 = vpack.c.bf16 %v998, %v996
        %v1003 = vpack.c.bf16 %v999, %v997
        %1004 = vmatprep.subr.bf16.mxu0 0
        %1005 = vmatpush1.bf16.msra.mxu0 1065369472
        %1006 = vmatprep.subr.bf16.mxu0 0
        %1007 = vmatpush1.bf16.msra.mxu0 1065369472
        %1008 = vmatprep.subr.bf16.mxu0 0
        %1009 = vmatpush1.bf16.msra.mxu0 1065369472
        %1010 = vmatprep.subr.bf16.mxu0 0
        %1011 = vmatpush1.bf16.msra.mxu0 1065369472
        %1012 = vmatprep.subr.bf16.mxu0 0
        %1013 = vmatpush1.bf16.msra.mxu0 1065369472
        %1014 = vmatprep.subr.bf16.mxu0 0
        %1015 = vmatpush1.bf16.msra.mxu0 1065369472
        %1016 = vmatprep.subr.bf16.mxu0 0
        %1017 = vmatpush1.bf16.msra.mxu0 1065369472
        %1018 = vmatprep.subr.bf16.mxu0 0
        %1019 = vmatpush1.bf16.msra.mxu0 1065369472
        %1020 = vmatprep.subr.bf16.mxu0 0
        %1021 = vmatpush1.bf16.msra.mxu0 1065369472
        %1022 = vmatprep.subr.bf16.mxu0 0
        %1023 = vmatpush1.bf16.msra.mxu0 1065369472
        %1024 = vmatprep.subr.bf16.mxu0 0
        %1025 = vmatpush1.bf16.msra.mxu0 1065369472
        %1026 = vmatprep.subr.bf16.mxu0 0
        %1027 = vmatpush1.bf16.msra.mxu0 1065369472
        %1028 = vmatprep.subr.bf16.mxu0 0
        %1029 = vmatpush1.bf16.msra.mxu0 1065369472
        %1030 = vmatprep.subr.bf16.mxu0 0
        %1031 = vmatpush1.bf16.msra.mxu0 1065369472
        %1032 = vmatprep.subr.bf16.mxu0 0
        %1033 = vmatpush1.bf16.msra.mxu0 1065369472
        %1034 = vmatprep.subr.bf16.mxu0 0
        %1035 = vmatpush1.bf16.msra.mxu0 1065369472
        %1036 = vmatprep.mubr.bf16.mxu0 %v1001
        %1037 = vmatmul.mubr.bf16.gmra.mrb[0].mxu0 %v1000
        %v1038 = vpop.f32.mrb[0].mxu0
        %v1039 = vadd.f32 0.0, %v1038
        %v1040 = vpop.f32.mrb[0].mxu0
        %v1041 = vpop.f32.mrb[0].mxu0
        %v1042 = vadd.f32 0.0, %v1041
        %v1043 = vpop.f32.mrb[0].mxu0
        %1044 = vmatprep.mubr.bf16.mxu0 %v1003
        %1045 = vmatmul.mubr.bf16.gmra.mrb[0].mxu0 %v1002
        %v1046 = vpop.f32.mrb[0].mxu0
        %v1047 = vadd.f32 0.0, %v1046
        %v1048 = vpop.f32.mrb[0].mxu0
        %v1049 = vpop.f32.mrb[0].mxu0
        %v1050 = vadd.f32 0.0, %v1049
        %v1051 = vpop.f32.mrb[0].mxu0
        %1052 = vdwg.mxu0
        %v1053 = vmul.f32 %v1039, 0.00390625
        %v1054 = vmul.f32 %v1042, 0.00390625
        %v1055 = vmul.f32 %v1047, 0.00390625
        %v1056 = vmul.f32 %v1050, 0.00390625
        %v1057 = vadd.f32 %v1053, 1e-05
        %v1058 = vadd.f32 %v1054, 1e-05
        %v1059 = vadd.f32 %v1055, 1e-05
        %v1060 = vadd.f32 %v1056, 1e-05
        %v1061 = vrsqrt.pop %v1057
        %v1062 = vrsqrt.pop %v1058
        %v1063 = vrsqrt.pop %v1059
        %v1064 = vrsqrt.pop %v1060
        %1065 = vrot.lane.b32.xlu0 %v341, 126
        %v1066 = vpop.permute.xlu0 %1065
        %1067 = vrot.lane.b32.xlu0 %v342, 126
        %v1068 = vpop.permute.xlu0 %1067
        %1069 = vrot.lane.b32.xlu0 %v343, 126
        %v1070 = vpop.permute.xlu0 %1069
        %1071 = vrot.lane.b32.xlu0 %v344, 126
        %v1072 = vpop.permute.xlu0 %1071
        %v1077 = vmul.f32 %v1061, %v1066
        %v1078 = vmul.f32 %v1062, %v1068
        %v1079 = vmul.f32 %v1063, %v1070
        %v1080 = vmul.f32 %v1064, %v1072
        %1085 = vrot.lane.b32.xlu0 %v1077, 4
        %v1086 = vpop.permute.xlu0 %1085
        %1087 = vrot.lane.b32.xlu0 %v1078, 4
        %v1088 = vpop.permute.xlu0 %1087
        %1089 = vrot.lane.b32.xlu0 %v1079, 4
        %v1090 = vpop.permute.xlu0 %1089
        %1091 = vrot.lane.b32.xlu0 %v1080, 4
        %v1092 = vpop.permute.xlu0 %1091
        %v1097 = vsub.f32 %v341, %v1086
        %v1098 = vsub.f32 %v342, %v1088
        %v1099 = vsub.f32 %v343, %v1090
        %v1100 = vsub.f32 %v344, %v1092
        %1105 = vrot.lane.b32.xlu0 %v1097, 124
        %v1106 = vpop.permute.xlu0 %1105
        %1107 = vrot.lane.b32.xlu0 %v1098, 124
        %v1108 = vpop.permute.xlu0 %1107
        %1109 = vrot.lane.b32.xlu0 %v1099, 124
        %v1110 = vpop.permute.xlu0 %1109
        %1111 = vrot.lane.b32.xlu0 %v1100, 124
        %v1112 = vpop.permute.xlu0 %1111
        %v1117 = vmul.f32 %v960, %v1106
        %v1118 = vmul.f32 %v961, %v1108
        %v1119 = vmul.f32 %v962, %v1110
        %v1120 = vmul.f32 %v963, %v1112
        %1125 = vrot.lane.b32.xlu0 %v1117, 3
        %v1126 = vpop.permute.xlu0 %1125
        %1127 = vrot.lane.b32.xlu0 %v1118, 3
        %v1128 = vpop.permute.xlu0 %1127
        %1129 = vrot.lane.b32.xlu0 %v1119, 3
        %v1130 = vpop.permute.xlu0 %1129
        %1131 = vrot.lane.b32.xlu0 %v1120, 3
        %v1132 = vpop.permute.xlu0 %1131
        %v1137 = vadd.f32 %v341, %v1126
        %v1138 = vadd.f32 %v342, %v1128
        %v1139 = vadd.f32 %v343, %v1130
        %v1140 = vadd.f32 %v344, %v1132
        %1141 = vset.pattern.permute.xlu0 0
        %1142 = vperm.xlu0 %1141, %v1077
        %v1143 = vpop.permute.xlu0 %1142
        %1145 = vset.pattern.permute.xlu0 0
        %1146 = vperm.xlu0 %1145, %v1078
        %v1147 = vpop.permute.xlu0 %1146
        %1149 = vset.pattern.permute.xlu0 0
        %1150 = vperm.xlu0 %1149, %v1079
        %v1151 = vpop.permute.xlu0 %1150
        %1153 = vset.pattern.permute.xlu0 0
        %1154 = vperm.xlu0 %1153, %v1080
        %v1155 = vpop.permute.xlu0 %1154
        %v1157 = vmul.f32 %v899, %v1143
        %v1158 = vmul.f32 %v900, %v1143
        %v1159 = vmul.f32 %v901, %v1147
        %v1160 = vmul.f32 %v902, %v1147
        %v1161 = vmul.f32 %v903, %v1151
        %v1162 = vmul.f32 %v904, %v1151
        %v1163 = vmul.f32 %v905, %v1155
        %v1164 = vmul.f32 %v906, %v1155
        %1166 = vset.pattern.permute.xlu0 3
        %1167 = vperm.xlu0 %1166, %v1137
        %v1168 = vpop.permute.xlu0 %1167
        %1171 = vset.pattern.permute.xlu0 3
        %1172 = vperm.xlu0 %1171, %v1138
        %v1173 = vpop.permute.xlu0 %1172
        %1176 = vset.pattern.permute.xlu0 3
        %1177 = vperm.xlu0 %1176, %v1139
        %v1178 = vpop.permute.xlu0 %1177
        %1181 = vset.pattern.permute.xlu0 3
        %1182 = vperm.xlu0 %1181, %v1140
        %v1183 = vpop.permute.xlu0 %1182
        %v1185 = vadd.f32 %v1157, %v1168
        %v1186 = vadd.f32 %v1158, %v1168
        %v1187 = vadd.f32 %v1159, %v1173
        %v1188 = vadd.f32 %v1160, %v1173
        %v1189 = vadd.f32 %v1161, %v1178
        %v1190 = vadd.f32 %v1162, %v1178
        %v1191 = vadd.f32 %v1163, %v1183
        %v1192 = vadd.f32 %v1164, %v1183
        %v1193 = vpack.c.bf16 %v1187, %v1185
        %v1194 = vpack.c.bf16 %v1188, %v1186
        %v1195 = vpack.c.bf16 %v1191, %v1189
        %v1196 = vpack.c.bf16 %v1192, %v1190
        %1197 = vset.pattern.permute.xlu0 1
        %1198 = vperm.xlu0 %1197, %v341
        %v1199 = vpop.permute.xlu0 %1198
        %1201 = vset.pattern.permute.xlu0 1
        %1202 = vperm.xlu0 %1201, %v342
        %v1203 = vpop.permute.xlu0 %1202
        %1205 = vset.pattern.permute.xlu0 1
        %1206 = vperm.xlu0 %1205, %v343
        %v1207 = vpop.permute.xlu0 %1206
        %1209 = vset.pattern.permute.xlu0 1
        %1210 = vperm.xlu0 %1209, %v344
        %v1211 = vpop.permute.xlu0 %1210
        %v1217 = vunpack.c.l.b16 %v327
        %v1218 = vunpack.c.l.b16 %v328
        %v1219 = vunpack.c.l.b16 %v329
        %v1220 = vunpack.c.l.b16 %v330
        %v1221 = vpack.c.b16 %v1218, %v1217
        %v1222 = vpack.c.b16 %v1220, %v1219
        %v1224 = vsel %vm582, %v1221, 0
        %v1227 = vsel %vm582, %v1222, 0
        %1229 = vmatprep.subr.bf16.mxu0 %v1194
        %1230 = vmatpush1.bf16.msra.mxu0 %v1193
        %1231 = vmatprep.subr.bf16.mxu0 %v1196
        %1232 = vmatpush1.bf16.msra.mxu0 %v1195
        %1233 = vmatprep.subr.bf16.mxu0 0
        %1234 = vmatpush1.bf16.msra.mxu0 0
        %1235 = vmatprep.subr.bf16.mxu0 0
        %1236 = vmatpush1.bf16.msra.mxu0 0
        %1237 = vmatprep.subr.bf16.mxu0 0
        %1238 = vmatpush1.bf16.msra.mxu0 0
        %1239 = vmatprep.subr.bf16.mxu0 0
        %1240 = vmatpush1.bf16.msra.mxu0 0
        %1241 = vmatprep.subr.bf16.mxu0 0
        %1242 = vmatpush1.bf16.msra.mxu0 0
        %1243 = vmatprep.subr.bf16.mxu0 0
        %1244 = vmatpush1.bf16.msra.mxu0 0
        %1245 = vmatprep.subr.bf16.mxu0 0
        %1246 = vmatpush1.bf16.msra.mxu0 0
        %1247 = vmatprep.subr.bf16.mxu0 0
        %1248 = vmatpush1.bf16.msra.mxu0 0
        %1249 = vmatprep.subr.bf16.mxu0 0
        %1250 = vmatpush1.bf16.msra.mxu0 0
        %1251 = vmatprep.subr.bf16.mxu0 0
        %1252 = vmatpush1.bf16.msra.mxu0 0
        %1253 = vmatprep.subr.bf16.mxu0 0
        %1254 = vmatpush1.bf16.msra.mxu0 0
        %1255 = vmatprep.subr.bf16.mxu0 0
        %1256 = vmatpush1.bf16.msra.mxu0 0
        %1257 = vmatprep.subr.bf16.mxu0 0
        %1258 = vmatpush1.bf16.msra.mxu0 0
        %1259 = vmatprep.subr.bf16.mxu0 0
        %1260 = vmatpush1.bf16.msra.mxu0 0
        %1261 = vmatprep.mubr.bf16.mxu0 0
        %1262 = vmatmul.mubr.bf16.gmra.mrb[0].mxu0 %v1224
        %v1263 = vpop.f32.mrb[0].mxu0
        %v1264 = vadd.f32 %v1199, %v1263
        %v1265 = vpop.f32.mrb[0].mxu0
        %v1266 = vadd.f32 %v1199, %v1265
        %v1267 = vpop.f32.mrb[0].mxu0
        %v1268 = vadd.f32 %v1203, %v1267
        %v1269 = vpop.f32.mrb[0].mxu0
        %v1270 = vadd.f32 %v1203, %v1269
        %1271 = vmatprep.mubr.bf16.mxu0 0
        %1272 = vmatmul.mubr.bf16.gmra.mrb[0].mxu0 %v1227
        %v1273 = vpop.f32.mrb[0].mxu0
        %v1274 = vadd.f32 %v1207, %v1273
        %v1275 = vpop.f32.mrb[0].mxu0
        %v1276 = vadd.f32 %v1207, %v1275
        %v1277 = vpop.f32.mrb[0].mxu0
        %v1278 = vadd.f32 %v1211, %v1277
        %v1279 = vpop.f32.mrb[0].mxu0
        %v1280 = vadd.f32 %v1211, %v1279
        %1281 = vdwg.mxu0
        %v1282 = vxor.u32 %v1264, 2147483648
        %v1283 = vxor.u32 %v1266, 2147483648
        %v1284 = vxor.u32 %v1268, 2147483648
        %v1285 = vxor.u32 %v1270, 2147483648
        %v1286 = vxor.u32 %v1274, 2147483648
        %v1287 = vxor.u32 %v1276, 2147483648
        %v1288 = vxor.u32 %v1278, 2147483648
        %v1289 = vxor.u32 %v1280, 2147483648
        %v1290 = vmul.f32 %v1282, 1.442695
        %v1291 = vpow.pop %v1290
        %v1292 = vmul.f32 %v1283, 1.442695
        %v1293 = vpow.pop %v1292
        %v1294 = vmul.f32 %v1284, 1.442695
        %v1295 = vpow.pop %v1294
        %v1296 = vmul.f32 %v1285, 1.442695
        %v1297 = vpow.pop %v1296
        %v1298 = vmul.f32 %v1286, 1.442695
        %v1299 = vpow.pop %v1298
        %v1300 = vmul.f32 %v1287, 1.442695
        %v1301 = vpow.pop %v1300
        %v1302 = vmul.f32 %v1288, 1.442695
        %v1303 = vpow.pop %v1302
        %v1304 = vmul.f32 %v1289, 1.442695
        %v1305 = vpow.pop %v1304
        %v1306 = vadd.f32 %v1291, 1.0
        %v1307 = vadd.f32 %v1293, 1.0
        %v1308 = vadd.f32 %v1295, 1.0
        %v1309 = vadd.f32 %v1297, 1.0
        %v1310 = vadd.f32 %v1299, 1.0
        %v1311 = vadd.f32 %v1301, 1.0
        %v1312 = vadd.f32 %v1303, 1.0
        %v1313 = vadd.f32 %v1305, 1.0
        %v1314 = vrcp.pop %v1306
        %v1315 = vmul.f32 1.0, %v1314
        %v1316 = vrcp.pop %v1307
        %v1317 = vmul.f32 1.0, %v1316
        %v1318 = vrcp.pop %v1308
        %v1319 = vmul.f32 1.0, %v1318
        %v1320 = vrcp.pop %v1309
        %v1321 = vmul.f32 1.0, %v1320
        %v1322 = vrcp.pop %v1310
        %v1323 = vmul.f32 1.0, %v1322
        %v1324 = vrcp.pop %v1311
        %v1325 = vmul.f32 1.0, %v1324
        %v1326 = vrcp.pop %v1312
        %v1327 = vmul.f32 1.0, %v1326
        %v1328 = vrcp.pop %v1313
        %v1329 = vmul.f32 1.0, %v1328
        %v1330 = vmul.f32 %v899, %v1315
        %v1331 = vmul.f32 %v900, %v1317
        %v1332 = vmul.f32 %v901, %v1319
        %v1333 = vmul.f32 %v902, %v1321
        %v1334 = vmul.f32 %v903, %v1323
        %v1335 = vmul.f32 %v904, %v1325
        %v1336 = vmul.f32 %v905, %v1327
        %v1337 = vmul.f32 %v906, %v1329
        %v1338 = vpack.c.bf16 %v1332, %v1330
        %v1339 = vpack.c.bf16 %v1333, %v1331
        %v1340 = vpack.c.bf16 %v1336, %v1334
        %v1341 = vpack.c.bf16 %v1337, %v1335
        %v1346 = vunpack.c.l.b16 %v332
        %v1347 = vunpack.c.l.b16 %v333
        %v1348 = vunpack.c.l.b16 %v334
        %v1349 = vunpack.c.l.b16 %v335
        %v1350 = vpack.c.b16 %v1347, %v1346
        %v1351 = vpack.c.b16 %v1349, %v1348
        %v1353 = vsel %vm582, %v1350, 0
        %v1356 = vsel %vm582, %v1351, 0
        %1358 = vmatprep.subr.bf16.mxu0 %v1339
        %1359 = vmatpush1.bf16.msra.mxu0 %v1338
        %1360 = vmatprep.subr.bf16.mxu0 %v1341
        %1361 = vmatpush1.bf16.msra.mxu0 %v1340
        %1362 = vmatprep.subr.bf16.mxu0 0
        %1363 = vmatpush1.bf16.msra.mxu0 0
        %1364 = vmatprep.subr.bf16.mxu0 0
        %1365 = vmatpush1.bf16.msra.mxu0 0
        %1366 = vmatprep.subr.bf16.mxu0 0
        %1367 = vmatpush1.bf16.msra.mxu0 0
        %1368 = vmatprep.subr.bf16.mxu0 0
        %1369 = vmatpush1.bf16.msra.mxu0 0
        %1370 = vmatprep.subr.bf16.mxu0 0
        %1371 = vmatpush1.bf16.msra.mxu0 0
        %1372 = vmatprep.subr.bf16.mxu0 0
        %1373 = vmatpush1.bf16.msra.mxu0 0
        %1374 = vmatprep.subr.bf16.mxu0 0
        %1375 = vmatpush1.bf16.msra.mxu0 0
        %1376 = vmatprep.subr.bf16.mxu0 0
        %1377 = vmatpush1.bf16.msra.mxu0 0
        %1378 = vmatprep.subr.bf16.mxu0 0
        %1379 = vmatpush1.bf16.msra.mxu0 0
        %1380 = vmatprep.subr.bf16.mxu0 0
        %1381 = vmatpush1.bf16.msra.mxu0 0
        %1382 = vmatprep.subr.bf16.mxu0 0
        %1383 = vmatpush1.bf16.msra.mxu0 0
        %1384 = vmatprep.subr.bf16.mxu0 0
        %1385 = vmatpush1.bf16.msra.mxu0 0
        %1386 = vmatprep.subr.bf16.mxu0 0
        %1387 = vmatpush1.bf16.msra.mxu0 0
        %1388 = vmatprep.subr.bf16.mxu0 0
        %1389 = vmatpush1.bf16.msra.mxu0 0
        %1390 = vmatprep.mubr.bf16.mxu0 0
        %1391 = vmatmul.mubr.bf16.gmra.mrb[0].mxu0 %v1353
        %v1392 = vpop.f32.mrb[0].mxu0
        %v1393 = vadd.f32 0.0, %v1392
        %v1394 = vpop.f32.mrb[0].mxu0
        %v1395 = vadd.f32 0.0, %v1394
        %v1396 = vpop.f32.mrb[0].mxu0
        %v1397 = vadd.f32 0.0, %v1396
        %v1398 = vpop.f32.mrb[0].mxu0
        %v1399 = vadd.f32 0.0, %v1398
        %1400 = vmatprep.mubr.bf16.mxu0 0
        %1401 = vmatmul.mubr.bf16.gmra.mrb[0].mxu0 %v1356
        %v1402 = vpop.f32.mrb[0].mxu0
        %v1403 = vadd.f32 0.0, %v1402
        %v1404 = vpop.f32.mrb[0].mxu0
        %v1405 = vadd.f32 0.0, %v1404
        %v1406 = vpop.f32.mrb[0].mxu0
        %v1407 = vadd.f32 0.0, %v1406
        %v1408 = vpop.f32.mrb[0].mxu0
        %v1409 = vadd.f32 0.0, %v1408
        %1410 = vdwg.mxu0
        %v1411 = vpack.c.bf16 %v1397, %v1393
        %v1412 = vpack.c.bf16 %v1399, %v1395
        %v1413 = vpack.c.bf16 %v1407, %v1403
        %v1414 = vpack.c.bf16 %v1409, %v1405
        %1415 = vmatprep.subr.bf16.mxu0 0
        %1416 = vmatpush1.bf16.msra.mxu0 1065369472
        %1417 = vmatprep.subr.bf16.mxu0 0
        %1418 = vmatpush1.bf16.msra.mxu0 1065369472
        %1419 = vmatprep.subr.bf16.mxu0 0
        %1420 = vmatpush1.bf16.msra.mxu0 1065369472
        %1421 = vmatprep.subr.bf16.mxu0 0
        %1422 = vmatpush1.bf16.msra.mxu0 1065369472
        %1423 = vmatprep.subr.bf16.mxu0 0
        %1424 = vmatpush1.bf16.msra.mxu0 1065369472
        %1425 = vmatprep.subr.bf16.mxu0 0
        %1426 = vmatpush1.bf16.msra.mxu0 1065369472
        %1427 = vmatprep.subr.bf16.mxu0 0
        %1428 = vmatpush1.bf16.msra.mxu0 1065369472
        %1429 = vmatprep.subr.bf16.mxu0 0
        %1430 = vmatpush1.bf16.msra.mxu0 1065369472
        %1431 = vmatprep.subr.bf16.mxu0 0
        %1432 = vmatpush1.bf16.msra.mxu0 1065369472
        %1433 = vmatprep.subr.bf16.mxu0 0
        %1434 = vmatpush1.bf16.msra.mxu0 1065369472
        %1435 = vmatprep.subr.bf16.mxu0 0
        %1436 = vmatpush1.bf16.msra.mxu0 1065369472
        %1437 = vmatprep.subr.bf16.mxu0 0
        %1438 = vmatpush1.bf16.msra.mxu0 1065369472
        %1439 = vmatprep.subr.bf16.mxu0 0
        %1440 = vmatpush1.bf16.msra.mxu0 1065369472
        %1441 = vmatprep.subr.bf16.mxu0 0
        %1442 = vmatpush1.bf16.msra.mxu0 1065369472
        %1443 = vmatprep.subr.bf16.mxu0 0
        %1444 = vmatpush1.bf16.msra.mxu0 1065369472
        %1445 = vmatprep.subr.bf16.mxu0 0
        %1446 = vmatpush1.bf16.msra.mxu0 1065369472
        %1447 = vmatprep.mubr.bf16.mxu0 %v1412
        %1448 = vmatmul.mubr.bf16.gmra.mrb[0].mxu0 %v1411
        %v1449 = vpop.f32.mrb[0].mxu0
        %v1450 = vadd.f32 0.0, %v1449
        %v1451 = vpop.f32.mrb[0].mxu0
        %v1452 = vpop.f32.mrb[0].mxu0
        %v1453 = vadd.f32 0.0, %v1452
        %v1454 = vpop.f32.mrb[0].mxu0
        %1455 = vmatprep.mubr.bf16.mxu0 %v1414
        %1456 = vmatmul.mubr.bf16.gmra.mrb[0].mxu0 %v1413
        %v1457 = vpop.f32.mrb[0].mxu0
        %v1458 = vadd.f32 0.0, %v1457
        %v1459 = vpop.f32.mrb[0].mxu0
        %v1460 = vpop.f32.mrb[0].mxu0
        %v1461 = vadd.f32 0.0, %v1460
        %v1462 = vpop.f32.mrb[0].mxu0
        %1463 = vdwg.mxu0
        %v1464 = vmul.f32 %v1450, 0.00390625
        %v1465 = vmul.f32 %v1453, 0.00390625
        %v1466 = vmul.f32 %v1458, 0.00390625
        %v1467 = vmul.f32 %v1461, 0.00390625
        %1469 = vset.pattern.permute.xlu0 0
        %1470 = vperm.xlu0 %1469, %v1464
        %v1471 = vpop.permute.xlu0 %1470
        %1474 = vset.pattern.permute.xlu0 0
        %1475 = vperm.xlu0 %1474, %v1465
        %v1476 = vpop.permute.xlu0 %1475
        %1479 = vset.pattern.permute.xlu0 0
        %1480 = vperm.xlu0 %1479, %v1466
        %v1481 = vpop.permute.xlu0 %1480
        %1484 = vset.pattern.permute.xlu0 0
        %1485 = vperm.xlu0 %1484, %v1467
        %v1486 = vpop.permute.xlu0 %1485
        %v1488 = vsub.f32 %v1393, %v1471
        %v1489 = vsub.f32 %v1395, %v1471
        %v1490 = vsub.f32 %v1397, %v1476
        %v1491 = vsub.f32 %v1399, %v1476
        %v1492 = vsub.f32 %v1403, %v1481
        %v1493 = vsub.f32 %v1405, %v1481
        %v1494 = vsub.f32 %v1407, %v1486
        %v1495 = vsub.f32 %v1409, %v1486
        %v1496 = vmul.f32 %v1488, %v1488
        %v1497 = vmul.f32 %v1489, %v1489
        %v1498 = vmul.f32 %v1490, %v1490
        %v1499 = vmul.f32 %v1491, %v1491
        %v1500 = vmul.f32 %v1492, %v1492
        %v1501 = vmul.f32 %v1493, %v1493
        %v1502 = vmul.f32 %v1494, %v1494
        %v1503 = vmul.f32 %v1495, %v1495
        %v1504 = vpack.c.bf16 %v1498, %v1496
        %v1505 = vpack.c.bf16 %v1499, %v1497
        %v1506 = vpack.c.bf16 %v1502, %v1500
        %v1507 = vpack.c.bf16 %v1503, %v1501
        %1508 = vmatprep.subr.bf16.mxu0 0
        %1509 = vmatpush1.bf16.msra.mxu0 1065369472
        %1510 = vmatprep.subr.bf16.mxu0 0
        %1511 = vmatpush1.bf16.msra.mxu0 1065369472
        %1512 = vmatprep.subr.bf16.mxu0 0
        %1513 = vmatpush1.bf16.msra.mxu0 1065369472
        %1514 = vmatprep.subr.bf16.mxu0 0
        %1515 = vmatpush1.bf16.msra.mxu0 1065369472
        %1516 = vmatprep.subr.bf16.mxu0 0
        %1517 = vmatpush1.bf16.msra.mxu0 1065369472
        %1518 = vmatprep.subr.bf16.mxu0 0
        %1519 = vmatpush1.bf16.msra.mxu0 1065369472
        %1520 = vmatprep.subr.bf16.mxu0 0
        %1521 = vmatpush1.bf16.msra.mxu0 1065369472
        %1522 = vmatprep.subr.bf16.mxu0 0
        %1523 = vmatpush1.bf16.msra.mxu0 1065369472
        %1524 = vmatprep.subr.bf16.mxu0 0
        %1525 = vmatpush1.bf16.msra.mxu0 1065369472
        %1526 = vmatprep.subr.bf16.mxu0 0
        %1527 = vmatpush1.bf16.msra.mxu0 1065369472
        %1528 = vmatprep.subr.bf16.mxu0 0
        %1529 = vmatpush1.bf16.msra.mxu0 1065369472
        %1530 = vmatprep.subr.bf16.mxu0 0
        %1531 = vmatpush1.bf16.msra.mxu0 1065369472
        %1532 = vmatprep.subr.bf16.mxu0 0
        %1533 = vmatpush1.bf16.msra.mxu0 1065369472
        %1534 = vmatprep.subr.bf16.mxu0 0
        %1535 = vmatpush1.bf16.msra.mxu0 1065369472
        %1536 = vmatprep.subr.bf16.mxu0 0
        %1537 = vmatpush1.bf16.msra.mxu0 1065369472
        %1538 = vmatprep.subr.bf16.mxu0 0
        %1539 = vmatpush1.bf16.msra.mxu0 1065369472
        %1540 = vmatprep.mubr.bf16.mxu0 %v1505
        %1541 = vmatmul.mubr.bf16.gmra.mrb[0].mxu0 %v1504
        %v1542 = vpop.f32.mrb[0].mxu0
        %v1543 = vadd.f32 0.0, %v1542
        %v1544 = vpop.f32.mrb[0].mxu0
        %v1545 = vpop.f32.mrb[0].mxu0
        %v1546 = vadd.f32 0.0, %v1545
        %v1547 = vpop.f32.mrb[0].mxu0
        %1548 = vmatprep.mubr.bf16.mxu0 %v1507
        %1549 = vmatmul.mubr.bf16.gmra.mrb[0].mxu0 %v1506
        %v1550 = vpop.f32.mrb[0].mxu0
        %v1551 = vadd.f32 0.0, %v1550
        %v1552 = vpop.f32.mrb[0].mxu0
        %v1553 = vpop.f32.mrb[0].mxu0
        %v1554 = vadd.f32 0.0, %v1553
        %v1555 = vpop.f32.mrb[0].mxu0
        %1556 = vdwg.mxu0
        %v1557 = vmul.f32 %v1543, 0.00390625
        %v1558 = vmul.f32 %v1546, 0.00390625
        %v1559 = vmul.f32 %v1551, 0.00390625
        %v1560 = vmul.f32 %v1554, 0.00390625
        %v1561 = vadd.f32 %v1557, 1e-05
        %v1562 = vadd.f32 %v1558, 1e-05
        %v1563 = vadd.f32 %v1559, 1e-05
        %v1564 = vadd.f32 %v1560, 1e-05
        %v1565 = vrsqrt.pop %v1561
        %v1566 = vrsqrt.pop %v1562
        %v1567 = vrsqrt.pop %v1563
        %v1568 = vrsqrt.pop %v1564
        %1570 = vset.pattern.permute.xlu0 0
        %1571 = vperm.xlu0 %1570, %v1565
        %v1572 = vpop.permute.xlu0 %1571
        %1575 = vset.pattern.permute.xlu0 0
        %1576 = vperm.xlu0 %1575, %v1566
        %v1577 = vpop.permute.xlu0 %1576
        %1580 = vset.pattern.permute.xlu0 0
        %1581 = vperm.xlu0 %1580, %v1567
        %v1582 = vpop.permute.xlu0 %1581
        %1585 = vset.pattern.permute.xlu0 0
        %1586 = vperm.xlu0 %1585, %v1568
        %v1587 = vpop.permute.xlu0 %1586
        %v1589 = vmul.f32 %v1488, %v1572
        %v1590 = vmul.f32 %v1489, %v1572
        %v1591 = vmul.f32 %v1490, %v1577
        %v1592 = vmul.f32 %v1491, %v1577
        %v1593 = vmul.f32 %v1492, %v1582
        %v1594 = vmul.f32 %v1493, %v1582
        %v1595 = vmul.f32 %v1494, %v1587
        %v1596 = vmul.f32 %v1495, %v1587
        %1597 = vset.pattern.permute.xlu0 5
        %1598 = vperm.xlu0 %1597, %v341
        %v1599 = vpop.permute.xlu0 %1598
        %1601 = vset.pattern.permute.xlu0 5
        %1602 = vperm.xlu0 %1601, %v342
        %v1603 = vpop.permute.xlu0 %1602
        %1605 = vset.pattern.permute.xlu0 5
        %1606 = vperm.xlu0 %1605, %v343
        %v1607 = vpop.permute.xlu0 %1606
        %1609 = vset.pattern.permute.xlu0 5
        %1610 = vperm.xlu0 %1609, %v344
        %v1611 = vpop.permute.xlu0 %1610
        %v1613 = vmul.f32 %v1589, %v1599
        %v1614 = vmul.f32 %v1590, %v1599
        %v1615 = vmul.f32 %v1591, %v1603
        %v1616 = vmul.f32 %v1592, %v1603
        %v1617 = vmul.f32 %v1593, %v1607
        %v1618 = vmul.f32 %v1594, %v1607
        %v1619 = vmul.f32 %v1595, %v1611
        %v1620 = vmul.f32 %v1596, %v1611
        %1621 = vset.pattern.permute.xlu0 6
        %1622 = vperm.xlu0 %1621, %v341
        %v1623 = vpop.permute.xlu0 %1622
        %1625 = vset.pattern.permute.xlu0 6
        %1626 = vperm.xlu0 %1625, %v342
        %v1627 = vpop.permute.xlu0 %1626
        %1629 = vset.pattern.permute.xlu0 6
        %1630 = vperm.xlu0 %1629, %v343
        %v1631 = vpop.permute.xlu0 %1630
        %1633 = vset.pattern.permute.xlu0 6
        %1634 = vperm.xlu0 %1633, %v344
        %v1635 = vpop.permute.xlu0 %1634
        %v1637 = vadd.f32 %v1613, %v1623
        %v1638 = vadd.f32 %v1614, %v1623
        %v1639 = vadd.f32 %v1615, %v1627
        %v1640 = vadd.f32 %v1616, %v1627
        %v1641 = vadd.f32 %v1617, %v1631
        %v1642 = vadd.f32 %v1618, %v1631
        %v1643 = vadd.f32 %v1619, %v1635
        %v1644 = vadd.f32 %v1620, %v1635
        %v1645 = vmax.f32 %v1637, 0.0
        %v1646 = vmax.f32 %v1638, 0.0
        %v1647 = vmax.f32 %v1639, 0.0
        %v1648 = vmax.f32 %v1640, 0.0
        %v1649 = vmax.f32 %v1641, 0.0
        %v1650 = vmax.f32 %v1642, 0.0
        %v1651 = vmax.f32 %v1643, 0.0
        %v1652 = vmax.f32 %v1644, 0.0
        %v1653 = vpack.c.bf16 %v1647, %v1645
        %v1654 = vpack.c.bf16 %v1648, %v1646
        %v1655 = vpack.c.bf16 %v1651, %v1649
        %v1656 = vpack.c.bf16 %v1652, %v1650
        %v1661 = vunpack.c.l.b16 %v337
        %v1662 = vunpack.c.l.b16 %v338
        %v1663 = vunpack.c.l.b16 %v339
        %v1664 = vunpack.c.l.b16 %v340
        %v1665 = vpack.c.b16 %v1662, %v1661
        %v1666 = vpack.c.b16 %v1664, %v1663
        %v1668 = vsel %vm582, %v1665, 0
        %v1671 = vsel %vm582, %v1666, 0
        %1673 = vmatprep.subr.bf16.mxu0 %v1654
        %1674 = vmatpush1.bf16.msra.mxu0 %v1653
        %1675 = vmatprep.subr.bf16.mxu0 %v1656
        %1676 = vmatpush1.bf16.msra.mxu0 %v1655
        %1677 = vmatprep.subr.bf16.mxu0 0
        %1678 = vmatpush1.bf16.msra.mxu0 0
        %1679 = vmatprep.subr.bf16.mxu0 0
        %1680 = vmatpush1.bf16.msra.mxu0 0
        %1681 = vmatprep.subr.bf16.mxu0 0
        %1682 = vmatpush1.bf16.msra.mxu0 0
        %1683 = vmatprep.subr.bf16.mxu0 0
        %1684 = vmatpush1.bf16.msra.mxu0 0
        %1685 = vmatprep.subr.bf16.mxu0 0
        %1686 = vmatpush1.bf16.msra.mxu0 0
        %1687 = vmatprep.subr.bf16.mxu0 0
        %1688 = vmatpush1.bf16.msra.mxu0 0
        %1689 = vmatprep.subr.bf16.mxu0 0
        %1690 = vmatpush1.bf16.msra.mxu0 0
        %1691 = vmatprep.subr.bf16.mxu0 0
        %1692 = vmatpush1.bf16.msra.mxu0 0
        %1693 = vmatprep.subr.bf16.mxu0 0
        %1694 = vmatpush1.bf16.msra.mxu0 0
        %1695 = vmatprep.subr.bf16.mxu0 0
        %1696 = vmatpush1.bf16.msra.mxu0 0
        %1697 = vmatprep.subr.bf16.mxu0 0
        %1698 = vmatpush1.bf16.msra.mxu0 0
        %1699 = vmatprep.subr.bf16.mxu0 0
        %1700 = vmatpush1.bf16.msra.mxu0 0
        %1701 = vmatprep.subr.bf16.mxu0 0
        %1702 = vmatpush1.bf16.msra.mxu0 0
        %1703 = vmatprep.subr.bf16.mxu0 0
        %1704 = vmatpush1.bf16.msra.mxu0 0
        %1705 = vmatprep.mubr.bf16.mxu0 0
        %1706 = vmatmul.mubr.bf16.gmra.mrb[0].mxu0 %v1668
        %v1707 = vpop.f32.mrb[0].mxu0
        %v1708 = vadd.f32 0.0, %v1707
        %v1709 = vpop.f32.mrb[0].mxu0
        %v1710 = vadd.f32 0.0, %v1709
        %v1711 = vpop.f32.mrb[0].mxu0
        %v1712 = vadd.f32 0.0, %v1711
        %v1713 = vpop.f32.mrb[0].mxu0
        %v1714 = vadd.f32 0.0, %v1713
        %1715 = vmatprep.mubr.bf16.mxu0 0
        %1716 = vmatmul.mubr.bf16.gmra.mrb[0].mxu0 %v1671
        %v1717 = vpop.f32.mrb[0].mxu0
        %v1718 = vadd.f32 0.0, %v1717
        %v1719 = vpop.f32.mrb[0].mxu0
        %v1720 = vadd.f32 0.0, %v1719
        %v1721 = vpop.f32.mrb[0].mxu0
        %v1722 = vadd.f32 0.0, %v1721
        %v1723 = vpop.f32.mrb[0].mxu0
        %v1724 = vadd.f32 0.0, %v1723
        %1725 = vdwg.mxu0
        %v1726 = vpack.c.bf16 %v1712, %v1708
        %v1727 = vpack.c.bf16 %v1714, %v1710
        %v1728 = vpack.c.bf16 %v1722, %v1718
        %v1729 = vpack.c.bf16 %v1724, %v1720
        %1730 = vmatprep.subr.bf16.mxu0 0
        %1731 = vmatpush1.bf16.msra.mxu0 1065369472
        %1732 = vmatprep.subr.bf16.mxu0 0
        %1733 = vmatpush1.bf16.msra.mxu0 1065369472
        %1734 = vmatprep.subr.bf16.mxu0 0
        %1735 = vmatpush1.bf16.msra.mxu0 1065369472
        %1736 = vmatprep.subr.bf16.mxu0 0
        %1737 = vmatpush1.bf16.msra.mxu0 1065369472
        %1738 = vmatprep.subr.bf16.mxu0 0
        %1739 = vmatpush1.bf16.msra.mxu0 1065369472
        %1740 = vmatprep.subr.bf16.mxu0 0
        %1741 = vmatpush1.bf16.msra.mxu0 1065369472
        %1742 = vmatprep.subr.bf16.mxu0 0
        %1743 = vmatpush1.bf16.msra.mxu0 1065369472
        %1744 = vmatprep.subr.bf16.mxu0 0
        %1745 = vmatpush1.bf16.msra.mxu0 1065369472
        %1746 = vmatprep.subr.bf16.mxu0 0
        %1747 = vmatpush1.bf16.msra.mxu0 1065369472
        %1748 = vmatprep.subr.bf16.mxu0 0
        %1749 = vmatpush1.bf16.msra.mxu0 1065369472
        %1750 = vmatprep.subr.bf16.mxu0 0
        %1751 = vmatpush1.bf16.msra.mxu0 1065369472
        %1752 = vmatprep.subr.bf16.mxu0 0
        %1753 = vmatpush1.bf16.msra.mxu0 1065369472
        %1754 = vmatprep.subr.bf16.mxu0 0
        %1755 = vmatpush1.bf16.msra.mxu0 1065369472
        %1756 = vmatprep.subr.bf16.mxu0 0
        %1757 = vmatpush1.bf16.msra.mxu0 1065369472
        %1758 = vmatprep.subr.bf16.mxu0 0
        %1759 = vmatpush1.bf16.msra.mxu0 1065369472
        %1760 = vmatprep.subr.bf16.mxu0 0
        %1761 = vmatpush1.bf16.msra.mxu0 1065369472
        %1762 = vmatprep.mubr.bf16.mxu0 %v1727
        %1763 = vmatmul.mubr.bf16.gmra.mrb[0].mxu0 %v1726
        %v1764 = vpop.f32.mrb[0].mxu0
        %v1765 = vadd.f32 0.0, %v1764
        %v1766 = vpop.f32.mrb[0].mxu0
        %v1767 = vpop.f32.mrb[0].mxu0
        %v1768 = vadd.f32 0.0, %v1767
        %v1769 = vpop.f32.mrb[0].mxu0
        %1770 = vmatprep.mubr.bf16.mxu0 %v1729
        %1771 = vmatmul.mubr.bf16.gmra.mrb[0].mxu0 %v1728
        %v1772 = vpop.f32.mrb[0].mxu0
        %v1773 = vadd.f32 0.0, %v1772
        %v1774 = vpop.f32.mrb[0].mxu0
        %v1775 = vpop.f32.mrb[0].mxu0
        %v1776 = vadd.f32 0.0, %v1775
        %v1777 = vpop.f32.mrb[0].mxu0
        %1778 = vdwg.mxu0
        %v1779 = vmul.f32 %v1765, 0.00390625
        %v1780 = vmul.f32 %v1768, 0.00390625
        %v1781 = vmul.f32 %v1773, 0.00390625
        %v1782 = vmul.f32 %v1776, 0.00390625
        %1784 = vset.pattern.permute.xlu0 0
        %1785 = vperm.xlu0 %1784, %v1779
        %v1786 = vpop.permute.xlu0 %1785
        %1789 = vset.pattern.permute.xlu0 0
        %1790 = vperm.xlu0 %1789, %v1780
        %v1791 = vpop.permute.xlu0 %1790
        %1794 = vset.pattern.permute.xlu0 0
        %1795 = vperm.xlu0 %1794, %v1781
        %v1796 = vpop.permute.xlu0 %1795
        %1799 = vset.pattern.permute.xlu0 0
        %1800 = vperm.xlu0 %1799, %v1782
        %v1801 = vpop.permute.xlu0 %1800
        %v1803 = vsub.f32 %v1708, %v1786
        %v1804 = vsub.f32 %v1710, %v1786
        %v1805 = vsub.f32 %v1712, %v1791
        %v1806 = vsub.f32 %v1714, %v1791
        %v1807 = vsub.f32 %v1718, %v1796
        %v1808 = vsub.f32 %v1720, %v1796
        %v1809 = vsub.f32 %v1722, %v1801
        %v1810 = vsub.f32 %v1724, %v1801
        %v1811 = vmul.f32 %v1803, %v1803
        %v1812 = vmul.f32 %v1804, %v1804
        %v1813 = vmul.f32 %v1805, %v1805
        %v1814 = vmul.f32 %v1806, %v1806
        %v1815 = vmul.f32 %v1807, %v1807
        %v1816 = vmul.f32 %v1808, %v1808
        %v1817 = vmul.f32 %v1809, %v1809
        %v1818 = vmul.f32 %v1810, %v1810
        %v1819 = vpack.c.bf16 %v1813, %v1811
        %v1820 = vpack.c.bf16 %v1814, %v1812
        %v1821 = vpack.c.bf16 %v1817, %v1815
        %v1822 = vpack.c.bf16 %v1818, %v1816
        %1823 = vmatprep.subr.bf16.mxu0 0
        %1824 = vmatpush1.bf16.msra.mxu0 1065369472
        %1825 = vmatprep.subr.bf16.mxu0 0
        %1826 = vmatpush1.bf16.msra.mxu0 1065369472
        %1827 = vmatprep.subr.bf16.mxu0 0
        %1828 = vmatpush1.bf16.msra.mxu0 1065369472
        %1829 = vmatprep.subr.bf16.mxu0 0
        %1830 = vmatpush1.bf16.msra.mxu0 1065369472
        %1831 = vmatprep.subr.bf16.mxu0 0
        %1832 = vmatpush1.bf16.msra.mxu0 1065369472
        %1833 = vmatprep.subr.bf16.mxu0 0
        %1834 = vmatpush1.bf16.msra.mxu0 1065369472
        %1835 = vmatprep.subr.bf16.mxu0 0
        %1836 = vmatpush1.bf16.msra.mxu0 1065369472
        %1837 = vmatprep.subr.bf16.mxu0 0
        %1838 = vmatpush1.bf16.msra.mxu0 1065369472
        %1839 = vmatprep.subr.bf16.mxu0 0
        %1840 = vmatpush1.bf16.msra.mxu0 1065369472
        %1841 = vmatprep.subr.bf16.mxu0 0
        %1842 = vmatpush1.bf16.msra.mxu0 1065369472
        %1843 = vmatprep.subr.bf16.mxu0 0
        %1844 = vmatpush1.bf16.msra.mxu0 1065369472
        %1845 = vmatprep.subr.bf16.mxu0 0
        %1846 = vmatpush1.bf16.msra.mxu0 1065369472
        %1847 = vmatprep.subr.bf16.mxu0 0
        %1848 = vmatpush1.bf16.msra.mxu0 1065369472
        %1849 = vmatprep.subr.bf16.mxu0 0
        %1850 = vmatpush1.bf16.msra.mxu0 1065369472
        %1851 = vmatprep.subr.bf16.mxu0 0
        %1852 = vmatpush1.bf16.msra.mxu0 1065369472
        %1853 = vmatprep.subr.bf16.mxu0 0
        %1854 = vmatpush1.bf16.msra.mxu0 1065369472
        %1855 = vmatprep.mubr.bf16.mxu0 %v1820
        %1856 = vmatmul.mubr.bf16.gmra.mrb[0].mxu0 %v1819
        %v1857 = vpop.f32.mrb[0].mxu0
        %v1858 = vadd.f32 0.0, %v1857
        %v1859 = vpop.f32.mrb[0].mxu0
        %v1860 = vpop.f32.mrb[0].mxu0
        %v1861 = vadd.f32 0.0, %v1860
        %v1862 = vpop.f32.mrb[0].mxu0
        %1863 = vmatprep.mubr.bf16.mxu0 %v1822
        %1864 = vmatmul.mubr.bf16.gmra.mrb[0].mxu0 %v1821
        %v1865 = vpop.f32.mrb[0].mxu0
        %v1866 = vadd.f32 0.0, %v1865
        %v1867 = vpop.f32.mrb[0].mxu0
        %v1868 = vpop.f32.mrb[0].mxu0
        %v1869 = vadd.f32 0.0, %v1868
        %v1870 = vpop.f32.mrb[0].mxu0
        %1871 = vdwg.mxu0
        %v1872 = vmul.f32 %v1858, 0.00390625
        %v1873 = vmul.f32 %v1861, 0.00390625
        %v1874 = vmul.f32 %v1866, 0.00390625
        %v1875 = vmul.f32 %v1869, 0.00390625
        %v1876 = vadd.f32 %v1872, 1e-05
        %v1877 = vadd.f32 %v1873, 1e-05
        %v1878 = vadd.f32 %v1874, 1e-05
        %v1879 = vadd.f32 %v1875, 1e-05
        %v1880 = vrsqrt.pop %v1876
        %v1881 = vrsqrt.pop %v1877
        %v1882 = vrsqrt.pop %v1878
        %v1883 = vrsqrt.pop %v1879
        %1885 = vset.pattern.permute.xlu0 0
        %1886 = vperm.xlu0 %1885, %v1880
        %v1887 = vpop.permute.xlu0 %1886
        %1890 = vset.pattern.permute.xlu0 0
        %1891 = vperm.xlu0 %1890, %v1881
        %v1892 = vpop.permute.xlu0 %1891
        %1895 = vset.pattern.permute.xlu0 0
        %1896 = vperm.xlu0 %1895, %v1882
        %v1897 = vpop.permute.xlu0 %1896
        %1900 = vset.pattern.permute.xlu0 0
        %1901 = vperm.xlu0 %1900, %v1883
        %v1902 = vpop.permute.xlu0 %1901
        %v1904 = vmul.f32 %v1803, %v1887
        %v1905 = vmul.f32 %v1804, %v1887
        %v1906 = vmul.f32 %v1805, %v1892
        %v1907 = vmul.f32 %v1806, %v1892
        %v1908 = vmul.f32 %v1807, %v1897
        %v1909 = vmul.f32 %v1808, %v1897
        %v1910 = vmul.f32 %v1809, %v1902
        %v1911 = vmul.f32 %v1810, %v1902
        %1912 = vset.pattern.permute.xlu0 7
        %1913 = vperm.xlu0 %1912, %v341
        %v1914 = vpop.permute.xlu0 %1913
        %1916 = vset.pattern.permute.xlu0 7
        %1917 = vperm.xlu0 %1916, %v342
        %v1918 = vpop.permute.xlu0 %1917
        %1920 = vset.pattern.permute.xlu0 7
        %1921 = vperm.xlu0 %1920, %v343
        %v1922 = vpop.permute.xlu0 %1921
        %1924 = vset.pattern.permute.xlu0 7
        %1925 = vperm.xlu0 %1924, %v344
        %v1926 = vpop.permute.xlu0 %1925
        %v1928 = vmul.f32 %v1904, %v1914
        %v1929 = vmul.f32 %v1905, %v1914
        %v1930 = vmul.f32 %v1906, %v1918
        %v1931 = vmul.f32 %v1907, %v1918
        %v1932 = vmul.f32 %v1908, %v1922
        %v1933 = vmul.f32 %v1909, %v1922
        %v1934 = vmul.f32 %v1910, %v1926
        %v1935 = vmul.f32 %v1911, %v1926
        %1936 = vset.pattern.permute.xlu0 8
        %1937 = vperm.xlu0 %1936, %v341
        %v1938 = vpop.permute.xlu0 %1937
        %1940 = vset.pattern.permute.xlu0 8
        %1941 = vperm.xlu0 %1940, %v342
        %v1942 = vpop.permute.xlu0 %1941
        %1944 = vset.pattern.permute.xlu0 8
        %1945 = vperm.xlu0 %1944, %v343
        %v1946 = vpop.permute.xlu0 %1945
        %1948 = vset.pattern.permute.xlu0 8
        %1949 = vperm.xlu0 %1948, %v344
        %v1950 = vpop.permute.xlu0 %1949
        %v1952 = vadd.f32 %v1928, %v1938
        %v1953 = vadd.f32 %v1929, %v1938
        %v1954 = vadd.f32 %v1930, %v1942
        %v1955 = vadd.f32 %v1931, %v1942
        %v1956 = vadd.f32 %v1932, %v1946
        %v1957 = vadd.f32 %v1933, %v1946
        %v1958 = vadd.f32 %v1934, %v1950
        %v1959 = vadd.f32 %v1935, %v1950
        %v1960 = vadd.f32 %v1952, %v393
        %v1961 = vadd.f32 %v1953, %v394
        %v1962 = vadd.f32 %v1954, %v395
        %v1963 = vadd.f32 %v1955, %v396
        %v1964 = vadd.f32 %v1956, %v397
        %v1965 = vadd.f32 %v1957, %v398
        %v1966 = vadd.f32 %v1958, %v399
        %v1967 = vadd.f32 %v1959, %v400
        %v1968 = vmax.f32 %v1960, 0.0
        %v1969 = vmax.f32 %v1961, 0.0
        %v1970 = vmax.f32 %v1962, 0.0
        %v1971 = vmax.f32 %v1963, 0.0
        %v1972 = vmax.f32 %v1964, 0.0
        %v1973 = vmax.f32 %v1965, 0.0
        %v1974 = vmax.f32 %v1966, 0.0
        %v1975 = vmax.f32 %v1967, 0.0
        %1976 = vst [vmem:[%s312] sm:$0xff] %v1968
        %1977 = vst [vmem:[%s312 + $0x8] sm:$0xff] %v1969
        %1978 = vst [vmem:[%s312 + $0x10] sm:$0xff] %v1970
        %1979 = vst [vmem:[%s312 + $0x18] sm:$0xff] %v1971
        %1980 = vst [vmem:[%s312 + $0x20] sm:$0xff] %v1972
        %1981 = vst [vmem:[%s312 + $0x28] sm:$0xff] %v1973
        %1982 = vst [vmem:[%s312 + $0x30] sm:$0xff] %v1974
        %1983 = vst [vmem:[%s312 + $0x38] sm:$0xff] %v1975
        %s1984 = scalar_lea.vmem %s278, 64 [#allocation2]
        %v1985 = vld [vmem:[%s1984] sm:$0xff]
        %v1986 = vld [vmem:[%s1984 + $0x8] sm:$0xff]
        %v1987 = vld [vmem:[%s1984 + $0x10] sm:$0xff]
        %v1988 = vld [vmem:[%s1984 + $0x18] sm:$0xff]
        %v1989 = vld [vmem:[%s1984 + $0x20] sm:$0xff]
        %v1990 = vld [vmem:[%s1984 + $0x28] sm:$0xff]
        %v1991 = vld [vmem:[%s1984 + $0x30] sm:$0xff]
        %v1992 = vld [vmem:[%s1984 + $0x38] sm:$0xff]
        %v1993 = vpack.c.bf16 %v1987, %v1985
        %v1994 = vpack.c.bf16 %v1988, %v1986
        %v1995 = vpack.c.bf16 %v1991, %v1989
        %v1996 = vpack.c.bf16 %v1992, %v1990
        %1997 = vmatprep.subr.bf16.mxu0 0
        %1998 = vmatpush1.bf16.msra.mxu0 %v469
        %1999 = vmatprep.subr.bf16.mxu0 0
        %2000 = vmatpush1.bf16.msra.mxu0 %v470
        %2001 = vmatprep.subr.bf16.mxu0 0
        %2002 = vmatpush1.bf16.msra.mxu0 %v471
        %2003 = vmatprep.subr.bf16.mxu0 0
        %2004 = vmatpush1.bf16.msra.mxu0 %v472
        %2005 = vmatprep.subr.bf16.mxu0 0
        %2006 = vmatpush1.bf16.msra.mxu0 %v473
        %2007 = vmatprep.subr.bf16.mxu0 0
        %2008 = vmatpush1.bf16.msra.mxu0 %v474
        %2009 = vmatprep.subr.bf16.mxu0 0
        %2010 = vmatpush1.bf16.msra.mxu0 %v475
        %2011 = vmatprep.subr.bf16.mxu0 0
        %2012 = vmatpush1.bf16.msra.mxu0 %v476
        %2013 = vmatprep.subr.bf16.mxu0 0
        %2014 = vmatpush1.bf16.msra.mxu0 %v477
        %2015 = vmatprep.subr.bf16.mxu0 0
        %2016 = vmatpush1.bf16.msra.mxu0 %v478
        %2017 = vmatprep.subr.bf16.mxu0 0
        %2018 = vmatpush1.bf16.msra.mxu0 %v479
        %2019 = vmatprep.subr.bf16.mxu0 0
        %2020 = vmatpush1.bf16.msra.mxu0 %v480
        %2021 = vmatprep.subr.bf16.mxu0 0
        %2022 = vmatpush1.bf16.msra.mxu0 %v481
        %2023 = vmatprep.subr.bf16.mxu0 0
        %2024 = vmatpush1.bf16.msra.mxu0 %v482
        %2025 = vmatprep.subr.bf16.mxu0 0
        %2026 = vmatpush1.bf16.msra.mxu0 %v483
        %2027 = vmatprep.subr.bf16.mxu0 0
        %2028 = vmatpush1.bf16.msra.mxu0 %v484
        %2029 = vmatprep.mubr.bf16.mxu0 %v1994
        %2030 = vmatmul.mubr.bf16.gmra.mrb[0].mxu0 %v1993
        %v2031 = vpop.f32.mrb[0].mxu0
        %v2032 = vadd.f32 0.0, %v2031
        %v2033 = vpop.f32.mrb[0].mxu0
        %v2034 = vpop.f32.mrb[0].mxu0
        %v2035 = vadd.f32 0.0, %v2034
        %v2036 = vpop.f32.mrb[0].mxu0
        %2037 = vmatprep.mubr.bf16.mxu0 %v1996
        %2038 = vmatmul.mubr.bf16.gmra.mrb[0].mxu0 %v1995
        %v2039 = vpop.f32.mrb[0].mxu0
        %v2040 = vadd.f32 0.0, %v2039
        %v2041 = vpop.f32.mrb[0].mxu0
        %v2042 = vpop.f32.mrb[0].mxu0
        %v2043 = vadd.f32 0.0, %v2042
        %v2044 = vpop.f32.mrb[0].mxu0
        %2045 = vdwg.mxu0
        %v2046 = vpack.c.bf16 %v2035, %v2032
        %v2047 = vpack.c.bf16 %v2043, %v2040
        %2048 = vmatprep.subr.bf16.mxu0 0
        %2049 = vmatpush1.bf16.msra.mxu0 %v2046
        %2050 = vmatprep.subr.bf16.mxu0 0
        %2051 = vmatpush1.bf16.msra.mxu0 %v2047
        %2052 = vmatprep.subr.bf16.mxu0 0
        %2053 = vmatpush1.bf16.msra.mxu0 0
        %2054 = vmatprep.subr.bf16.mxu0 0
        %2055 = vmatpush1.bf16.msra.mxu0 0
        %2056 = vmatprep.subr.bf16.mxu0 0
        %2057 = vmatpush1.bf16.msra.mxu0 0
        %2058 = vmatprep.subr.bf16.mxu0 0
        %2059 = vmatpush1.bf16.msra.mxu0 0
        %2060 = vmatprep.subr.bf16.mxu0 0
        %2061 = vmatpush1.bf16.msra.mxu0 0
        %2062 = vmatprep.subr.bf16.mxu0 0
        %2063 = vmatpush1.bf16.msra.mxu0 0
        %2064 = vmatprep.subr.bf16.mxu0 0
        %2065 = vmatpush1.bf16.msra.mxu0 0
        %2066 = vmatprep.subr.bf16.mxu0 0
        %2067 = vmatpush1.bf16.msra.mxu0 0
        %2068 = vmatprep.subr.bf16.mxu0 0
        %2069 = vmatpush1.bf16.msra.mxu0 0
        %2070 = vmatprep.subr.bf16.mxu0 0
        %2071 = vmatpush1.bf16.msra.mxu0 0
        %2072 = vmatprep.subr.bf16.mxu0 0
        %2073 = vmatpush1.bf16.msra.mxu0 0
        %2074 = vmatprep.subr.bf16.mxu0 0
        %2075 = vmatpush1.bf16.msra.mxu0 0
        %2076 = vmatprep.subr.bf16.mxu0 0
        %2077 = vmatpush1.bf16.msra.mxu0 0
        %2078 = vmatprep.subr.bf16.mxu0 0
        %2079 = vmatpush1.bf16.msra.mxu0 0
        %2080 = vmatprep.mubr.bf16.mxu0 0
        %2081 = vmatmul.mubr.bf16.gmra.mrb[0].mxu0 %v584
        %v2082 = vpop.f32.mrb[0].mxu0
        %v2083 = vadd.f32 %v555, %v2082
        %v2084 = vpop.f32.mrb[0].mxu0
        %v2085 = vpop.f32.mrb[0].mxu0
        %v2086 = vadd.f32 %v560, %v2085
        %v2087 = vpop.f32.mrb[0].mxu0
        %2088 = vmatprep.mubr.bf16.mxu0 0
        %2089 = vmatmul.mubr.bf16.gmra.mrb[0].mxu0 %v587
        %v2090 = vpop.f32.mrb[0].mxu0
        %v2091 = vadd.f32 %v565, %v2090
        %v2092 = vpop.f32.mrb[0].mxu0
        %v2093 = vpop.f32.mrb[0].mxu0
        %v2094 = vadd.f32 %v570, %v2093
        %v2095 = vpop.f32.mrb[0].mxu0
        %2096 = vdwg.mxu0
        %v2097 = vmax.f32 %v2083, 0.0
        %v2098 = vmax.f32 %v2086, 0.0
        %v2099 = vmax.f32 %v2091, 0.0
        %v2100 = vmax.f32 %v2094, 0.0
        %v2101 = vmul.f32 %v2097, %v345
        %v2102 = vmul.f32 %v2098, %v346
        %v2103 = vmul.f32 %v2099, %v347
        %v2104 = vmul.f32 %v2100, %v348
        %v2105 = vpack.c.bf16 %v2102, %v2101
        %v2106 = vpack.c.bf16 %v2104, %v2103
        %2107 = vmatprep.subr.bf16.mxu0 0
        %2108 = vmatpush1.bf16.msra.mxu0 %v2105
        %2109 = vmatprep.subr.bf16.mxu0 0
        %2110 = vmatpush1.bf16.msra.mxu0 %v2106
        %2111 = vmatprep.subr.bf16.mxu0 0
        %2112 = vmatpush1.bf16.msra.mxu0 0
        %2113 = vmatprep.subr.bf16.mxu0 0
        %2114 = vmatpush1.bf16.msra.mxu0 0
        %2115 = vmatprep.subr.bf16.mxu0 0
        %2116 = vmatpush1.bf16.msra.mxu0 0
        %2117 = vmatprep.subr.bf16.mxu0 0
        %2118 = vmatpush1.bf16.msra.mxu0 0
        %2119 = vmatprep.subr.bf16.mxu0 0
        %2120 = vmatpush1.bf16.msra.mxu0 0
        %2121 = vmatprep.subr.bf16.mxu0 0
        %2122 = vmatpush1.bf16.msra.mxu0 0
        %2123 = vmatprep.subr.bf16.mxu0 0
        %2124 = vmatpush1.bf16.msra.mxu0 0
        %2125 = vmatprep.subr.bf16.mxu0 0
        %2126 = vmatpush1.bf16.msra.mxu0 0
        %2127 = vmatprep.subr.bf16.mxu0 0
        %2128 = vmatpush1.bf16.msra.mxu0 0
        %2129 = vmatprep.subr.bf16.mxu0 0
        %2130 = vmatpush1.bf16.msra.mxu0 0
        %2131 = vmatprep.subr.bf16.mxu0 0
        %2132 = vmatpush1.bf16.msra.mxu0 0
        %2133 = vmatprep.subr.bf16.mxu0 0
        %2134 = vmatpush1.bf16.msra.mxu0 0
        %2135 = vmatprep.subr.bf16.mxu0 0
        %2136 = vmatpush1.bf16.msra.mxu0 0
        %2137 = vmatprep.subr.bf16.mxu0 0
        %2138 = vmatpush1.bf16.msra.mxu0 0
        %2139 = vmatprep.mubr.bf16.mxu0 0
        %2140 = vmatmul.mubr.bf16.gmra.mrb[0].mxu0 %v659
        %v2141 = vpop.f32.mrb[0].mxu0
        %v2142 = vadd.f32 %v349, %v2141
        %v2143 = vpop.f32.mrb[0].mxu0
        %v2144 = vpop.f32.mrb[0].mxu0
        %v2145 = vadd.f32 %v350, %v2144
        %v2146 = vpop.f32.mrb[0].mxu0
        %2147 = vmatprep.mubr.bf16.mxu0 0
        %2148 = vmatmul.mubr.bf16.gmra.mrb[0].mxu0 %v662
        %v2149 = vpop.f32.mrb[0].mxu0
        %v2150 = vadd.f32 %v351, %v2149
        %v2151 = vpop.f32.mrb[0].mxu0
        %v2152 = vpop.f32.mrb[0].mxu0
        %v2153 = vadd.f32 %v352, %v2152
        %v2154 = vpop.f32.mrb[0].mxu0
        %2155 = vdwg.mxu0
        %v2156 = vxor.u32 %v2142, 2147483648
        %v2157 = vxor.u32 %v2145, 2147483648
        %v2158 = vxor.u32 %v2150, 2147483648
        %v2159 = vxor.u32 %v2153, 2147483648
        %v2160 = vmul.f32 %v2156, 1.442695
        %v2161 = vpow.pop %v2160
        %v2162 = vmul.f32 %v2157, 1.442695
        %v2163 = vpow.pop %v2162
        %v2164 = vmul.f32 %v2158, 1.442695
        %v2165 = vpow.pop %v2164
        %v2166 = vmul.f32 %v2159, 1.442695
        %v2167 = vpow.pop %v2166
        %v2168 = vadd.f32 %v2161, 1.0
        %v2169 = vadd.f32 %v2163, 1.0
        %v2170 = vadd.f32 %v2165, 1.0
        %v2171 = vadd.f32 %v2167, 1.0
        %v2172 = vrcp.pop %v2168
        %v2173 = vmul.f32 1.0, %v2172
        %v2174 = vrcp.pop %v2169
        %v2175 = vmul.f32 1.0, %v2174
        %v2176 = vrcp.pop %v2170
        %v2177 = vmul.f32 1.0, %v2176
        %v2178 = vrcp.pop %v2171
        %v2179 = vmul.f32 1.0, %v2178
        %v2180 = vpack.c.bf16 %v2175, %v2173
        %v2181 = vpack.c.bf16 %v2179, %v2177
        %v2183 = vsel %vm582, %v2180, 0
        %v2186 = vsel %vm582, %v2181, 0
        %2188 = vmatprep.subr.bf16.mxu0 %v764
        %2189 = vmatpush1.bf16.msra.mxu0 %v763
        %2190 = vmatprep.subr.bf16.mxu0 %v768
        %2191 = vmatpush1.bf16.msra.mxu0 %v767
        %2192 = vmatprep.subr.bf16.mxu0 0
        %2193 = vmatpush1.bf16.msra.mxu0 0
        %2194 = vmatprep.subr.bf16.mxu0 0
        %2195 = vmatpush1.bf16.msra.mxu0 0
        %2196 = vmatprep.subr.bf16.mxu0 0
        %2197 = vmatpush1.bf16.msra.mxu0 0
        %2198 = vmatprep.subr.bf16.mxu0 0
        %2199 = vmatpush1.bf16.msra.mxu0 0
        %2200 = vmatprep.subr.bf16.mxu0 0
        %2201 = vmatpush1.bf16.msra.mxu0 0
        %2202 = vmatprep.subr.bf16.mxu0 0
        %2203 = vmatpush1.bf16.msra.mxu0 0
        %2204 = vmatprep.subr.bf16.mxu0 0
        %2205 = vmatpush1.bf16.msra.mxu0 0
        %2206 = vmatprep.subr.bf16.mxu0 0
        %2207 = vmatpush1.bf16.msra.mxu0 0
        %2208 = vmatprep.subr.bf16.mxu0 0
        %2209 = vmatpush1.bf16.msra.mxu0 0
        %2210 = vmatprep.subr.bf16.mxu0 0
        %2211 = vmatpush1.bf16.msra.mxu0 0
        %2212 = vmatprep.subr.bf16.mxu0 0
        %2213 = vmatpush1.bf16.msra.mxu0 0
        %2214 = vmatprep.subr.bf16.mxu0 0
        %2215 = vmatpush1.bf16.msra.mxu0 0
        %2216 = vmatprep.subr.bf16.mxu0 0
        %2217 = vmatpush1.bf16.msra.mxu0 0
        %2218 = vmatprep.subr.bf16.mxu0 0
        %2219 = vmatpush1.bf16.msra.mxu0 0
        %2220 = vmatprep.mubr.bf16.mxu0 0
        %2221 = vmatmul.mubr.bf16.gmra.mrb[0].mxu0 %v2183
        %v2222 = vpop.f32.mrb[0].mxu0
        %v2223 = vadd.f32 0.0, %v2222
        %v2224 = vpop.f32.mrb[0].mxu0
        %v2225 = vadd.f32 0.0, %v2224
        %v2226 = vpop.f32.mrb[0].mxu0
        %v2227 = vadd.f32 0.0, %v2226
        %v2228 = vpop.f32.mrb[0].mxu0
        %v2229 = vadd.f32 0.0, %v2228
        %2230 = vmatprep.mubr.bf16.mxu0 0
        %2231 = vmatmul.mubr.bf16.gmra.mrb[0].mxu0 %v2186
        %v2232 = vpop.f32.mrb[0].mxu0
        %v2233 = vadd.f32 0.0, %v2232
        %v2234 = vpop.f32.mrb[0].mxu0
        %v2235 = vadd.f32 0.0, %v2234
        %v2236 = vpop.f32.mrb[0].mxu0
        %v2237 = vadd.f32 0.0, %v2236
        %v2238 = vpop.f32.mrb[0].mxu0
        %v2239 = vadd.f32 0.0, %v2238
        %2240 = vdwg.mxu0
        %2241 = vmatprep.subr.bf16.mxu0 %v766
        %2242 = vmatpush1.bf16.msra.mxu0 %v765
        %2243 = vmatprep.subr.bf16.mxu0 %v770
        %2244 = vmatpush1.bf16.msra.mxu0 %v769
        %2245 = vmatprep.subr.bf16.mxu0 0
        %2246 = vmatpush1.bf16.msra.mxu0 0
        %2247 = vmatprep.subr.bf16.mxu0 0
        %2248 = vmatpush1.bf16.msra.mxu0 0
        %2249 = vmatprep.subr.bf16.mxu0 0
        %2250 = vmatpush1.bf16.msra.mxu0 0
        %2251 = vmatprep.subr.bf16.mxu0 0
        %2252 = vmatpush1.bf16.msra.mxu0 0
        %2253 = vmatprep.subr.bf16.mxu0 0
        %2254 = vmatpush1.bf16.msra.mxu0 0
        %2255 = vmatprep.subr.bf16.mxu0 0
        %2256 = vmatpush1.bf16.msra.mxu0 0
        %2257 = vmatprep.subr.bf16.mxu0 0
        %2258 = vmatpush1.bf16.msra.mxu0 0
        %2259 = vmatprep.subr.bf16.mxu0 0
        %2260 = vmatpush1.bf16.msra.mxu0 0
        %2261 = vmatprep.subr.bf16.mxu0 0
        %2262 = vmatpush1.bf16.msra.mxu0 0
        %2263 = vmatprep.subr.bf16.mxu0 0
        %2264 = vmatpush1.bf16.msra.mxu0 0
        %2265 = vmatprep.subr.bf16.mxu0 0
        %2266 = vmatpush1.bf16.msra.mxu0 0
        %2267 = vmatprep.subr.bf16.mxu0 0
        %2268 = vmatpush1.bf16.msra.mxu0 0
        %2269 = vmatprep.subr.bf16.mxu0 0
        %2270 = vmatpush1.bf16.msra.mxu0 0
        %2271 = vmatprep.subr.bf16.mxu0 0
        %2272 = vmatpush1.bf16.msra.mxu0 0
        %2273 = vmatprep.mubr.bf16.mxu0 0
        %2274 = vmatmul.mubr.bf16.gmra.mrb[0].mxu0 %v2183
        %v2275 = vpop.f32.mrb[0].mxu0
        %v2276 = vadd.f32 0.0, %v2275
        %v2277 = vpop.f32.mrb[0].mxu0
        %v2278 = vadd.f32 0.0, %v2277
        %v2279 = vpop.f32.mrb[0].mxu0
        %v2280 = vadd.f32 0.0, %v2279
        %v2281 = vpop.f32.mrb[0].mxu0
        %v2282 = vadd.f32 0.0, %v2281
        %2283 = vmatprep.mubr.bf16.mxu0 0
        %2284 = vmatmul.mubr.bf16.gmra.mrb[0].mxu0 %v2186
        %v2285 = vpop.f32.mrb[0].mxu0
        %v2286 = vadd.f32 0.0, %v2285
        %v2287 = vpop.f32.mrb[0].mxu0
        %v2288 = vadd.f32 0.0, %v2287
        %v2289 = vpop.f32.mrb[0].mxu0
        %v2290 = vadd.f32 0.0, %v2289
        %v2291 = vpop.f32.mrb[0].mxu0
        %v2292 = vadd.f32 0.0, %v2291
        %2293 = vdwg.mxu0
        %v2294 = vmul.f32 %v1985, %v2223
        %v2295 = vmul.f32 %v1986, %v2225
        %v2296 = vmul.f32 %v1987, %v2227
        %v2297 = vmul.f32 %v1988, %v2229
        %v2298 = vmul.f32 %v1989, %v2233
        %v2299 = vmul.f32 %v1990, %v2235
        %v2300 = vmul.f32 %v1991, %v2237
        %v2301 = vmul.f32 %v1992, %v2239
        %v2302 = vmul.f32 %v2294, %v2276
        %v2303 = vmul.f32 %v2295, %v2278
        %v2304 = vmul.f32 %v2296, %v2280
        %v2305 = vmul.f32 %v2297, %v2282
        %v2306 = vmul.f32 %v2298, %v2286
        %v2307 = vmul.f32 %v2299, %v2288
        %v2308 = vmul.f32 %v2300, %v2290
        %v2309 = vmul.f32 %v2301, %v2292
        %v2310 = vpack.c.bf16 %v2304, %v2302
        %v2311 = vpack.c.bf16 %v2305, %v2303
        %v2312 = vpack.c.bf16 %v2308, %v2306
        %v2313 = vpack.c.bf16 %v2309, %v2307
        %2314 = vmatprep.subr.bf16.mxu0 0
        %2315 = vmatpush1.bf16.msra.mxu0 1065369472
        %2316 = vmatprep.subr.bf16.mxu0 0
        %2317 = vmatpush1.bf16.msra.mxu0 1065369472
        %2318 = vmatprep.subr.bf16.mxu0 0
        %2319 = vmatpush1.bf16.msra.mxu0 1065369472
        %2320 = vmatprep.subr.bf16.mxu0 0
        %2321 = vmatpush1.bf16.msra.mxu0 1065369472
        %2322 = vmatprep.subr.bf16.mxu0 0
        %2323 = vmatpush1.bf16.msra.mxu0 1065369472
        %2324 = vmatprep.subr.bf16.mxu0 0
        %2325 = vmatpush1.bf16.msra.mxu0 1065369472
        %2326 = vmatprep.subr.bf16.mxu0 0
        %2327 = vmatpush1.bf16.msra.mxu0 1065369472
        %2328 = vmatprep.subr.bf16.mxu0 0
        %2329 = vmatpush1.bf16.msra.mxu0 1065369472
        %2330 = vmatprep.subr.bf16.mxu0 0
        %2331 = vmatpush1.bf16.msra.mxu0 1065369472
        %2332 = vmatprep.subr.bf16.mxu0 0
        %2333 = vmatpush1.bf16.msra.mxu0 1065369472
        %2334 = vmatprep.subr.bf16.mxu0 0
        %2335 = vmatpush1.bf16.msra.mxu0 1065369472
        %2336 = vmatprep.subr.bf16.mxu0 0
        %2337 = vmatpush1.bf16.msra.mxu0 1065369472
        %2338 = vmatprep.subr.bf16.mxu0 0
        %2339 = vmatpush1.bf16.msra.mxu0 1065369472
        %2340 = vmatprep.subr.bf16.mxu0 0
        %2341 = vmatpush1.bf16.msra.mxu0 1065369472
        %2342 = vmatprep.subr.bf16.mxu0 0
        %2343 = vmatpush1.bf16.msra.mxu0 1065369472
        %2344 = vmatprep.subr.bf16.mxu0 0
        %2345 = vmatpush1.bf16.msra.mxu0 1065369472
        %2346 = vmatprep.mubr.bf16.mxu0 %v2311
        %2347 = vmatmul.mubr.bf16.gmra.mrb[0].mxu0 %v2310
        %v2348 = vpop.f32.mrb[0].mxu0
        %v2349 = vadd.f32 0.0, %v2348
        %v2350 = vpop.f32.mrb[0].mxu0
        %v2351 = vpop.f32.mrb[0].mxu0
        %v2352 = vadd.f32 0.0, %v2351
        %v2353 = vpop.f32.mrb[0].mxu0
        %2354 = vmatprep.mubr.bf16.mxu0 %v2313
        %2355 = vmatmul.mubr.bf16.gmra.mrb[0].mxu0 %v2312
        %v2356 = vpop.f32.mrb[0].mxu0
        %v2357 = vadd.f32 0.0, %v2356
        %v2358 = vpop.f32.mrb[0].mxu0
        %v2359 = vpop.f32.mrb[0].mxu0
        %v2360 = vadd.f32 0.0, %v2359
        %v2361 = vpop.f32.mrb[0].mxu0
        %2362 = vdwg.mxu0
        %v2363 = vmul.f32 %v2349, 0.00390625
        %v2364 = vmul.f32 %v2352, 0.00390625
        %v2365 = vmul.f32 %v2357, 0.00390625
        %v2366 = vmul.f32 %v2360, 0.00390625
        %2368 = vset.pattern.permute.xlu0 0
        %2369 = vperm.xlu0 %2368, %v2363
        %v2370 = vpop.permute.xlu0 %2369
        %2373 = vset.pattern.permute.xlu0 0
        %2374 = vperm.xlu0 %2373, %v2364
        %v2375 = vpop.permute.xlu0 %2374
        %2378 = vset.pattern.permute.xlu0 0
        %2379 = vperm.xlu0 %2378, %v2365
        %v2380 = vpop.permute.xlu0 %2379
        %2383 = vset.pattern.permute.xlu0 0
        %2384 = vperm.xlu0 %2383, %v2366
        %v2385 = vpop.permute.xlu0 %2384
        %v2387 = vsub.f32 %v2302, %v2370
        %v2388 = vsub.f32 %v2303, %v2370
        %v2389 = vsub.f32 %v2304, %v2375
        %v2390 = vsub.f32 %v2305, %v2375
        %v2391 = vsub.f32 %v2306, %v2380
        %v2392 = vsub.f32 %v2307, %v2380
        %v2393 = vsub.f32 %v2308, %v2385
        %v2394 = vsub.f32 %v2309, %v2385
        %v2395 = vmul.f32 %v2387, %v2387
        %v2396 = vmul.f32 %v2388, %v2388
        %v2397 = vmul.f32 %v2389, %v2389
        %v2398 = vmul.f32 %v2390, %v2390
        %v2399 = vmul.f32 %v2391, %v2391
        %v2400 = vmul.f32 %v2392, %v2392
        %v2401 = vmul.f32 %v2393, %v2393
        %v2402 = vmul.f32 %v2394, %v2394
        %v2403 = vpack.c.bf16 %v2397, %v2395
        %v2404 = vpack.c.bf16 %v2398, %v2396
        %v2405 = vpack.c.bf16 %v2401, %v2399
        %v2406 = vpack.c.bf16 %v2402, %v2400
        %2407 = vmatprep.subr.bf16.mxu0 0
        %2408 = vmatpush1.bf16.msra.mxu0 1065369472
        %2409 = vmatprep.subr.bf16.mxu0 0
        %2410 = vmatpush1.bf16.msra.mxu0 1065369472
        %2411 = vmatprep.subr.bf16.mxu0 0
        %2412 = vmatpush1.bf16.msra.mxu0 1065369472
        %2413 = vmatprep.subr.bf16.mxu0 0
        %2414 = vmatpush1.bf16.msra.mxu0 1065369472
        %2415 = vmatprep.subr.bf16.mxu0 0
        %2416 = vmatpush1.bf16.msra.mxu0 1065369472
        %2417 = vmatprep.subr.bf16.mxu0 0
        %2418 = vmatpush1.bf16.msra.mxu0 1065369472
        %2419 = vmatprep.subr.bf16.mxu0 0
        %2420 = vmatpush1.bf16.msra.mxu0 1065369472
        %2421 = vmatprep.subr.bf16.mxu0 0
        %2422 = vmatpush1.bf16.msra.mxu0 1065369472
        %2423 = vmatprep.subr.bf16.mxu0 0
        %2424 = vmatpush1.bf16.msra.mxu0 1065369472
        %2425 = vmatprep.subr.bf16.mxu0 0
        %2426 = vmatpush1.bf16.msra.mxu0 1065369472
        %2427 = vmatprep.subr.bf16.mxu0 0
        %2428 = vmatpush1.bf16.msra.mxu0 1065369472
        %2429 = vmatprep.subr.bf16.mxu0 0
        %2430 = vmatpush1.bf16.msra.mxu0 1065369472
        %2431 = vmatprep.subr.bf16.mxu0 0
        %2432 = vmatpush1.bf16.msra.mxu0 1065369472
        %2433 = vmatprep.subr.bf16.mxu0 0
        %2434 = vmatpush1.bf16.msra.mxu0 1065369472
        %2435 = vmatprep.subr.bf16.mxu0 0
        %2436 = vmatpush1.bf16.msra.mxu0 1065369472
        %2437 = vmatprep.subr.bf16.mxu0 0
        %2438 = vmatpush1.bf16.msra.mxu0 1065369472
        %2439 = vmatprep.mubr.bf16.mxu0 %v2404
        %2440 = vmatmul.mubr.bf16.gmra.mrb[0].mxu0 %v2403
        %v2441 = vpop.f32.mrb[0].mxu0
        %v2442 = vadd.f32 0.0, %v2441
        %v2443 = vpop.f32.mrb[0].mxu0
        %v2444 = vpop.f32.mrb[0].mxu0
        %v2445 = vadd.f32 0.0, %v2444
        %v2446 = vpop.f32.mrb[0].mxu0
        %2447 = vmatprep.mubr.bf16.mxu0 %v2406
        %2448 = vmatmul.mubr.bf16.gmra.mrb[0].mxu0 %v2405
        %v2449 = vpop.f32.mrb[0].mxu0
        %v2450 = vadd.f32 0.0, %v2449
        %v2451 = vpop.f32.mrb[0].mxu0
        %v2452 = vpop.f32.mrb[0].mxu0
        %v2453 = vadd.f32 0.0, %v2452
        %v2454 = vpop.f32.mrb[0].mxu0
        %2455 = vdwg.mxu0
        %v2456 = vmul.f32 %v2442, 0.00390625
        %v2457 = vmul.f32 %v2445, 0.00390625
        %v2458 = vmul.f32 %v2450, 0.00390625
        %v2459 = vmul.f32 %v2453, 0.00390625
        %v2460 = vadd.f32 %v2456, 1e-05
        %v2461 = vadd.f32 %v2457, 1e-05
        %v2462 = vadd.f32 %v2458, 1e-05
        %v2463 = vadd.f32 %v2459, 1e-05
        %v2464 = vrsqrt.pop %v2460
        %v2465 = vrsqrt.pop %v2461
        %v2466 = vrsqrt.pop %v2462
        %v2467 = vrsqrt.pop %v2463
        %v2468 = vmul.f32 %v2464, %v1066
        %v2469 = vmul.f32 %v2465, %v1068
        %v2470 = vmul.f32 %v2466, %v1070
        %v2471 = vmul.f32 %v2467, %v1072
        %2476 = vrot.lane.b32.xlu0 %v2468, 4
        %v2477 = vpop.permute.xlu0 %2476
        %2478 = vrot.lane.b32.xlu0 %v2469, 4
        %v2479 = vpop.permute.xlu0 %2478
        %2480 = vrot.lane.b32.xlu0 %v2470, 4
        %v2481 = vpop.permute.xlu0 %2480
        %2482 = vrot.lane.b32.xlu0 %v2471, 4
        %v2483 = vpop.permute.xlu0 %2482
        %v2488 = vsub.f32 %v341, %v2477
        %v2489 = vsub.f32 %v342, %v2479
        %v2490 = vsub.f32 %v343, %v2481
        %v2491 = vsub.f32 %v344, %v2483
        %2496 = vrot.lane.b32.xlu0 %v2488, 124
        %v2497 = vpop.permute.xlu0 %2496
        %2498 = vrot.lane.b32.xlu0 %v2489, 124
        %v2499 = vpop.permute.xlu0 %2498
        %2500 = vrot.lane.b32.xlu0 %v2490, 124
        %v2501 = vpop.permute.xlu0 %2500
        %2502 = vrot.lane.b32.xlu0 %v2491, 124
        %v2503 = vpop.permute.xlu0 %2502
        %v2508 = vmul.f32 %v2363, %v2497
        %v2509 = vmul.f32 %v2364, %v2499
        %v2510 = vmul.f32 %v2365, %v2501
        %v2511 = vmul.f32 %v2366, %v2503
        %2516 = vrot.lane.b32.xlu0 %v2508, 3
        %v2517 = vpop.permute.xlu0 %2516
        %2518 = vrot.lane.b32.xlu0 %v2509, 3
        %v2519 = vpop.permute.xlu0 %2518
        %2520 = vrot.lane.b32.xlu0 %v2510, 3
        %v2521 = vpop.permute.xlu0 %2520
        %2522 = vrot.lane.b32.xlu0 %v2511, 3
        %v2523 = vpop.permute.xlu0 %2522
        %v2528 = vadd.f32 %v341, %v2517
        %v2529 = vadd.f32 %v342, %v2519
        %v2530 = vadd.f32 %v343, %v2521
        %v2531 = vadd.f32 %v344, %v2523
        %2532 = vset.pattern.permute.xlu0 0
        %2533 = vperm.xlu0 %2532, %v2468
        %v2534 = vpop.permute.xlu0 %2533
        %2536 = vset.pattern.permute.xlu0 0
        %2537 = vperm.xlu0 %2536, %v2469
        %v2538 = vpop.permute.xlu0 %2537
        %2540 = vset.pattern.permute.xlu0 0
        %2541 = vperm.xlu0 %2540, %v2470
        %v2542 = vpop.permute.xlu0 %2541
        %2544 = vset.pattern.permute.xlu0 0
        %2545 = vperm.xlu0 %2544, %v2471
        %v2546 = vpop.permute.xlu0 %2545
        %v2548 = vmul.f32 %v2302, %v2534
        %v2549 = vmul.f32 %v2303, %v2534
        %v2550 = vmul.f32 %v2304, %v2538
        %v2551 = vmul.f32 %v2305, %v2538
        %v2552 = vmul.f32 %v2306, %v2542
        %v2553 = vmul.f32 %v2307, %v2542
        %v2554 = vmul.f32 %v2308, %v2546
        %v2555 = vmul.f32 %v2309, %v2546
        %2557 = vset.pattern.permute.xlu0 3
        %2558 = vperm.xlu0 %2557, %v2528
        %v2559 = vpop.permute.xlu0 %2558
        %2562 = vset.pattern.permute.xlu0 3
        %2563 = vperm.xlu0 %2562, %v2529
        %v2564 = vpop.permute.xlu0 %2563
        %2567 = vset.pattern.permute.xlu0 3
        %2568 = vperm.xlu0 %2567, %v2530
        %v2569 = vpop.permute.xlu0 %2568
        %2572 = vset.pattern.permute.xlu0 3
        %2573 = vperm.xlu0 %2572, %v2531
        %v2574 = vpop.permute.xlu0 %2573
        %v2576 = vadd.f32 %v2548, %v2559
        %v2577 = vadd.f32 %v2549, %v2559
        %v2578 = vadd.f32 %v2550, %v2564
        %v2579 = vadd.f32 %v2551, %v2564
        %v2580 = vadd.f32 %v2552, %v2569
        %v2581 = vadd.f32 %v2553, %v2569
        %v2582 = vadd.f32 %v2554, %v2574
        %v2583 = vadd.f32 %v2555, %v2574
        %v2584 = vpack.c.bf16 %v2578, %v2576
        %v2585 = vpack.c.bf16 %v2579, %v2577
        %v2586 = vpack.c.bf16 %v2582, %v2580
        %v2587 = vpack.c.bf16 %v2583, %v2581
        %2588 = vmatprep.subr.bf16.mxu0 %v2585
        %2589 = vmatpush1.bf16.msra.mxu0 %v2584
        %2590 = vmatprep.subr.bf16.mxu0 %v2587
        %2591 = vmatpush1.bf16.msra.mxu0 %v2586
        %2592 = vmatprep.subr.bf16.mxu0 0
        %2593 = vmatpush1.bf16.msra.mxu0 0
        %2594 = vmatprep.subr.bf16.mxu0 0
        %2595 = vmatpush1.bf16.msra.mxu0 0
        %2596 = vmatprep.subr.bf16.mxu0 0
        %2597 = vmatpush1.bf16.msra.mxu0 0
        %2598 = vmatprep.subr.bf16.mxu0 0
        %2599 = vmatpush1.bf16.msra.mxu0 0
        %2600 = vmatprep.subr.bf16.mxu0 0
        %2601 = vmatpush1.bf16.msra.mxu0 0
        %2602 = vmatprep.subr.bf16.mxu0 0
        %2603 = vmatpush1.bf16.msra.mxu0 0
        %2604 = vmatprep.subr.bf16.mxu0 0
        %2605 = vmatpush1.bf16.msra.mxu0 0
        %2606 = vmatprep.subr.bf16.mxu0 0
        %2607 = vmatpush1.bf16.msra.mxu0 0
        %2608 = vmatprep.subr.bf16.mxu0 0
        %2609 = vmatpush1.bf16.msra.mxu0 0
        %2610 = vmatprep.subr.bf16.mxu0 0
        %2611 = vmatpush1.bf16.msra.mxu0 0
        %2612 = vmatprep.subr.bf16.mxu0 0
        %2613 = vmatpush1.bf16.msra.mxu0 0
        %2614 = vmatprep.subr.bf16.mxu0 0
        %2615 = vmatpush1.bf16.msra.mxu0 0
        %2616 = vmatprep.subr.bf16.mxu0 0
        %2617 = vmatpush1.bf16.msra.mxu0 0
        %2618 = vmatprep.subr.bf16.mxu0 0
        %2619 = vmatpush1.bf16.msra.mxu0 0
        %2620 = vmatprep.mubr.bf16.mxu0 0
        %2621 = vmatmul.mubr.bf16.gmra.mrb[0].mxu0 %v1224
        %v2622 = vpop.f32.mrb[0].mxu0
        %v2623 = vadd.f32 %v1199, %v2622
        %v2624 = vpop.f32.mrb[0].mxu0
        %v2625 = vadd.f32 %v1199, %v2624
        %v2626 = vpop.f32.mrb[0].mxu0
        %v2627 = vadd.f32 %v1203, %v2626
        %v2628 = vpop.f32.mrb[0].mxu0
        %v2629 = vadd.f32 %v1203, %v2628
        %2630 = vmatprep.mubr.bf16.mxu0 0
        %2631 = vmatmul.mubr.bf16.gmra.mrb[0].mxu0 %v1227
        %v2632 = vpop.f32.mrb[0].mxu0
        %v2633 = vadd.f32 %v1207, %v2632
        %v2634 = vpop.f32.mrb[0].mxu0
        %v2635 = vadd.f32 %v1207, %v2634
        %v2636 = vpop.f32.mrb[0].mxu0
        %v2637 = vadd.f32 %v1211, %v2636
        %v2638 = vpop.f32.mrb[0].mxu0
        %v2639 = vadd.f32 %v1211, %v2638
        %2640 = vdwg.mxu0
        %v2641 = vxor.u32 %v2623, 2147483648
        %v2642 = vxor.u32 %v2625, 2147483648
        %v2643 = vxor.u32 %v2627, 2147483648
        %v2644 = vxor.u32 %v2629, 2147483648
        %v2645 = vxor.u32 %v2633, 2147483648
        %v2646 = vxor.u32 %v2635, 2147483648
        %v2647 = vxor.u32 %v2637, 2147483648
        %v2648 = vxor.u32 %v2639, 2147483648
        %v2649 = vmul.f32 %v2641, 1.442695
        %v2650 = vpow.pop %v2649
        %v2651 = vmul.f32 %v2642, 1.442695
        %v2652 = vpow.pop %v2651
        %v2653 = vmul.f32 %v2643, 1.442695
        %v2654 = vpow.pop %v2653
        %v2655 = vmul.f32 %v2644, 1.442695
        %v2656 = vpow.pop %v2655
        %v2657 = vmul.f32 %v2645, 1.442695
        %v2658 = vpow.pop %v2657
        %v2659 = vmul.f32 %v2646, 1.442695
        %v2660 = vpow.pop %v2659
        %v2661 = vmul.f32 %v2647, 1.442695
        %v2662 = vpow.pop %v2661
        %v2663 = vmul.f32 %v2648, 1.442695
        %v2664 = vpow.pop %v2663
        %v2665 = vadd.f32 %v2650, 1.0
        %v2666 = vadd.f32 %v2652, 1.0
        %v2667 = vadd.f32 %v2654, 1.0
        %v2668 = vadd.f32 %v2656, 1.0
        %v2669 = vadd.f32 %v2658, 1.0
        %v2670 = vadd.f32 %v2660, 1.0
        %v2671 = vadd.f32 %v2662, 1.0
        %v2672 = vadd.f32 %v2664, 1.0
        %v2673 = vrcp.pop %v2665
        %v2674 = vmul.f32 1.0, %v2673
        %v2675 = vrcp.pop %v2666
        %v2676 = vmul.f32 1.0, %v2675
        %v2677 = vrcp.pop %v2667
        %v2678 = vmul.f32 1.0, %v2677
        %v2679 = vrcp.pop %v2668
        %v2680 = vmul.f32 1.0, %v2679
        %v2681 = vrcp.pop %v2669
        %v2682 = vmul.f32 1.0, %v2681
        %v2683 = vrcp.pop %v2670
        %v2684 = vmul.f32 1.0, %v2683
        %v2685 = vrcp.pop %v2671
        %v2686 = vmul.f32 1.0, %v2685
        %v2687 = vrcp.pop %v2672
        %v2688 = vmul.f32 1.0, %v2687
        %v2689 = vmul.f32 %v2302, %v2674
        %v2690 = vmul.f32 %v2303, %v2676
        %v2691 = vmul.f32 %v2304, %v2678
        %v2692 = vmul.f32 %v2305, %v2680
        %v2693 = vmul.f32 %v2306, %v2682
        %v2694 = vmul.f32 %v2307, %v2684
        %v2695 = vmul.f32 %v2308, %v2686
        %v2696 = vmul.f32 %v2309, %v2688
        %v2697 = vpack.c.bf16 %v2691, %v2689
        %v2698 = vpack.c.bf16 %v2692, %v2690
        %v2699 = vpack.c.bf16 %v2695, %v2693
        %v2700 = vpack.c.bf16 %v2696, %v2694
        %2701 = vmatprep.subr.bf16.mxu0 %v2698
        %2702 = vmatpush1.bf16.msra.mxu0 %v2697
        %2703 = vmatprep.subr.bf16.mxu0 %v2700
        %2704 = vmatpush1.bf16.msra.mxu0 %v2699
        %2705 = vmatprep.subr.bf16.mxu0 0
        %2706 = vmatpush1.bf16.msra.mxu0 0
        %2707 = vmatprep.subr.bf16.mxu0 0
        %2708 = vmatpush1.bf16.msra.mxu0 0
        %2709 = vmatprep.subr.bf16.mxu0 0
        %2710 = vmatpush1.bf16.msra.mxu0 0
        %2711 = vmatprep.subr.bf16.mxu0 0
        %2712 = vmatpush1.bf16.msra.mxu0 0
        %2713 = vmatprep.subr.bf16.mxu0 0
        %2714 = vmatpush1.bf16.msra.mxu0 0
        %2715 = vmatprep.subr.bf16.mxu0 0
        %2716 = vmatpush1.bf16.msra.mxu0 0
        %2717 = vmatprep.subr.bf16.mxu0 0
        %2718 = vmatpush1.bf16.msra.mxu0 0
        %2719 = vmatprep.subr.bf16.mxu0 0
        %2720 = vmatpush1.bf16.msra.mxu0 0
        %2721 = vmatprep.subr.bf16.mxu0 0
        %2722 = vmatpush1.bf16.msra.mxu0 0
        %2723 = vmatprep.subr.bf16.mxu0 0
        %2724 = vmatpush1.bf16.msra.mxu0 0
        %2725 = vmatprep.subr.bf16.mxu0 0
        %2726 = vmatpush1.bf16.msra.mxu0 0
        %2727 = vmatprep.subr.bf16.mxu0 0
        %2728 = vmatpush1.bf16.msra.mxu0 0
        %2729 = vmatprep.subr.bf16.mxu0 0
        %2730 = vmatpush1.bf16.msra.mxu0 0
        %2731 = vmatprep.subr.bf16.mxu0 0
        %2732 = vmatpush1.bf16.msra.mxu0 0
        %2733 = vmatprep.mubr.bf16.mxu0 0
        %2734 = vmatmul.mubr.bf16.gmra.mrb[0].mxu0 %v1353
        %v2735 = vpop.f32.mrb[0].mxu0
        %v2736 = vadd.f32 0.0, %v2735
        %v2737 = vpop.f32.mrb[0].mxu0
        %v2738 = vadd.f32 0.0, %v2737
        %v2739 = vpop.f32.mrb[0].mxu0
        %v2740 = vadd.f32 0.0, %v2739
        %v2741 = vpop.f32.mrb[0].mxu0
        %v2742 = vadd.f32 0.0, %v2741
        %2743 = vmatprep.mubr.bf16.mxu0 0
        %2744 = vmatmul.mubr.bf16.gmra.mrb[0].mxu0 %v1356
        %v2745 = vpop.f32.mrb[0].mxu0
        %v2746 = vadd.f32 0.0, %v2745
        %v2747 = vpop.f32.mrb[0].mxu0
        %v2748 = vadd.f32 0.0, %v2747
        %v2749 = vpop.f32.mrb[0].mxu0
        %v2750 = vadd.f32 0.0, %v2749
        %v2751 = vpop.f32.mrb[0].mxu0
        %v2752 = vadd.f32 0.0, %v2751
        %2753 = vdwg.mxu0
        %v2754 = vpack.c.bf16 %v2740, %v2736
        %v2755 = vpack.c.bf16 %v2742, %v2738
        %v2756 = vpack.c.bf16 %v2750, %v2746
        %v2757 = vpack.c.bf16 %v2752, %v2748
        %2758 = vmatprep.subr.bf16.mxu0 0
        %2759 = vmatpush1.bf16.msra.mxu0 1065369472
        %2760 = vmatprep.subr.bf16.mxu0 0
        %2761 = vmatpush1.bf16.msra.mxu0 1065369472
        %2762 = vmatprep.subr.bf16.mxu0 0
        %2763 = vmatpush1.bf16.msra.mxu0 1065369472
        %2764 = vmatprep.subr.bf16.mxu0 0
        %2765 = vmatpush1.bf16.msra.mxu0 1065369472
        %2766 = vmatprep.subr.bf16.mxu0 0
        %2767 = vmatpush1.bf16.msra.mxu0 1065369472
        %2768 = vmatprep.subr.bf16.mxu0 0
        %2769 = vmatpush1.bf16.msra.mxu0 1065369472
        %2770 = vmatprep.subr.bf16.mxu0 0
        %2771 = vmatpush1.bf16.msra.mxu0 1065369472
        %2772 = vmatprep.subr.bf16.mxu0 0
        %2773 = vmatpush1.bf16.msra.mxu0 1065369472
        %2774 = vmatprep.subr.bf16.mxu0 0
        %2775 = vmatpush1.bf16.msra.mxu0 1065369472
        %2776 = vmatprep.subr.bf16.mxu0 0
        %2777 = vmatpush1.bf16.msra.mxu0 1065369472
        %2778 = vmatprep.subr.bf16.mxu0 0
        %2779 = vmatpush1.bf16.msra.mxu0 1065369472
        %2780 = vmatprep.subr.bf16.mxu0 0
        %2781 = vmatpush1.bf16.msra.mxu0 1065369472
        %2782 = vmatprep.subr.bf16.mxu0 0
        %2783 = vmatpush1.bf16.msra.mxu0 1065369472
        %2784 = vmatprep.subr.bf16.mxu0 0
        %2785 = vmatpush1.bf16.msra.mxu0 1065369472
        %2786 = vmatprep.subr.bf16.mxu0 0
        %2787 = vmatpush1.bf16.msra.mxu0 1065369472
        %2788 = vmatprep.subr.bf16.mxu0 0
        %2789 = vmatpush1.bf16.msra.mxu0 1065369472
        %2790 = vmatprep.mubr.bf16.mxu0 %v2755
        %2791 = vmatmul.mubr.bf16.gmra.mrb[0].mxu0 %v2754
        %v2792 = vpop.f32.mrb[0].mxu0
        %v2793 = vadd.f32 0.0, %v2792
        %v2794 = vpop.f32.mrb[0].mxu0
        %v2795 = vpop.f32.mrb[0].mxu0
        %v2796 = vadd.f32 0.0, %v2795
        %v2797 = vpop.f32.mrb[0].mxu0
        %2798 = vmatprep.mubr.bf16.mxu0 %v2757
        %2799 = vmatmul.mubr.bf16.gmra.mrb[0].mxu0 %v2756
        %v2800 = vpop.f32.mrb[0].mxu0
        %v2801 = vadd.f32 0.0, %v2800
        %v2802 = vpop.f32.mrb[0].mxu0
        %v2803 = vpop.f32.mrb[0].mxu0
        %v2804 = vadd.f32 0.0, %v2803
        %v2805 = vpop.f32.mrb[0].mxu0
        %2806 = vdwg.mxu0
        %v2807 = vmul.f32 %v2793, 0.00390625
        %v2808 = vmul.f32 %v2796, 0.00390625
        %v2809 = vmul.f32 %v2801, 0.00390625
        %v2810 = vmul.f32 %v2804, 0.00390625
        %2812 = vset.pattern.permute.xlu0 0
        %2813 = vperm.xlu0 %2812, %v2807
        %v2814 = vpop.permute.xlu0 %2813
        %2817 = vset.pattern.permute.xlu0 0
        %2818 = vperm.xlu0 %2817, %v2808
        %v2819 = vpop.permute.xlu0 %2818
        %2822 = vset.pattern.permute.xlu0 0
        %2823 = vperm.xlu0 %2822, %v2809
        %v2824 = vpop.permute.xlu0 %2823
        %2827 = vset.pattern.permute.xlu0 0
        %2828 = vperm.xlu0 %2827, %v2810
        %v2829 = vpop.permute.xlu0 %2828
        %v2831 = vsub.f32 %v2736, %v2814
        %v2832 = vsub.f32 %v2738, %v2814
        %v2833 = vsub.f32 %v2740, %v2819
        %v2834 = vsub.f32 %v2742, %v2819
        %v2835 = vsub.f32 %v2746, %v2824
        %v2836 = vsub.f32 %v2748, %v2824
        %v2837 = vsub.f32 %v2750, %v2829
        %v2838 = vsub.f32 %v2752, %v2829
        %v2839 = vmul.f32 %v2831, %v2831
        %v2840 = vmul.f32 %v2832, %v2832
        %v2841 = vmul.f32 %v2833, %v2833
        %v2842 = vmul.f32 %v2834, %v2834
        %v2843 = vmul.f32 %v2835, %v2835
        %v2844 = vmul.f32 %v2836, %v2836
        %v2845 = vmul.f32 %v2837, %v2837
        %v2846 = vmul.f32 %v2838, %v2838
        %v2847 = vpack.c.bf16 %v2841, %v2839
        %v2848 = vpack.c.bf16 %v2842, %v2840
        %v2849 = vpack.c.bf16 %v2845, %v2843
        %v2850 = vpack.c.bf16 %v2846, %v2844
        %2851 = vmatprep.subr.bf16.mxu0 0
        %2852 = vmatpush1.bf16.msra.mxu0 1065369472
        %2853 = vmatprep.subr.bf16.mxu0 0
        %2854 = vmatpush1.bf16.msra.mxu0 1065369472
        %2855 = vmatprep.subr.bf16.mxu0 0
        %2856 = vmatpush1.bf16.msra.mxu0 1065369472
        %2857 = vmatprep.subr.bf16.mxu0 0
        %2858 = vmatpush1.bf16.msra.mxu0 1065369472
        %2859 = vmatprep.subr.bf16.mxu0 0
        %2860 = vmatpush1.bf16.msra.mxu0 1065369472
        %2861 = vmatprep.subr.bf16.mxu0 0
        %2862 = vmatpush1.bf16.msra.mxu0 1065369472
        %2863 = vmatprep.subr.bf16.mxu0 0
        %2864 = vmatpush1.bf16.msra.mxu0 1065369472
        %2865 = vmatprep.subr.bf16.mxu0 0
        %2866 = vmatpush1.bf16.msra.mxu0 1065369472
        %2867 = vmatprep.subr.bf16.mxu0 0
        %2868 = vmatpush1.bf16.msra.mxu0 1065369472
        %2869 = vmatprep.subr.bf16.mxu0 0
        %2870 = vmatpush1.bf16.msra.mxu0 1065369472
        %2871 = vmatprep.subr.bf16.mxu0 0
        %2872 = vmatpush1.bf16.msra.mxu0 1065369472
        %2873 = vmatprep.subr.bf16.mxu0 0
        %2874 = vmatpush1.bf16.msra.mxu0 1065369472
        %2875 = vmatprep.subr.bf16.mxu0 0
        %2876 = vmatpush1.bf16.msra.mxu0 1065369472
        %2877 = vmatprep.subr.bf16.mxu0 0
        %2878 = vmatpush1.bf16.msra.mxu0 1065369472
        %2879 = vmatprep.subr.bf16.mxu0 0
        %2880 = vmatpush1.bf16.msra.mxu0 1065369472
        %2881 = vmatprep.subr.bf16.mxu0 0
        %2882 = vmatpush1.bf16.msra.mxu0 1065369472
        %2883 = vmatprep.mubr.bf16.mxu0 %v2848
        %2884 = vmatmul.mubr.bf16.gmra.mrb[0].mxu0 %v2847
        %v2885 = vpop.f32.mrb[0].mxu0
        %v2886 = vadd.f32 0.0, %v2885
        %v2887 = vpop.f32.mrb[0].mxu0
        %v2888 = vpop.f32.mrb[0].mxu0
        %v2889 = vadd.f32 0.0, %v2888
        %v2890 = vpop.f32.mrb[0].mxu0
        %2891 = vmatprep.mubr.bf16.mxu0 %v2850
        %2892 = vmatmul.mubr.bf16.gmra.mrb[0].mxu0 %v2849
        %v2893 = vpop.f32.mrb[0].mxu0
        %v2894 = vadd.f32 0.0, %v2893
        %v2895 = vpop.f32.mrb[0].mxu0
        %v2896 = vpop.f32.mrb[0].mxu0
        %v2897 = vadd.f32 0.0, %v2896
        %v2898 = vpop.f32.mrb[0].mxu0
        %2899 = vdwg.mxu0
        %v2900 = vmul.f32 %v2886, 0.00390625
        %v2901 = vmul.f32 %v2889, 0.00390625
        %v2902 = vmul.f32 %v2894, 0.00390625
        %v2903 = vmul.f32 %v2897, 0.00390625
        %v2904 = vadd.f32 %v2900, 1e-05
        %v2905 = vadd.f32 %v2901, 1e-05
        %v2906 = vadd.f32 %v2902, 1e-05
        %v2907 = vadd.f32 %v2903, 1e-05
        %v2908 = vrsqrt.pop %v2904
        %v2909 = vrsqrt.pop %v2905
        %v2910 = vrsqrt.pop %v2906
        %v2911 = vrsqrt.pop %v2907
        %2913 = vset.pattern.permute.xlu0 0
        %2914 = vperm.xlu0 %2913, %v2908
        %v2915 = vpop.permute.xlu0 %2914
        %2918 = vset.pattern.permute.xlu0 0
        %2919 = vperm.xlu0 %2918, %v2909
        %v2920 = vpop.permute.xlu0 %2919
        %2923 = vset.pattern.permute.xlu0 0
        %2924 = vperm.xlu0 %2923, %v2910
        %v2925 = vpop.permute.xlu0 %2924
        %2928 = vset.pattern.permute.xlu0 0
        %2929 = vperm.xlu0 %2928, %v2911
        %v2930 = vpop.permute.xlu0 %2929
        %v2932 = vmul.f32 %v2831, %v2915
        %v2933 = vmul.f32 %v2832, %v2915
        %v2934 = vmul.f32 %v2833, %v2920
        %v2935 = vmul.f32 %v2834, %v2920
        %v2936 = vmul.f32 %v2835, %v2925
        %v2937 = vmul.f32 %v2836, %v2925
        %v2938 = vmul.f32 %v2837, %v2930
        %v2939 = vmul.f32 %v2838, %v2930
        %v2940 = vmul.f32 %v2932, %v1599
        %v2941 = vmul.f32 %v2933, %v1599
        %v2942 = vmul.f32 %v2934, %v1603
        %v2943 = vmul.f32 %v2935, %v1603
        %v2944 = vmul.f32 %v2936, %v1607
        %v2945 = vmul.f32 %v2937, %v1607
        %v2946 = vmul.f32 %v2938, %v1611
        %v2947 = vmul.f32 %v2939, %v1611
        %v2948 = vadd.f32 %v2940, %v1623
        %v2949 = vadd.f32 %v2941, %v1623
        %v2950 = vadd.f32 %v2942, %v1627
        %v2951 = vadd.f32 %v2943, %v1627
        %v2952 = vadd.f32 %v2944, %v1631
        %v2953 = vadd.f32 %v2945, %v1631
        %v2954 = vadd.f32 %v2946, %v1635
        %v2955 = vadd.f32 %v2947, %v1635
        %v2956 = vmax.f32 %v2948, 0.0
        %v2957 = vmax.f32 %v2949, 0.0
        %v2958 = vmax.f32 %v2950, 0.0
        %v2959 = vmax.f32 %v2951, 0.0
        %v2960 = vmax.f32 %v2952, 0.0
        %v2961 = vmax.f32 %v2953, 0.0
        %v2962 = vmax.f32 %v2954, 0.0
        %v2963 = vmax.f32 %v2955, 0.0
        %v2964 = vpack.c.bf16 %v2958, %v2956
        %v2965 = vpack.c.bf16 %v2959, %v2957
        %v2966 = vpack.c.bf16 %v2962, %v2960
        %v2967 = vpack.c.bf16 %v2963, %v2961
        %2968 = vmatprep.subr.bf16.mxu0 %v2965
        %2969 = vmatpush1.bf16.msra.mxu0 %v2964
        %2970 = vmatprep.subr.bf16.mxu0 %v2967
        %2971 = vmatpush1.bf16.msra.mxu0 %v2966
        %2972 = vmatprep.subr.bf16.mxu0 0
        %2973 = vmatpush1.bf16.msra.mxu0 0
        %2974 = vmatprep.subr.bf16.mxu0 0
        %2975 = vmatpush1.bf16.msra.mxu0 0
        %2976 = vmatprep.subr.bf16.mxu0 0
        %2977 = vmatpush1.bf16.msra.mxu0 0
        %2978 = vmatprep.subr.bf16.mxu0 0
        %2979 = vmatpush1.bf16.msra.mxu0 0
        %2980 = vmatprep.subr.bf16.mxu0 0
        %2981 = vmatpush1.bf16.msra.mxu0 0
        %2982 = vmatprep.subr.bf16.mxu0 0
        %2983 = vmatpush1.bf16.msra.mxu0 0
        %2984 = vmatprep.subr.bf16.mxu0 0
        %2985 = vmatpush1.bf16.msra.mxu0 0
        %2986 = vmatprep.subr.bf16.mxu0 0
        %2987 = vmatpush1.bf16.msra.mxu0 0
        %2988 = vmatprep.subr.bf16.mxu0 0
        %2989 = vmatpush1.bf16.msra.mxu0 0
        %2990 = vmatprep.subr.bf16.mxu0 0
        %2991 = vmatpush1.bf16.msra.mxu0 0
        %2992 = vmatprep.subr.bf16.mxu0 0
        %2993 = vmatpush1.bf16.msra.mxu0 0
        %2994 = vmatprep.subr.bf16.mxu0 0
        %2995 = vmatpush1.bf16.msra.mxu0 0
        %2996 = vmatprep.subr.bf16.mxu0 0
        %2997 = vmatpush1.bf16.msra.mxu0 0
        %2998 = vmatprep.subr.bf16.mxu0 0
        %2999 = vmatpush1.bf16.msra.mxu0 0
        %3000 = vmatprep.mubr.bf16.mxu0 0
        %3001 = vmatmul.mubr.bf16.gmra.mrb[0].mxu0 %v1668
        %v3002 = vpop.f32.mrb[0].mxu0
        %v3003 = vadd.f32 0.0, %v3002
        %v3004 = vpop.f32.mrb[0].mxu0
        %v3005 = vadd.f32 0.0, %v3004
        %v3006 = vpop.f32.mrb[0].mxu0
        %v3007 = vadd.f32 0.0, %v3006
        %v3008 = vpop.f32.mrb[0].mxu0
        %v3009 = vadd.f32 0.0, %v3008
        %3010 = vmatprep.mubr.bf16.mxu0 0
        %3011 = vmatmul.mubr.bf16.gmra.mrb[0].mxu0 %v1671
        %v3012 = vpop.f32.mrb[0].mxu0
        %v3013 = vadd.f32 0.0, %v3012
        %v3014 = vpop.f32.mrb[0].mxu0
        %v3015 = vadd.f32 0.0, %v3014
        %v3016 = vpop.f32.mrb[0].mxu0
        %v3017 = vadd.f32 0.0, %v3016
        %v3018 = vpop.f32.mrb[0].mxu0
        %v3019 = vadd.f32 0.0, %v3018
        %3020 = vdwg.mxu0
        %v3021 = vpack.c.bf16 %v3007, %v3003
        %v3022 = vpack.c.bf16 %v3009, %v3005
        %v3023 = vpack.c.bf16 %v3017, %v3013
        %v3024 = vpack.c.bf16 %v3019, %v3015
        %3025 = vmatprep.subr.bf16.mxu0 0
        %3026 = vmatpush1.bf16.msra.mxu0 1065369472
        %3027 = vmatprep.subr.bf16.mxu0 0
        %3028 = vmatpush1.bf16.msra.mxu0 1065369472
        %3029 = vmatprep.subr.bf16.mxu0 0
        %3030 = vmatpush1.bf16.msra.mxu0 1065369472
        %3031 = vmatprep.subr.bf16.mxu0 0
        %3032 = vmatpush1.bf16.msra.mxu0 1065369472
        %3033 = vmatprep.subr.bf16.mxu0 0
        %3034 = vmatpush1.bf16.msra.mxu0 1065369472
        %3035 = vmatprep.subr.bf16.mxu0 0
        %3036 = vmatpush1.bf16.msra.mxu0 1065369472
        %3037 = vmatprep.subr.bf16.mxu0 0
        %3038 = vmatpush1.bf16.msra.mxu0 1065369472
        %3039 = vmatprep.subr.bf16.mxu0 0
        %3040 = vmatpush1.bf16.msra.mxu0 1065369472
        %3041 = vmatprep.subr.bf16.mxu0 0
        %3042 = vmatpush1.bf16.msra.mxu0 1065369472
        %3043 = vmatprep.subr.bf16.mxu0 0
        %3044 = vmatpush1.bf16.msra.mxu0 1065369472
        %3045 = vmatprep.subr.bf16.mxu0 0
        %3046 = vmatpush1.bf16.msra.mxu0 1065369472
        %3047 = vmatprep.subr.bf16.mxu0 0
        %3048 = vmatpush1.bf16.msra.mxu0 1065369472
        %3049 = vmatprep.subr.bf16.mxu0 0
        %3050 = vmatpush1.bf16.msra.mxu0 1065369472
        %3051 = vmatprep.subr.bf16.mxu0 0
        %3052 = vmatpush1.bf16.msra.mxu0 1065369472
        %3053 = vmatprep.subr.bf16.mxu0 0
        %3054 = vmatpush1.bf16.msra.mxu0 1065369472
        %3055 = vmatprep.subr.bf16.mxu0 0
        %3056 = vmatpush1.bf16.msra.mxu0 1065369472
        %3057 = vmatprep.mubr.bf16.mxu0 %v3022
        %3058 = vmatmul.mubr.bf16.gmra.mrb[0].mxu0 %v3021
        %v3059 = vpop.f32.mrb[0].mxu0
        %v3060 = vadd.f32 0.0, %v3059
        %v3061 = vpop.f32.mrb[0].mxu0
        %v3062 = vpop.f32.mrb[0].mxu0
        %v3063 = vadd.f32 0.0, %v3062
        %v3064 = vpop.f32.mrb[0].mxu0
        %3065 = vmatprep.mubr.bf16.mxu0 %v3024
        %3066 = vmatmul.mubr.bf16.gmra.mrb[0].mxu0 %v3023
        %v3067 = vpop.f32.mrb[0].mxu0
        %v3068 = vadd.f32 0.0, %v3067
        %v3069 = vpop.f32.mrb[0].mxu0
        %v3070 = vpop.f32.mrb[0].mxu0
        %v3071 = vadd.f32 0.0, %v3070
        %v3072 = vpop.f32.mrb[0].mxu0
        %3073 = vdwg.mxu0
        %v3074 = vmul.f32 %v3060, 0.00390625
        %v3075 = vmul.f32 %v3063, 0.00390625
        %v3076 = vmul.f32 %v3068, 0.00390625
        %v3077 = vmul.f32 %v3071, 0.00390625
        %3079 = vset.pattern.permute.xlu0 0
        %3080 = vperm.xlu0 %3079, %v3074
        %v3081 = vpop.permute.xlu0 %3080
        %3084 = vset.pattern.permute.xlu0 0
        %3085 = vperm.xlu0 %3084, %v3075
        %v3086 = vpop.permute.xlu0 %3085
        %3089 = vset.pattern.permute.xlu0 0
        %3090 = vperm.xlu0 %3089, %v3076
        %v3091 = vpop.permute.xlu0 %3090
        %3094 = vset.pattern.permute.xlu0 0
        %3095 = vperm.xlu0 %3094, %v3077
        %v3096 = vpop.permute.xlu0 %3095
        %v3098 = vsub.f32 %v3003, %v3081
        %v3099 = vsub.f32 %v3005, %v3081
        %v3100 = vsub.f32 %v3007, %v3086
        %v3101 = vsub.f32 %v3009, %v3086
        %v3102 = vsub.f32 %v3013, %v3091
        %v3103 = vsub.f32 %v3015, %v3091
        %v3104 = vsub.f32 %v3017, %v3096
        %v3105 = vsub.f32 %v3019, %v3096
        %v3106 = vmul.f32 %v3098, %v3098
        %v3107 = vmul.f32 %v3099, %v3099
        %v3108 = vmul.f32 %v3100, %v3100
        %v3109 = vmul.f32 %v3101, %v3101
        %v3110 = vmul.f32 %v3102, %v3102
        %v3111 = vmul.f32 %v3103, %v3103
        %v3112 = vmul.f32 %v3104, %v3104
        %v3113 = vmul.f32 %v3105, %v3105
        %v3114 = vpack.c.bf16 %v3108, %v3106
        %v3115 = vpack.c.bf16 %v3109, %v3107
        %v3116 = vpack.c.bf16 %v3112, %v3110
        %v3117 = vpack.c.bf16 %v3113, %v3111
        %3118 = vmatprep.subr.bf16.mxu0 0
        %3119 = vmatpush1.bf16.msra.mxu0 1065369472
        %3120 = vmatprep.subr.bf16.mxu0 0
        %3121 = vmatpush1.bf16.msra.mxu0 1065369472
        %3122 = vmatprep.subr.bf16.mxu0 0
        %3123 = vmatpush1.bf16.msra.mxu0 1065369472
        %3124 = vmatprep.subr.bf16.mxu0 0
        %3125 = vmatpush1.bf16.msra.mxu0 1065369472
        %3126 = vmatprep.subr.bf16.mxu0 0
        %3127 = vmatpush1.bf16.msra.mxu0 1065369472
        %3128 = vmatprep.subr.bf16.mxu0 0
        %3129 = vmatpush1.bf16.msra.mxu0 1065369472
        %3130 = vmatprep.subr.bf16.mxu0 0
        %3131 = vmatpush1.bf16.msra.mxu0 1065369472
        %3132 = vmatprep.subr.bf16.mxu0 0
        %3133 = vmatpush1.bf16.msra.mxu0 1065369472
        %3134 = vmatprep.subr.bf16.mxu0 0
        %3135 = vmatpush1.bf16.msra.mxu0 1065369472
        %3136 = vmatprep.subr.bf16.mxu0 0
        %3137 = vmatpush1.bf16.msra.mxu0 1065369472
        %3138 = vmatprep.subr.bf16.mxu0 0
        %3139 = vmatpush1.bf16.msra.mxu0 1065369472
        %3140 = vmatprep.subr.bf16.mxu0 0
        %3141 = vmatpush1.bf16.msra.mxu0 1065369472
        %3142 = vmatprep.subr.bf16.mxu0 0
        %3143 = vmatpush1.bf16.msra.mxu0 1065369472
        %3144 = vmatprep.subr.bf16.mxu0 0
        %3145 = vmatpush1.bf16.msra.mxu0 1065369472
        %3146 = vmatprep.subr.bf16.mxu0 0
        %3147 = vmatpush1.bf16.msra.mxu0 1065369472
        %3148 = vmatprep.subr.bf16.mxu0 0
        %3149 = vmatpush1.bf16.msra.mxu0 1065369472
        %3150 = vmatprep.mubr.bf16.mxu0 %v3115
        %3151 = vmatmul.mubr.bf16.gmra.mrb[0].mxu0 %v3114
        %v3152 = vpop.f32.mrb[0].mxu0
        %v3153 = vadd.f32 0.0, %v3152
        %v3154 = vpop.f32.mrb[0].mxu0
        %v3155 = vpop.f32.mrb[0].mxu0
        %v3156 = vadd.f32 0.0, %v3155
        %v3157 = vpop.f32.mrb[0].mxu0
        %3158 = vmatprep.mubr.bf16.mxu0 %v3117
        %3159 = vmatmul.mubr.bf16.gmra.mrb[0].mxu0 %v3116
        %v3160 = vpop.f32.mrb[0].mxu0
        %v3161 = vadd.f32 0.0, %v3160
        %v3162 = vpop.f32.mrb[0].mxu0
        %v3163 = vpop.f32.mrb[0].mxu0
        %v3164 = vadd.f32 0.0, %v3163
        %v3165 = vpop.f32.mrb[0].mxu0
        %3166 = vdwg.mxu0
        %v3167 = vmul.f32 %v3153, 0.00390625
        %v3168 = vmul.f32 %v3156, 0.00390625
        %v3169 = vmul.f32 %v3161, 0.00390625
        %v3170 = vmul.f32 %v3164, 0.00390625
        %v3171 = vadd.f32 %v3167, 1e-05
        %v3172 = vadd.f32 %v3168, 1e-05
        %v3173 = vadd.f32 %v3169, 1e-05
        %v3174 = vadd.f32 %v3170, 1e-05
        %v3175 = vrsqrt.pop %v3171
        %v3176 = vrsqrt.pop %v3172
        %v3177 = vrsqrt.pop %v3173
        %v3178 = vrsqrt.pop %v3174
        %3180 = vset.pattern.permute.xlu0 0
        %3181 = vperm.xlu0 %3180, %v3175
        %v3182 = vpop.permute.xlu0 %3181
        %3185 = vset.pattern.permute.xlu0 0
        %3186 = vperm.xlu0 %3185, %v3176
        %v3187 = vpop.permute.xlu0 %3186
        %3190 = vset.pattern.permute.xlu0 0
        %3191 = vperm.xlu0 %3190, %v3177
        %v3192 = vpop.permute.xlu0 %3191
        %3195 = vset.pattern.permute.xlu0 0
        %3196 = vperm.xlu0 %3195, %v3178
        %v3197 = vpop.permute.xlu0 %3196
        %v3199 = vmul.f32 %v3098, %v3182
        %v3200 = vmul.f32 %v3099, %v3182
        %v3201 = vmul.f32 %v3100, %v3187
        %v3202 = vmul.f32 %v3101, %v3187
        %v3203 = vmul.f32 %v3102, %v3192
        %v3204 = vmul.f32 %v3103, %v3192
        %v3205 = vmul.f32 %v3104, %v3197
        %v3206 = vmul.f32 %v3105, %v3197
        %v3207 = vmul.f32 %v3199, %v1914
        %v3208 = vmul.f32 %v3200, %v1914
        %v3209 = vmul.f32 %v3201, %v1918
        %v3210 = vmul.f32 %v3202, %v1918
        %v3211 = vmul.f32 %v3203, %v1922
        %v3212 = vmul.f32 %v3204, %v1922
        %v3213 = vmul.f32 %v3205, %v1926
        %v3214 = vmul.f32 %v3206, %v1926
        %v3215 = vadd.f32 %v3207, %v1938
        %v3216 = vadd.f32 %v3208, %v1938
        %v3217 = vadd.f32 %v3209, %v1942
        %v3218 = vadd.f32 %v3210, %v1942
        %v3219 = vadd.f32 %v3211, %v1946
        %v3220 = vadd.f32 %v3212, %v1946
        %v3221 = vadd.f32 %v3213, %v1950
        %v3222 = vadd.f32 %v3214, %v1950
        %v3223 = vadd.f32 %v3215, %v1985
        %v3224 = vadd.f32 %v3216, %v1986
        %v3225 = vadd.f32 %v3217, %v1987
        %v3226 = vadd.f32 %v3218, %v1988
        %v3227 = vadd.f32 %v3219, %v1989
        %v3228 = vadd.f32 %v3220, %v1990
        %v3229 = vadd.f32 %v3221, %v1991
        %v3230 = vadd.f32 %v3222, %v1992
        %v3231 = vmax.f32 %v3223, 0.0
        %v3232 = vmax.f32 %v3224, 0.0
        %v3233 = vmax.f32 %v3225, 0.0
        %v3234 = vmax.f32 %v3226, 0.0
        %v3235 = vmax.f32 %v3227, 0.0
        %v3236 = vmax.f32 %v3228, 0.0
        %v3237 = vmax.f32 %v3229, 0.0
        %v3238 = vmax.f32 %v3230, 0.0
        %s3239 = scalar_lea.vmem %s312, 64 [#allocation7]
        %3240 = vst [vmem:[%s3239] sm:$0xff] %v3231
        %3241 = vst [vmem:[%s3239 + $0x8] sm:$0xff] %v3232
        %3242 = vst [vmem:[%s3239 + $0x10] sm:$0xff] %v3233
        %3243 = vst [vmem:[%s3239 + $0x18] sm:$0xff] %v3234
        %3244 = vst [vmem:[%s3239 + $0x20] sm:$0xff] %v3235
        %3245 = vst [vmem:[%s3239 + $0x28] sm:$0xff] %v3236
        %3246 = vst [vmem:[%s3239 + $0x30] sm:$0xff] %v3237
        %3247 = vst [vmem:[%s3239 + $0x38] sm:$0xff] %v3238
        %s3248 = sand.u32 %s185, 1
        %s3249 = scalar_lea.sflag [#allocation4], %s3248
        %s3250 = sand.u32 %s185, 1
        %s3251 = smul.addr %s3250, 128
        %s3252 = scalar_lea.vmem [#allocation7], %s3251
        // Predicated region
        $region57: #{tpu_custom_call.1} parent=47 // pred_check
          %p3253 = pneg %p195
        $region58: #{tpu_custom_call.1} parent=47 // pred_check_branch
          %3255 = sbr.rel (%p3253) target = $region60
        $region59: #{tpu_custom_call.1} parent=47 // pred_region
          %s3256 = smul.u32 2, %s25
          %s3258 = ssub.s32 2048, 2048
          %3259 = vsyncadd %s3249, %s3258
          %s3260 = smul.addr %s3256, 8
          %s3261 = smul.addr %s3260, 128
          %s3262 = scalar_lea.hbm %s7, %s3261
          %s3263 = sshll.u32 %s3252, 4
          %s3264 = int_to_ptr.vmem [resolvable:$true] %s3263
          %3269 = dma.vmem_to_hbm [thread:$0]  %s3264, 2048, %s3262, %s3249, 256, 256, 16
        $region60: #{tpu_custom_call.1} parent=47 // pred_fallthru
          _
      $region48: #{tpu_custom_call.1} parent=5 // pred_fallthru
        _
      %p3270 = scmp.le.s32.totalorder 2, %s20
      // Predicated region
      $region61: #{tpu_custom_call.1} parent=5 // pred_check
        %p3271 = pneg %p3270
      $region62: #{tpu_custom_call.1} parent=5 // pred_check_branch
        %3273 = sbr.rel (%p3271) target = $region64
      $region63: #{tpu_custom_call.1} parent=5 // pred_region
        %s3274 = ssub.s32 %s20, 2
        // Predicated region
        $region65: #{tpu_custom_call.1} parent=63 // pred_check
          %p3275 = pneg %p201
        $region66: #{tpu_custom_call.1} parent=63 // pred_check_branch
          %3277 = sbr.rel (%p3275) target = $region68
        $region67: #{tpu_custom_call.1} parent=63 // pred_region
          %s3278 = sand.u32 %s186, 1
          %s3279 = scalar_lea.sflag [#allocation4], %s3278
          %s3280 = sand.u32 %s186, 1
          %s3281 = smul.addr %s3280, 128
          %s3282 = scalar_lea.vmem [#allocation7], %s3281
          %3283 = dma.done %s3279, 2048
        $region68: #{tpu_custom_call.1} parent=63 // pred_fallthru
          _
      $region64: #{tpu_custom_call.1} parent=5 // pred_fallthru
        _
    $region6: #{tpu_custom_call.1} parent=1 // loop_footer
      %s24 = sadd.s32 1, %s20
    $region7: #{tpu_custom_call.1} parent=1 // loop_footer_branch
      %19 = sbr.rel target = $region3
    $region8: #{tpu_custom_call.1} parent=1 // loop_exit
      _
    %3284 = vsyncpa [#allocation3], 1
    %s3285 = scalar_lea.sflag [#allocation3], 1
    %3286 = vsyncpa %s3285, 1
    %3287 = vsyncpa [#allocation6], 1
    %3288 = vsyncpa [#allocation4], 1
    %s3289 = scalar_lea.sflag [#allocation4], 1
    %3290 = vsyncpa %s3289, 1

</llo_original>
